<compile_context>
chip_gen: v7x
topology: tpu7x:2x2x1
jax: 0.10.0
libtpu: 0.0.40
codegen_flags: <defaults>
</compile_context>

<pallas_src>
import functools

import jax
import jax.numpy as jnp
from jax.experimental import pallas as pl
from jax.experimental.pallas import tpu as pltpu

# ---------------- model hyper-params (from the module's __init__) -----------
INPUT_LEN = 168        # self.input_len  (Conv2d in_channels)
EMBED_DIM = 64         # self.embed_dim == temp dims
NODE_DIM = 64
NUM_LAYER = 3          # self.num_layer
HIDDEN_DIM = 4 * NODE_DIM          # concat of 4 embeddings = node_dim*4 = 256
REG_HIDDEN = 512                   # regression_layer Linear(256 -> 512)
FORECAST_NUM = 1                   # output_len / forecast_num
INPUT_DIM = 6                      # self.input_dim

# TPU-friendly padded sizes
LPAD = 256             # 168 -> 256 lanes per feature slot (zero padded)
PRED_PAD = 128         # 1-wide regression output padded to a full lane group

# TODO(synk): encoder is declared with hidden_dim=embed_dim=64 in the source,
# which is inconsistent with the concatenated hidden of size 256 that feeds it;
# we use 256 so the graph is shape-consistent with regression in_features=256.
# TODO(synk): hidden_align_layer is undefined in the source; implemented as
# Linear(256->256) followed by the torch.relu in forward.


def _stid_kernel(
    x_ref, node_ref,
    wemb_ref, bemb_ref,
    encw_ref, encb_ref,
    aw_ref, ab_ref,
    r1w_ref, r1b_ref, r2w_ref, r2b_ref,
    pred_ref, align_ref,
):
    # x_ref block: [1, tn, 3*LPAD] bf16; node_ref: [tn, 64] f32
    x = x_ref[0]                                    # [tn, 3*LPAD] bf16

    # ---- 1x1-conv embeddings (matmul over padded L, zero pad contributes 0) --
    embs = []
    for f in range(3):                              # load, time_in_day, day_in_week
        xf = x[:, f * LPAD:(f + 1) * LPAD]          # lane-aligned slice, bf16
        e = jnp.dot(xf, wemb_ref[f], preferred_element_type=jnp.float32)
        embs.append(e + bemb_ref[f])                # f32 bias add

    # ---- concat with spatial node embedding ---------------------------------
    hidden = jnp.concatenate(embs + [node_ref[...]], axis=-1)   # [tn, 256] f32

    # ---- encoder: NUM_LAYER residual one-FC MLP blocks -----------------------
    for layer in range(NUM_LAYER):
        h = jnp.dot(hidden.astype(jnp.bfloat16), encw_ref[layer],
                    preferred_element_type=jnp.float32) + encb_ref[layer]
        hidden = hidden + jnp.maximum(h, 0.0)       # fc -> relu -> (drop=id) -> +res

    # ---- hidden_align_layer + relu -------------------------------------------
    align = jnp.dot(hidden.astype(jnp.bfloat16), aw_ref[...],
                    preferred_element_type=jnp.float32) + ab_ref[...]
    align = jnp.maximum(align, 0.0)

    # ---- regression head: Linear(256,512) ReLU (drop=id) Linear(512,1) ReLU --
    h1 = jnp.dot(align.astype(jnp.bfloat16), r1w_ref[...],
                 preferred_element_type=jnp.float32) + r1b_ref[...]
    h1 = jnp.maximum(h1, 0.0)
    pred = jnp.dot(h1.astype(jnp.bfloat16), r2w_ref[...],
                   preferred_element_type=jnp.float32) + r2b_ref[...]
    pred = jnp.maximum(pred, 0.0)                   # [tn, 128] (cols 1..127 unused)

    pred_ref[0] = pred
    align_ref[0] = align


def init_params(key):
    """Deterministic parameter init (normal(0, 0.02) like init_weights)."""
    gain = 0.02
    ks = jax.random.split(key, 6)
    return {
        # stacked 1x1-conv embedding weights: [load, time_in_day, day_in_week]
        "w_emb": gain * jax.random.normal(ks[0], (3, INPUT_LEN, EMBED_DIM), jnp.float32),
        "b_emb": jnp.zeros((3, 1, EMBED_DIM), jnp.float32),
        "enc_w": gain * jax.random.normal(ks[1], (NUM_LAYER, HIDDEN_DIM, HIDDEN_DIM), jnp.float32),
        "enc_b": jnp.zeros((NUM_LAYER, 1, HIDDEN_DIM), jnp.float32),
        "align_w": gain * jax.random.normal(ks[2], (HIDDEN_DIM, HIDDEN_DIM), jnp.float32),
        "align_b": jnp.zeros((1, HIDDEN_DIM), jnp.float32),
        "reg1_w": gain * jax.random.normal(ks[3], (HIDDEN_DIM, REG_HIDDEN), jnp.float32),
        "reg1_b": jnp.zeros((1, REG_HIDDEN), jnp.float32),
        "reg2_w": gain * jax.random.normal(ks[4], (REG_HIDDEN, FORECAST_NUM), jnp.float32),
        "reg2_b": jnp.zeros((1, FORECAST_NUM), jnp.float32),
    }


@functools.partial(jax.jit, static_argnames=("tn",))
def regressor_forward(history_data, params, node_emb, *, tn=256):
    """history_data: [B, L, N, C] float32 (same axis convention as PyTorch)."""
    B, L, N, C = history_data.shape
    assert L == INPUT_LEN and C >= INPUT_DIM
    assert tn % 8 == 0
    n_tiles = pl.cdiv(N, tn)
    N_pad = n_tiles * tn

    # ---- one wrapper-side gather + transpose for all three feature planes ---
    feats = jnp.stack(
        [history_data[:, :, :, 0],
         history_data[:, :, :, INPUT_DIM - 2],
         history_data[:, :, :, INPUT_DIM - 1]], axis=-1)          # [B, L, N, 3]
    feats = jnp.transpose(feats, (0, 2, 3, 1))                    # [B, N, 3, L]
    feats = jnp.pad(feats, ((0, 0), (0, N_pad - N), (0, 0), (0, LPAD - L)))
    x = feats.reshape(B, N_pad, 3 * LPAD).astype(jnp.bfloat16)    # [B, N_pad, 768]

    # node embedding stays [N_pad, 64]; never broadcast to B*N rows in HBM.
    node_p = jnp.pad(node_emb.astype(jnp.float32), ((0, N_pad - N), (0, 0)))

    # ---- weights: pad (for aligned K / lane-dense output) + bf16 cast -------
    w_emb = jnp.pad(params["w_emb"], ((0, 0), (0, LPAD - L), (0, 0))).astype(jnp.bfloat16)
    b_emb = params["b_emb"]                                        # (3,1,64) f32
    enc_w = params["enc_w"].astype(jnp.bfloat16)
    enc_b = params["enc_b"]                                        # (3,1,256) f32
    align_w = params["align_w"].astype(jnp.bfloat16)
    align_b = params["align_b"]
    reg1_w = params["reg1_w"].astype(jnp.bfloat16)
    reg1_b = params["reg1_b"]
    reg2_w = jnp.pad(params["reg2_w"],
                     ((0, 0), (0, PRED_PAD - FORECAST_NUM))).astype(jnp.bfloat16)
    reg2_b = jnp.pad(params["reg2_b"], ((0, 0), (0, PRED_PAD - FORECAST_NUM)))

    const = lambda a: pl.BlockSpec(a.shape, lambda b, j, _n=None: (0,) * a.ndim)

    in_specs = [
        pl.BlockSpec((1, tn, 3 * LPAD), lambda b, j: (b, j, 0)),   # x
        pl.BlockSpec((tn, NODE_DIM), lambda b, j: (j, 0)),         # node emb (no b dep)
        const(w_emb), const(b_emb),
        const(enc_w), const(enc_b),
        const(align_w), const(align_b),
        const(reg1_w), const(reg1_b),
        const(reg2_w), const(reg2_b),
    ]
    out_specs = [
        pl.BlockSpec((1, tn, PRED_PAD), lambda b, j: (b, j, 0)),
        pl.BlockSpec((1, tn, HIDDEN_DIM), lambda b, j: (b, j, 0)),
    ]
    out_shape = [
        jax.ShapeDtypeStruct((B, N_pad, PRED_PAD), jnp.float32),
        jax.ShapeDtypeStruct((B, N_pad, HIDDEN_DIM), jnp.float32),
    ]

    # ---- cost estimate (helps XLA schedule surrounding transposes) ----------
    macs_per_row = (3 * LPAD * EMBED_DIM
                    + NUM_LAYER * HIDDEN_DIM * HIDDEN_DIM
                    + HIDDEN_DIM * HIDDEN_DIM
                    + HIDDEN_DIM * REG_HIDDEN
                    + REG_HIDDEN * PRED_PAD)
    rows = B * N_pad
    bytes_w = 2 * (w_emb.size + enc_w.size + align_w.size + reg1_w.size + reg2_w.size) \
              + 4 * (b_emb.size + enc_b.size + align_b.size + reg1_b.size + reg2_b.size)
    bytes_accessed = 2 * x.size + 4 * node_p.size + bytes_w \
                     + 4 * rows * (PRED_PAD + HIDDEN_DIM)
    cost = pl.CostEstimate(flops=2 * rows * macs_per_row,
                           transcendentals=0,
                           bytes_accessed=bytes_accessed)

    pred_full, align_full = pl.pallas_call(
        _stid_kernel,
        out_shape=out_shape,
        grid_spec=pltpu.PrefetchScalarGridSpec(
            num_scalar_prefetch=0,
            grid=(B, n_tiles),
            in_specs=in_specs,
            out_specs=out_specs,
        ),
        compiler_params=pltpu.CompilerParams(
            dimension_semantics=("parallel", "parallel")),
        cost_estimate=cost,
    )(
        x, node_p,
        w_emb, b_emb,
        enc_w, enc_b,
        align_w, align_b,
        reg1_w, reg1_b,
        reg2_w, reg2_b,
    )

    prediction = pred_full[:, :N, :FORECAST_NUM]          # [B, N, 1]
    hidden_align = align_full[:, :N, :]                    # [B, N, 256]
    return prediction, hidden_align


def reference_forward(history_data, params, node_emb):
    """Plain-JAX reference of the same computation (bf16 matmul inputs, f32 acc)."""
    B, L, N, C = history_data.shape
    M = B * N

    def rows(f):
        return jnp.transpose(history_data[:, :, :, f], (0, 2, 1)).reshape(M, L)

    def bdot(a, w):
        return jnp.dot(a.astype(jnp.bfloat16), w.astype(jnp.bfloat16),
                       preferred_element_type=jnp.float32)

    feats = [rows(0), rows(INPUT_DIM - 2), rows(INPUT_DIM - 1)]
    embs = [bdot(feats[f], params["w_emb"][f]) + params["b_emb"][f] for f in range(3)]
    node = jnp.broadcast_to(node_emb[None], (B, N, NODE_DIM)).reshape(M, NODE_DIM)
    h = jnp.concatenate(embs + [node.astype(jnp.float32)], axis=-1)
    for l in range(NUM_LAYER):
        t = bdot(h, params["enc_w"][l]) + params["enc_b"][l]
        h = h + jnp.maximum(t, 0.0)
    a = jnp.maximum(bdot(h, params["align_w"]) + params["align_b"], 0.0)
    h1 = jnp.maximum(bdot(a, params["reg1_w"]) + params["reg1_b"], 0.0)
    p = jnp.maximum(bdot(h1, params["reg2_w"]) + params["reg2_b"], 0.0)
    return p.reshape(B, N, FORECAST_NUM), a.reshape(B, N, HIDDEN_DIM)


if __name__ == "__main__":
    key = jax.random.PRNGKey(0)
    k_in, k_param, k_node = jax.random.split(key, 3)

    # small shapes: batch=2, nodes=8, L fixed at 168 by the conv in_channels, C=6
    B, N = 2, 8
    history_data = jax.random.normal(k_in, (B, INPUT_LEN, N, INPUT_DIM), jnp.float32)

    params = init_params(k_param)
    node_emb = 0.02 * jax.random.normal(k_node, (N, NODE_DIM), jnp.float32)

    pred, hidden_align = regressor_forward(history_data, params, node_emb)
    jax.block_until_ready((pred, hidden_align))

    ref_pred, ref_align = reference_forward(history_data, params, node_emb)
    assert pred.shape == (B, N, FORECAST_NUM)
    assert hidden_align.shape == (B, N, HIDDEN_DIM)
    assert jnp.allclose(pred, ref_pred, atol=2e-3, rtol=2e-3)
    assert jnp.allclose(hidden_align, ref_align, atol=2e-3, rtol=2e-3)

    print("KERNEL_OK")
</pallas_src>

<mosaic_0001>
module attributes {stable_mosaic.version = 11 : i64} {
  func.func @_stid_kernel(%arg0: i32, %arg1: i32, %arg2: memref<1x256x768xbf16, #tpu.memory_space<vmem>>, %arg3: memref<256x64xf32, #tpu.memory_space<vmem>>, %arg4: memref<3x256x64xbf16, #tpu.memory_space<vmem>>, %arg5: memref<3x1x64xf32, #tpu.memory_space<vmem>>, %arg6: memref<3x256x256xbf16, #tpu.memory_space<vmem>>, %arg7: memref<3x1x256xf32, #tpu.memory_space<vmem>>, %arg8: memref<256x256xbf16, #tpu.memory_space<vmem>>, %arg9: memref<1x256xf32, #tpu.memory_space<vmem>>, %arg10: memref<256x512xbf16, #tpu.memory_space<vmem>>, %arg11: memref<1x512xf32, #tpu.memory_space<vmem>>, %arg12: memref<512x128xbf16, #tpu.memory_space<vmem>>, %arg13: memref<1x128xf32, #tpu.memory_space<vmem>>, %arg14: memref<1x256x128xf32, #tpu.memory_space<vmem>>, %arg15: memref<1x256x256xf32, #tpu.memory_space<vmem>>) attributes {dimension_semantics = [#tpu.dimension_semantics<parallel>, #tpu.dimension_semantics<parallel>], iteration_bounds = array<i64: 2, 1>, scalar_prefetch = 0 : i64, scratch_operands = 0 : i64, tpu.core_type = #tpu.core_type<tc>, window_params = [{transform_indices = @transform_0, window_bounds = array<i64: 1, 256, 768>}, {transform_indices = @transform_1, window_bounds = array<i64: 256, 64>}, {pipeline_mode = #tpu.pipeline_mode<synchronous>, transform_indices = @transform_2, window_bounds = array<i64: 3, 256, 64>}, {pipeline_mode = #tpu.pipeline_mode<synchronous>, transform_indices = @transform_3, window_bounds = array<i64: 3, 1, 64>}, {pipeline_mode = #tpu.pipeline_mode<synchronous>, transform_indices = @transform_4, window_bounds = array<i64: 3, 256, 256>}, {pipeline_mode = #tpu.pipeline_mode<synchronous>, transform_indices = @transform_5, window_bounds = array<i64: 3, 1, 256>}, {pipeline_mode = #tpu.pipeline_mode<synchronous>, transform_indices = @transform_6, window_bounds = array<i64: 256, 256>}, {pipeline_mode = #tpu.pipeline_mode<synchronous>, transform_indices = @transform_7, window_bounds = array<i64: 1, 256>}, {pipeline_mode = #tpu.pipeline_mode<synchronous>, transform_indices = @transform_8, window_bounds = array<i64: 256, 512>}, {pipeline_mode = #tpu.pipeline_mode<synchronous>, transform_indices = @transform_9, window_bounds = array<i64: 1, 512>}, {pipeline_mode = #tpu.pipeline_mode<synchronous>, transform_indices = @transform_10, window_bounds = array<i64: 512, 128>}, {pipeline_mode = #tpu.pipeline_mode<synchronous>, transform_indices = @transform_11, window_bounds = array<i64: 1, 128>}, {transform_indices = @transform_12, window_bounds = array<i64: 1, 256, 128>}, {transform_indices = @transform_13, window_bounds = array<i64: 1, 256, 256>}]} {
    %c0 = arith.constant 0 : index
    %c0_0 = arith.constant 0 : index
    %c0_1 = arith.constant 0 : index
    %0 = vector.load %arg2[%c0, %c0_0, %c0_1] : memref<1x256x768xbf16, #tpu.memory_space<vmem>>, vector<1x256x768xbf16>
    %1 = vector.shape_cast %0 : vector<1x256x768xbf16> to vector<256x768xbf16>
    %2 = vector.extract_strided_slice %1 {offsets = [0, 0], sizes = [256, 256], strides = [1, 1]} : vector<256x768xbf16> to vector<256x256xbf16>
    %c0_2 = arith.constant 0 : index
    %c0_3 = arith.constant 0 : index
    %c0_4 = arith.constant 0 : index
    %3 = vector.load %arg4[%c0_2, %c0_3, %c0_4] : memref<3x256x64xbf16, #tpu.memory_space<vmem>>, vector<1x256x64xbf16>
    %4 = vector.shape_cast %3 : vector<1x256x64xbf16> to vector<256x64xbf16>
    %cst = arith.constant dense<0.000000e+00> : vector<256x64xf32>
    %5 = tpu.matmul %2, %4, %cst {dimension_numbers = #tpu.dot_dimension_numbers<[1], [0], [0], [1], [0, 0, 1, 1], [], []>} : vector<256x256xbf16>, vector<256x64xbf16>, vector<256x64xf32> -> vector<256x64xf32>
    %c0_5 = arith.constant 0 : index
    %c0_6 = arith.constant 0 : index
    %c0_7 = arith.constant 0 : index
    %6 = vector.load %arg5[%c0_5, %c0_6, %c0_7] : memref<3x1x64xf32, #tpu.memory_space<vmem>>, vector<1x1x64xf32>
    %7 = vector.shape_cast %6 : vector<1x1x64xf32> to vector<1x64xf32>
    %8 = vector.broadcast %7 : vector<1x64xf32> to vector<256x64xf32>
    %9 = arith.addf %5, %8 : vector<256x64xf32>
    %10 = vector.extract_strided_slice %1 {offsets = [0, 256], sizes = [256, 256], strides = [1, 1]} : vector<256x768xbf16> to vector<256x256xbf16>
    %c1 = arith.constant 1 : index
    %c0_8 = arith.constant 0 : index
    %c0_9 = arith.constant 0 : index
    %11 = vector.load %arg4[%c1, %c0_8, %c0_9] : memref<3x256x64xbf16, #tpu.memory_space<vmem>>, vector<1x256x64xbf16>
    %12 = vector.shape_cast %11 : vector<1x256x64xbf16> to vector<256x64xbf16>
    %cst_10 = arith.constant dense<0.000000e+00> : vector<256x64xf32>
    %13 = tpu.matmul %10, %12, %cst_10 {dimension_numbers = #tpu.dot_dimension_numbers<[1], [0], [0], [1], [0, 0, 1, 1], [], []>} : vector<256x256xbf16>, vector<256x64xbf16>, vector<256x64xf32> -> vector<256x64xf32>
    %c1_11 = arith.constant 1 : index
    %c0_12 = arith.constant 0 : index
    %c0_13 = arith.constant 0 : index
    %14 = vector.load %arg5[%c1_11, %c0_12, %c0_13] : memref<3x1x64xf32, #tpu.memory_space<vmem>>, vector<1x1x64xf32>
    %15 = vector.shape_cast %14 : vector<1x1x64xf32> to vector<1x64xf32>
    %16 = vector.broadcast %15 : vector<1x64xf32> to vector<256x64xf32>
    %17 = arith.addf %13, %16 : vector<256x64xf32>
    %18 = vector.extract_strided_slice %1 {offsets = [0, 512], sizes = [256, 256], strides = [1, 1]} : vector<256x768xbf16> to vector<256x256xbf16>
    %c2 = arith.constant 2 : index
    %c0_14 = arith.constant 0 : index
    %c0_15 = arith.constant 0 : index
    %19 = vector.load %arg4[%c2, %c0_14, %c0_15] : memref<3x256x64xbf16, #tpu.memory_space<vmem>>, vector<1x256x64xbf16>
    %20 = vector.shape_cast %19 : vector<1x256x64xbf16> to vector<256x64xbf16>
    %cst_16 = arith.constant dense<0.000000e+00> : vector<256x64xf32>
    %21 = tpu.matmul %18, %20, %cst_16 {dimension_numbers = #tpu.dot_dimension_numbers<[1], [0], [0], [1], [0, 0, 1, 1], [], []>} : vector<256x256xbf16>, vector<256x64xbf16>, vector<256x64xf32> -> vector<256x64xf32>
    %c2_17 = arith.constant 2 : index
    %c0_18 = arith.constant 0 : index
    %c0_19 = arith.constant 0 : index
    %22 = vector.load %arg5[%c2_17, %c0_18, %c0_19] : memref<3x1x64xf32, #tpu.memory_space<vmem>>, vector<1x1x64xf32>
    %23 = vector.shape_cast %22 : vector<1x1x64xf32> to vector<1x64xf32>
    %24 = vector.broadcast %23 : vector<1x64xf32> to vector<256x64xf32>
    %25 = arith.addf %21, %24 : vector<256x64xf32>
    %c0_20 = arith.constant 0 : index
    %c0_21 = arith.constant 0 : index
    %26 = vector.load %arg3[%c0_20, %c0_21] : memref<256x64xf32, #tpu.memory_space<vmem>>, vector<256x64xf32>
    %27 = tpu.concatenate %9, %17, %25, %26 in 1 : vector<256x64xf32>, vector<256x64xf32>, vector<256x64xf32>, vector<256x64xf32> -> vector<256x256xf32>
    %28 = arith.truncf %27 : vector<256x256xf32> to vector<256x256xbf16>
    %c0_22 = arith.constant 0 : index
    %c0_23 = arith.constant 0 : index
    %c0_24 = arith.constant 0 : index
    %29 = vector.load %arg6[%c0_22, %c0_23, %c0_24] : memref<3x256x256xbf16, #tpu.memory_space<vmem>>, vector<1x256x256xbf16>
    %30 = vector.shape_cast %29 : vector<1x256x256xbf16> to vector<256x256xbf16>
    %cst_25 = arith.constant dense<0.000000e+00> : vector<256x256xf32>
    %31 = tpu.matmul %28, %30, %cst_25 {dimension_numbers = #tpu.dot_dimension_numbers<[1], [0], [0], [1], [0, 0, 1, 1], [], []>} : vector<256x256xbf16>, vector<256x256xbf16>, vector<256x256xf32> -> vector<256x256xf32>
    %c0_26 = arith.constant 0 : index
    %c0_27 = arith.constant 0 : index
    %c0_28 = arith.constant 0 : index
    %32 = vector.load %arg7[%c0_26, %c0_27, %c0_28] : memref<3x1x256xf32, #tpu.memory_space<vmem>>, vector<1x1x256xf32>
    %33 = vector.shape_cast %32 : vector<1x1x256xf32> to vector<1x256xf32>
    %34 = vector.broadcast %33 : vector<1x256xf32> to vector<256x256xf32>
    %35 = arith.addf %31, %34 : vector<256x256xf32>
    %cst_29 = arith.constant 0.000000e+00 : f32
    %36 = vector.broadcast %cst_29 : f32 to vector<256x256xf32>
    %37 = arith.maximumf %35, %36 : vector<256x256xf32>
    %38 = arith.addf %27, %37 : vector<256x256xf32>
    %39 = arith.truncf %38 : vector<256x256xf32> to vector<256x256xbf16>
    %c1_30 = arith.constant 1 : index
    %c0_31 = arith.constant 0 : index
    %c0_32 = arith.constant 0 : index
    %40 = vector.load %arg6[%c1_30, %c0_31, %c0_32] : memref<3x256x256xbf16, #tpu.memory_space<vmem>>, vector<1x256x256xbf16>
    %41 = vector.shape_cast %40 : vector<1x256x256xbf16> to vector<256x256xbf16>
    %cst_33 = arith.constant dense<0.000000e+00> : vector<256x256xf32>
    %42 = tpu.matmul %39, %41, %cst_33 {dimension_numbers = #tpu.dot_dimension_numbers<[1], [0], [0], [1], [0, 0, 1, 1], [], []>} : vector<256x256xbf16>, vector<256x256xbf16>, vector<256x256xf32> -> vector<256x256xf32>
    %c1_34 = arith.constant 1 : index
    %c0_35 = arith.constant 0 : index
    %c0_36 = arith.constant 0 : index
    %43 = vector.load %arg7[%c1_34, %c0_35, %c0_36] : memref<3x1x256xf32, #tpu.memory_space<vmem>>, vector<1x1x256xf32>
    %44 = vector.shape_cast %43 : vector<1x1x256xf32> to vector<1x256xf32>
    %45 = vector.broadcast %44 : vector<1x256xf32> to vector<256x256xf32>
    %46 = arith.addf %42, %45 : vector<256x256xf32>
    %cst_37 = arith.constant 0.000000e+00 : f32
    %47 = vector.broadcast %cst_37 : f32 to vector<256x256xf32>
    %48 = arith.maximumf %46, %47 : vector<256x256xf32>
    %49 = arith.addf %38, %48 : vector<256x256xf32>
    %50 = arith.truncf %49 : vector<256x256xf32> to vector<256x256xbf16>
    %c2_38 = arith.constant 2 : index
    %c0_39 = arith.constant 0 : index
    %c0_40 = arith.constant 0 : index
    %51 = vector.load %arg6[%c2_38, %c0_39, %c0_40] : memref<3x256x256xbf16, #tpu.memory_space<vmem>>, vector<1x256x256xbf16>
    %52 = vector.shape_cast %51 : vector<1x256x256xbf16> to vector<256x256xbf16>
    %cst_41 = arith.constant dense<0.000000e+00> : vector<256x256xf32>
    %53 = tpu.matmul %50, %52, %cst_41 {dimension_numbers = #tpu.dot_dimension_numbers<[1], [0], [0], [1], [0, 0, 1, 1], [], []>} : vector<256x256xbf16>, vector<256x256xbf16>, vector<256x256xf32> -> vector<256x256xf32>
    %c2_42 = arith.constant 2 : index
    %c0_43 = arith.constant 0 : index
    %c0_44 = arith.constant 0 : index
    %54 = vector.load %arg7[%c2_42, %c0_43, %c0_44] : memref<3x1x256xf32, #tpu.memory_space<vmem>>, vector<1x1x256xf32>
    %55 = vector.shape_cast %54 : vector<1x1x256xf32> to vector<1x256xf32>
    %56 = vector.broadcast %55 : vector<1x256xf32> to vector<256x256xf32>
    %57 = arith.addf %53, %56 : vector<256x256xf32>
    %cst_45 = arith.constant 0.000000e+00 : f32
    %58 = vector.broadcast %cst_45 : f32 to vector<256x256xf32>
    %59 = arith.maximumf %57, %58 : vector<256x256xf32>
    %60 = arith.addf %49, %59 : vector<256x256xf32>
    %61 = arith.truncf %60 : vector<256x256xf32> to vector<256x256xbf16>
    %c0_46 = arith.constant 0 : index
    %c0_47 = arith.constant 0 : index
    %62 = vector.load %arg8[%c0_46, %c0_47] : memref<256x256xbf16, #tpu.memory_space<vmem>>, vector<256x256xbf16>
    %cst_48 = arith.constant dense<0.000000e+00> : vector<256x256xf32>
    %63 = tpu.matmul %61, %62, %cst_48 {dimension_numbers = #tpu.dot_dimension_numbers<[1], [0], [0], [1], [0, 0, 1, 1], [], []>} : vector<256x256xbf16>, vector<256x256xbf16>, vector<256x256xf32> -> vector<256x256xf32>
    %c0_49 = arith.constant 0 : index
    %c0_50 = arith.constant 0 : index
    %64 = vector.load %arg9[%c0_49, %c0_50] : memref<1x256xf32, #tpu.memory_space<vmem>>, vector<1x256xf32>
    %65 = vector.broadcast %64 : vector<1x256xf32> to vector<256x256xf32>
    %66 = arith.addf %63, %65 : vector<256x256xf32>
    %cst_51 = arith.constant 0.000000e+00 : f32
    %67 = vector.broadcast %cst_51 : f32 to vector<256x256xf32>
    %68 = arith.maximumf %66, %67 : vector<256x256xf32>
    %69 = arith.truncf %68 : vector<256x256xf32> to vector<256x256xbf16>
    %c0_52 = arith.constant 0 : index
    %c0_53 = arith.constant 0 : index
    %70 = vector.load %arg10[%c0_52, %c0_53] : memref<256x512xbf16, #tpu.memory_space<vmem>>, vector<256x512xbf16>
    %cst_54 = arith.constant dense<0.000000e+00> : vector<256x512xf32>
    %71 = tpu.matmul %69, %70, %cst_54 {dimension_numbers = #tpu.dot_dimension_numbers<[1], [0], [0], [1], [0, 0, 1, 1], [], []>} : vector<256x256xbf16>, vector<256x512xbf16>, vector<256x512xf32> -> vector<256x512xf32>
    %c0_55 = arith.constant 0 : index
    %c0_56 = arith.constant 0 : index
    %72 = vector.load %arg11[%c0_55, %c0_56] : memref<1x512xf32, #tpu.memory_space<vmem>>, vector<1x512xf32>
    %73 = vector.broadcast %72 : vector<1x512xf32> to vector<256x512xf32>
    %74 = arith.addf %71, %73 : vector<256x512xf32>
    %cst_57 = arith.constant 0.000000e+00 : f32
    %75 = vector.broadcast %cst_57 : f32 to vector<256x512xf32>
    %76 = arith.maximumf %74, %75 : vector<256x512xf32>
    %77 = arith.truncf %76 : vector<256x512xf32> to vector<256x512xbf16>
    %c0_58 = arith.constant 0 : index
    %c0_59 = arith.constant 0 : index
    %78 = vector.load %arg12[%c0_58, %c0_59] : memref<512x128xbf16, #tpu.memory_space<vmem>>, vector<512x128xbf16>
    %cst_60 = arith.constant dense<0.000000e+00> : vector<256x128xf32>
    %79 = tpu.matmul %77, %78, %cst_60 {dimension_numbers = #tpu.dot_dimension_numbers<[1], [0], [0], [1], [0, 0, 1, 1], [], []>} : vector<256x512xbf16>, vector<512x128xbf16>, vector<256x128xf32> -> vector<256x128xf32>
    %c0_61 = arith.constant 0 : index
    %c0_62 = arith.constant 0 : index
    %80 = vector.load %arg13[%c0_61, %c0_62] : memref<1x128xf32, #tpu.memory_space<vmem>>, vector<1x128xf32>
    %81 = vector.broadcast %80 : vector<1x128xf32> to vector<256x128xf32>
    %82 = arith.addf %79, %81 : vector<256x128xf32>
    %cst_63 = arith.constant 0.000000e+00 : f32
    %83 = vector.broadcast %cst_63 : f32 to vector<256x128xf32>
    %84 = arith.maximumf %82, %83 : vector<256x128xf32>
    %c0_64 = arith.constant 0 : index
    %c0_65 = arith.constant 0 : index
    %c0_66 = arith.constant 0 : index
    %85 = vector.load %arg14[%c0_64, %c0_65, %c0_66] : memref<1x256x128xf32, #tpu.memory_space<vmem>>, vector<1x256x128xf32>
    %86 = vector.shape_cast %85 : vector<1x256x128xf32> to vector<256x128xf32>
    %87 = vector.shape_cast %84 : vector<256x128xf32> to vector<1x256x128xf32>
    tpu.vector_store %arg14[%c0_64, %c0_65, %c0_66], %87 {strides = array<i32>} : memref<1x256x128xf32, #tpu.memory_space<vmem>>, vector<1x256x128xf32>,
    %c0_67 = arith.constant 0 : index
    %c0_68 = arith.constant 0 : index
    %c0_69 = arith.constant 0 : index
    %88 = vector.load %arg15[%c0_67, %c0_68, %c0_69] : memref<1x256x256xf32, #tpu.memory_space<vmem>>, vector<1x256x256xf32>
    %89 = vector.shape_cast %88 : vector<1x256x256xf32> to vector<256x256xf32>
    %90 = vector.shape_cast %68 : vector<256x256xf32> to vector<1x256x256xf32>
    tpu.vector_store %arg15[%c0_67, %c0_68, %c0_69], %90 {strides = array<i32>} : memref<1x256x256xf32, #tpu.memory_space<vmem>>, vector<1x256x256xf32>,
    return
  }
  func.func @transform_0(%arg0: i32, %arg1: i32) -> (i32, i32, i32) {
    %c0_i32 = arith.constant 0 : i32
    %c0_i32_0 = arith.constant 0 : i32
    return %arg0, %arg1, %c0_i32 : i32, i32, i32
  }
  func.func @transform_1(%arg0: i32, %arg1: i32) -> (i32, i32) {
    %c0_i32 = arith.constant 0 : i32
    %c0_i32_0 = arith.constant 0 : i32
    return %arg1, %c0_i32 : i32, i32
  }
  func.func @transform_2(%arg0: i32, %arg1: i32) -> (i32, i32, i32) {
    %c0_i32 = arith.constant 0 : i32
    %c0_i32_0 = arith.constant 0 : i32
    %c0_i32_1 = arith.constant 0 : i32
    %c0_i32_2 = arith.constant 0 : i32
    return %c0_i32, %c0_i32_0, %c0_i32_1 : i32, i32, i32
  }
  func.func @transform_3(%arg0: i32, %arg1: i32) -> (i32, i32, i32) {
    %c0_i32 = arith.constant 0 : i32
    %c0_i32_0 = arith.constant 0 : i32
    %c0_i32_1 = arith.constant 0 : i32
    %c0_i32_2 = arith.constant 0 : i32
    return %c0_i32, %c0_i32_0, %c0_i32_1 : i32, i32, i32
  }
  func.func @transform_4(%arg0: i32, %arg1: i32) -> (i32, i32, i32) {
    %c0_i32 = arith.constant 0 : i32
    %c0_i32_0 = arith.constant 0 : i32
    %c0_i32_1 = arith.constant 0 : i32
    %c0_i32_2 = arith.constant 0 : i32
    return %c0_i32, %c0_i32_0, %c0_i32_1 : i32, i32, i32
  }
  func.func @transform_5(%arg0: i32, %arg1: i32) -> (i32, i32, i32) {
    %c0_i32 = arith.constant 0 : i32
    %c0_i32_0 = arith.constant 0 : i32
    %c0_i32_1 = arith.constant 0 : i32
    %c0_i32_2 = arith.constant 0 : i32
    return %c0_i32, %c0_i32_0, %c0_i32_1 : i32, i32, i32
  }
  func.func @transform_6(%arg0: i32, %arg1: i32) -> (i32, i32) {
    %c0_i32 = arith.constant 0 : i32
    %c0_i32_0 = arith.constant 0 : i32
    %c0_i32_1 = arith.constant 0 : i32
    return %c0_i32, %c0_i32_0 : i32, i32
  }
  func.func @transform_7(%arg0: i32, %arg1: i32) -> (i32, i32) {
    %c0_i32 = arith.constant 0 : i32
    %c0_i32_0 = arith.constant 0 : i32
    %c0_i32_1 = arith.constant 0 : i32
    return %c0_i32, %c0_i32_0 : i32, i32
  }
  func.func @transform_8(%arg0: i32, %arg1: i32) -> (i32, i32) {
    %c0_i32 = arith.constant 0 : i32
    %c0_i32_0 = arith.constant 0 : i32
    %c0_i32_1 = arith.constant 0 : i32
    return %c0_i32, %c0_i32_0 : i32, i32
  }
  func.func @transform_9(%arg0: i32, %arg1: i32) -> (i32, i32) {
    %c0_i32 = arith.constant 0 : i32
    %c0_i32_0 = arith.constant 0 : i32
    %c0_i32_1 = arith.constant 0 : i32
    return %c0_i32, %c0_i32_0 : i32, i32
  }
  func.func @transform_10(%arg0: i32, %arg1: i32) -> (i32, i32) {
    %c0_i32 = arith.constant 0 : i32
    %c0_i32_0 = arith.constant 0 : i32
    %c0_i32_1 = arith.constant 0 : i32
    return %c0_i32, %c0_i32_0 : i32, i32
  }
  func.func @transform_11(%arg0: i32, %arg1: i32) -> (i32, i32) {
    %c0_i32 = arith.constant 0 : i32
    %c0_i32_0 = arith.constant 0 : i32
    %c0_i32_1 = arith.constant 0 : i32
    return %c0_i32, %c0_i32_0 : i32, i32
  }
  func.func @transform_12(%arg0: i32, %arg1: i32) -> (i32, i32, i32) {
    %c0_i32 = arith.constant 0 : i32
    %c0_i32_0 = arith.constant 0 : i32
    return %arg0, %arg1, %c0_i32 : i32, i32, i32
  }
  func.func @transform_13(%arg0: i32, %arg1: i32) -> (i32, i32, i32) {
    %c0_i32 = arith.constant 0 : i32
    %c0_i32_0 = arith.constant 0 : i32
    return %arg0, %arg1, %c0_i32 : i32, i32, i32
  }
}

</mosaic_0001>

<llo_original>
// kernel: regressor_forward.1
$region0: #{regressor_forward.1}
  #allocation0 [shape = 'u32[]', space=smem, size = 0x4, offset = 0x4, fixed_abs, tag = 'smem constant byte address 0x4 - core index']
  #allocation1 [shape = 'u32[144,128]{1,0:T(1,128)}', space=vmem, size = 0x12000, scoped, tag = 'internal scratch']
  %s0 = inlined_call_operand.vmem [shape: bf16[2,256,768], index: 0, kind: input, shape index: {}]
  %s1 = inlined_call_operand.vmem [shape: f32[256,64], index: 1, kind: input, shape index: {}]
  %s2 = inlined_call_operand.vmem [shape: bf16[3,256,64], index: 2, kind: input, shape index: {}]
  %s3 = inlined_call_operand.vmem [shape: f32[3,1,64], index: 3, kind: input, shape index: {}]
  %s4 = inlined_call_operand.vmem [shape: bf16[3,256,256], index: 4, kind: input, shape index: {}]
  %s5 = inlined_call_operand.vmem [shape: f32[3,1,256], index: 5, kind: input, shape index: {}]
  %s6 = inlined_call_operand.vmem [shape: bf16[256,256], index: 6, kind: input, shape index: {}]
  %s7 = inlined_call_operand.vmem [shape: f32[1,256], index: 7, kind: input, shape index: {}]
  %s8 = inlined_call_operand.vmem [shape: bf16[256,512], index: 8, kind: input, shape index: {}]
  %s9 = inlined_call_operand.vmem [shape: f32[1,512], index: 9, kind: input, shape index: {}]
  %s10 = inlined_call_operand.vmem [shape: bf16[512,128], index: 10, kind: input, shape index: {}]
  %s11 = inlined_call_operand.vmem [shape: f32[1,128], index: 11, kind: input, shape index: {}]
  %s12 = inlined_call_operand.vmem [shape: f32[2,256,128], index: 12, kind: output, shape index: {0}]
  %s13 = inlined_call_operand.vmem [shape: f32[2,256,256], index: 13, kind: output, shape index: {1}]
  %14 = xla_tuple %s12, %s13
  %s15 = sld [smem:[#allocation0]]
  $region89: #{regressor_forward.1} parent=0
    _
  %s17 = ssub.s32 1, %s15
  %s18 = scalar_select 0, %s17, %s15
  loop: start=0, step=1, limit=4
  $region2: #{regressor_forward.1} parent=0 // loop_pre_header
    _
  $region3: #{regressor_forward.1} parent=0 // loop_header
    %s20 = sphi 0, %s24
    %p21 = scmp.ge.s32.totalorder %s20, 4
    %s27 = sphi 0, %s39
    %s28 = sphi 0, %s35
    %s29 = sphi 0, %s27
    %s30 = sphi 0, %s28
    %s31 = sphi 0, %s29
    %s32 = sphi 0, %s30
    %s44 = sphi 0, %s46
    %s47 = sphi 0, %s44
    %s48 = sphi 0, %s47
    %s64 = sphi 0, %s48
    %s70 = sphi 0, %s72
    %s73 = sphi 0, %s70
    %s74 = sphi 0, %s73
    %s90 = sphi 0, %s74
    %s94 = sphi 0, %s94
    %s96 = sphi 0, %s94
    %s97 = sphi 0, %s96
    %s111 = sphi 0, %s97
    %s115 = sphi 0, %s115
    %s117 = sphi 0, %s115
    %s118 = sphi 0, %s117
    %s132 = sphi 0, %s118
    %s136 = sphi 0, %s136
    %s138 = sphi 0, %s136
    %s139 = sphi 0, %s138
    %s153 = sphi 0, %s139
    %s157 = sphi 0, %s157
    %s159 = sphi 0, %s157
    %s160 = sphi 0, %s159
    %s174 = sphi 0, %s160
    %s178 = sphi 0, %s178
    %s180 = sphi 0, %s178
    %s181 = sphi 0, %s180
    %s195 = sphi 0, %s181
    %s199 = sphi 0, %s199
    %s201 = sphi 0, %s199
    %s202 = sphi 0, %s201
    %s216 = sphi 0, %s202
    %s220 = sphi 0, %s220
    %s222 = sphi 0, %s220
    %s223 = sphi 0, %s222
    %s237 = sphi 0, %s223
    %s241 = sphi 0, %s241
    %s243 = sphi 0, %s241
    %s244 = sphi 0, %s243
    %s258 = sphi 0, %s244
    %s262 = sphi 0, %s262
    %s264 = sphi 0, %s262
    %s265 = sphi 0, %s264
    %s279 = sphi 0, %s265
    %s283 = sphi 0, %s283
    %s285 = sphi 0, %s283
    %s286 = sphi 0, %s285
    %s300 = sphi 0, %s286
    %s308 = sphi 0, %s310
    %s311 = sphi 0, %s308
    %s312 = sphi 0, %s311
    %s328 = sphi 0, %s312
    %s336 = sphi 0, %s338
    %s339 = sphi 0, %s336
    %s340 = sphi 0, %s339
    %s356 = sphi 0, %s340
  $region4: #{regressor_forward.1} parent=0 // loop_header_branch
    %23 = sbr.rel (%p21) target = $region8
  $region5: #{regressor_forward.1} parent=0 // loop_body
    %s25 = ssub.s32 %s20, 1
    %s26 = ssub.s32 %s20, 2
    %s33 = sadd.s32 1, %s28
    %p34 = scmp.ge.s32.totalorder %s33, 1
    %s35 = scalar_select %p34, 0, %s33
    %s36 = sadd.s32 1, %s27
    %s37 = scalar_select %p34, %s36, %s27
    %p38 = scmp.ge.s32.totalorder %s37, 2
    %s39 = scalar_select %p38, 0, %s37
    %s40 = ssub.s32 %s27, %s39
    %s41 = ssub.s32 %s28, %s35
    %s42 = sor.u32 %s40, %s41
    %p43 = scmp.eq.s32.totalorder %s42, 0
    %s45 = sadd.s32 %s44, 1
    %s46 = scalar_select %p43, %s44, %s45
    %p49 = pneg %p43
    %p50 = scmp.eq.s32.totalorder %s20, 1
    %p51 = por %p49, %p50
    %p52 = scmp.ne.s32.totalorder %s44, %s47
    %p53 = scmp.eq.s32.totalorder %s20, 0
    %p54 = por %p52, %p53
    %p55 = scmp.ne.s32.totalorder %s44, %s47
    %p56 = scmp.eq.s32.totalorder %s25, 1
    %p57 = por %p55, %p56
    %p58 = scmp.ne.s32.totalorder %s47, %s48
    %p59 = scmp.eq.s32.totalorder %s25, 0
    %p60 = por %p58, %p59
    %p61 = scmp.ne.s32.totalorder %s47, %s48
    %p62 = scmp.eq.s32.totalorder %s26, 1
    %p63 = por %p61, %p62
    %p65 = scmp.ne.s32.totalorder %s48, %s64
    %p66 = scmp.eq.s32.totalorder %s26, 0
    %p67 = por %p65, %p66
    %s68 = ssub.s32 %s28, %s35
    %p69 = scmp.eq.s32.totalorder %s68, 0
    %s71 = sadd.s32 %s70, 1
    %s72 = scalar_select %p69, %s70, %s71
    %p75 = pneg %p69
    %p76 = scmp.eq.s32.totalorder %s20, 1
    %p77 = por %p75, %p76
    %p78 = scmp.ne.s32.totalorder %s70, %s73
    %p79 = scmp.eq.s32.totalorder %s20, 0
    %p80 = por %p78, %p79
    %p81 = scmp.ne.s32.totalorder %s70, %s73
    %p82 = scmp.eq.s32.totalorder %s25, 1
    %p83 = por %p81, %p82
    %p84 = scmp.ne.s32.totalorder %s73, %s74
    %p85 = scmp.eq.s32.totalorder %s25, 0
    %p86 = por %p84, %p85
    %p87 = scmp.ne.s32.totalorder %s73, %s74
    %p88 = scmp.eq.s32.totalorder %s26, 1
    %p89 = por %p87, %p88
    %p91 = scmp.ne.s32.totalorder %s74, %s90
    %p92 = scmp.eq.s32.totalorder %s26, 0
    %p93 = por %p91, %p92
    %s95 = sadd.s32 %s94, 1
    %p98 = scmp.eq.s32.totalorder %s20, 1
    %p99 = scmp.ne.s32.totalorder %s94, %s96
    %p100 = scmp.eq.s32.totalorder %s20, 0
    %p101 = por %p99, %p100
    %p102 = scmp.ne.s32.totalorder %s94, %s96
    %p103 = scmp.eq.s32.totalorder %s25, 1
    %p104 = por %p102, %p103
    %p105 = scmp.ne.s32.totalorder %s96, %s97
    %p106 = scmp.eq.s32.totalorder %s25, 0
    %p107 = por %p105, %p106
    %p108 = scmp.ne.s32.totalorder %s96, %s97
    %p109 = scmp.eq.s32.totalorder %s26, 1
    %p110 = por %p108, %p109
    %p112 = scmp.ne.s32.totalorder %s97, %s111
    %p113 = scmp.eq.s32.totalorder %s26, 0
    %p114 = por %p112, %p113
    %s116 = sadd.s32 %s115, 1
    %p119 = scmp.eq.s32.totalorder %s20, 1
    %p120 = scmp.ne.s32.totalorder %s115, %s117
    %p121 = scmp.eq.s32.totalorder %s20, 0
    %p122 = por %p120, %p121
    %p123 = scmp.ne.s32.totalorder %s115, %s117
    %p124 = scmp.eq.s32.totalorder %s25, 1
    %p125 = por %p123, %p124
    %p126 = scmp.ne.s32.totalorder %s117, %s118
    %p127 = scmp.eq.s32.totalorder %s25, 0
    %p128 = por %p126, %p127
    %p129 = scmp.ne.s32.totalorder %s117, %s118
    %p130 = scmp.eq.s32.totalorder %s26, 1
    %p131 = por %p129, %p130
    %p133 = scmp.ne.s32.totalorder %s118, %s132
    %p134 = scmp.eq.s32.totalorder %s26, 0
    %p135 = por %p133, %p134
    %s137 = sadd.s32 %s136, 1
    %p140 = scmp.eq.s32.totalorder %s20, 1
    %p141 = scmp.ne.s32.totalorder %s136, %s138
    %p142 = scmp.eq.s32.totalorder %s20, 0
    %p143 = por %p141, %p142
    %p144 = scmp.ne.s32.totalorder %s136, %s138
    %p145 = scmp.eq.s32.totalorder %s25, 1
    %p146 = por %p144, %p145
    %p147 = scmp.ne.s32.totalorder %s138, %s139
    %p148 = scmp.eq.s32.totalorder %s25, 0
    %p149 = por %p147, %p148
    %p150 = scmp.ne.s32.totalorder %s138, %s139
    %p151 = scmp.eq.s32.totalorder %s26, 1
    %p152 = por %p150, %p151
    %p154 = scmp.ne.s32.totalorder %s139, %s153
    %p155 = scmp.eq.s32.totalorder %s26, 0
    %p156 = por %p154, %p155
    %s158 = sadd.s32 %s157, 1
    %p161 = scmp.eq.s32.totalorder %s20, 1
    %p162 = scmp.ne.s32.totalorder %s157, %s159
    %p163 = scmp.eq.s32.totalorder %s20, 0
    %p164 = por %p162, %p163
    %p165 = scmp.ne.s32.totalorder %s157, %s159
    %p166 = scmp.eq.s32.totalorder %s25, 1
    %p167 = por %p165, %p166
    %p168 = scmp.ne.s32.totalorder %s159, %s160
    %p169 = scmp.eq.s32.totalorder %s25, 0
    %p170 = por %p168, %p169
    %p171 = scmp.ne.s32.totalorder %s159, %s160
    %p172 = scmp.eq.s32.totalorder %s26, 1
    %p173 = por %p171, %p172
    %p175 = scmp.ne.s32.totalorder %s160, %s174
    %p176 = scmp.eq.s32.totalorder %s26, 0
    %p177 = por %p175, %p176
    %s179 = sadd.s32 %s178, 1
    %p182 = scmp.eq.s32.totalorder %s20, 1
    %p183 = scmp.ne.s32.totalorder %s178, %s180
    %p184 = scmp.eq.s32.totalorder %s20, 0
    %p185 = por %p183, %p184
    %p186 = scmp.ne.s32.totalorder %s178, %s180
    %p187 = scmp.eq.s32.totalorder %s25, 1
    %p188 = por %p186, %p187
    %p189 = scmp.ne.s32.totalorder %s180, %s181
    %p190 = scmp.eq.s32.totalorder %s25, 0
    %p191 = por %p189, %p190
    %p192 = scmp.ne.s32.totalorder %s180, %s181
    %p193 = scmp.eq.s32.totalorder %s26, 1
    %p194 = por %p192, %p193
    %p196 = scmp.ne.s32.totalorder %s181, %s195
    %p197 = scmp.eq.s32.totalorder %s26, 0
    %p198 = por %p196, %p197
    %s200 = sadd.s32 %s199, 1
    %p203 = scmp.eq.s32.totalorder %s20, 1
    %p204 = scmp.ne.s32.totalorder %s199, %s201
    %p205 = scmp.eq.s32.totalorder %s20, 0
    %p206 = por %p204, %p205
    %p207 = scmp.ne.s32.totalorder %s199, %s201
    %p208 = scmp.eq.s32.totalorder %s25, 1
    %p209 = por %p207, %p208
    %p210 = scmp.ne.s32.totalorder %s201, %s202
    %p211 = scmp.eq.s32.totalorder %s25, 0
    %p212 = por %p210, %p211
    %p213 = scmp.ne.s32.totalorder %s201, %s202
    %p214 = scmp.eq.s32.totalorder %s26, 1
    %p215 = por %p213, %p214
    %p217 = scmp.ne.s32.totalorder %s202, %s216
    %p218 = scmp.eq.s32.totalorder %s26, 0
    %p219 = por %p217, %p218
    %s221 = sadd.s32 %s220, 1
    %p224 = scmp.eq.s32.totalorder %s20, 1
    %p225 = scmp.ne.s32.totalorder %s220, %s222
    %p226 = scmp.eq.s32.totalorder %s20, 0
    %p227 = por %p225, %p226
    %p228 = scmp.ne.s32.totalorder %s220, %s222
    %p229 = scmp.eq.s32.totalorder %s25, 1
    %p230 = por %p228, %p229
    %p231 = scmp.ne.s32.totalorder %s222, %s223
    %p232 = scmp.eq.s32.totalorder %s25, 0
    %p233 = por %p231, %p232
    %p234 = scmp.ne.s32.totalorder %s222, %s223
    %p235 = scmp.eq.s32.totalorder %s26, 1
    %p236 = por %p234, %p235
    %p238 = scmp.ne.s32.totalorder %s223, %s237
    %p239 = scmp.eq.s32.totalorder %s26, 0
    %p240 = por %p238, %p239
    %s242 = sadd.s32 %s241, 1
    %p245 = scmp.eq.s32.totalorder %s20, 1
    %p246 = scmp.ne.s32.totalorder %s241, %s243
    %p247 = scmp.eq.s32.totalorder %s20, 0
    %p248 = por %p246, %p247
    %p249 = scmp.ne.s32.totalorder %s241, %s243
    %p250 = scmp.eq.s32.totalorder %s25, 1
    %p251 = por %p249, %p250
    %p252 = scmp.ne.s32.totalorder %s243, %s244
    %p253 = scmp.eq.s32.totalorder %s25, 0
    %p254 = por %p252, %p253
    %p255 = scmp.ne.s32.totalorder %s243, %s244
    %p256 = scmp.eq.s32.totalorder %s26, 1
    %p257 = por %p255, %p256
    %p259 = scmp.ne.s32.totalorder %s244, %s258
    %p260 = scmp.eq.s32.totalorder %s26, 0
    %p261 = por %p259, %p260
    %s263 = sadd.s32 %s262, 1
    %p266 = scmp.eq.s32.totalorder %s20, 1
    %p267 = scmp.ne.s32.totalorder %s262, %s264
    %p268 = scmp.eq.s32.totalorder %s20, 0
    %p269 = por %p267, %p268
    %p270 = scmp.ne.s32.totalorder %s262, %s264
    %p271 = scmp.eq.s32.totalorder %s25, 1
    %p272 = por %p270, %p271
    %p273 = scmp.ne.s32.totalorder %s264, %s265
    %p274 = scmp.eq.s32.totalorder %s25, 0
    %p275 = por %p273, %p274
    %p276 = scmp.ne.s32.totalorder %s264, %s265
    %p277 = scmp.eq.s32.totalorder %s26, 1
    %p278 = por %p276, %p277
    %p280 = scmp.ne.s32.totalorder %s265, %s279
    %p281 = scmp.eq.s32.totalorder %s26, 0
    %p282 = por %p280, %p281
    %s284 = sadd.s32 %s283, 1
    %p287 = scmp.eq.s32.totalorder %s20, 1
    %p288 = scmp.ne.s32.totalorder %s283, %s285
    %p289 = scmp.eq.s32.totalorder %s20, 0
    %p290 = por %p288, %p289
    %p291 = scmp.ne.s32.totalorder %s283, %s285
    %p292 = scmp.eq.s32.totalorder %s25, 1
    %p293 = por %p291, %p292
    %p294 = scmp.ne.s32.totalorder %s285, %s286
    %p295 = scmp.eq.s32.totalorder %s25, 0
    %p296 = por %p294, %p295
    %p297 = scmp.ne.s32.totalorder %s285, %s286
    %p298 = scmp.eq.s32.totalorder %s26, 1
    %p299 = por %p297, %p298
    %p301 = scmp.ne.s32.totalorder %s286, %s300
    %p302 = scmp.eq.s32.totalorder %s26, 0
    %p303 = por %p301, %p302
    %s304 = ssub.s32 %s27, %s39
    %s305 = ssub.s32 %s28, %s35
    %s306 = sor.u32 %s304, %s305
    %p307 = scmp.eq.s32.totalorder %s306, 0
    %s309 = sadd.s32 %s308, 1
    %s310 = scalar_select %p307, %s308, %s309
    %p313 = pneg %p307
    %p314 = scmp.eq.s32.totalorder %s20, 1
    %p315 = por %p313, %p314
    %p316 = scmp.ne.s32.totalorder %s308, %s311
    %p317 = scmp.eq.s32.totalorder %s20, 0
    %p318 = por %p316, %p317
    %p319 = scmp.ne.s32.totalorder %s308, %s311
    %p320 = scmp.eq.s32.totalorder %s25, 1
    %p321 = por %p319, %p320
    %p322 = scmp.ne.s32.totalorder %s311, %s312
    %p323 = scmp.eq.s32.totalorder %s25, 0
    %p324 = por %p322, %p323
    %p325 = scmp.ne.s32.totalorder %s311, %s312
    %p326 = scmp.eq.s32.totalorder %s26, 1
    %p327 = por %p325, %p326
    %p329 = scmp.ne.s32.totalorder %s312, %s328
    %p330 = scmp.eq.s32.totalorder %s26, 0
    %p331 = por %p329, %p330
    %s332 = ssub.s32 %s27, %s39
    %s333 = ssub.s32 %s28, %s35
    %s334 = sor.u32 %s332, %s333
    %p335 = scmp.eq.s32.totalorder %s334, 0
    %s337 = sadd.s32 %s336, 1
    %s338 = scalar_select %p335, %s336, %s337
    %p341 = pneg %p335
    %p342 = scmp.eq.s32.totalorder %s20, 1
    %p343 = por %p341, %p342
    %p344 = scmp.ne.s32.totalorder %s336, %s339
    %p345 = scmp.eq.s32.totalorder %s20, 0
    %p346 = por %p344, %p345
    %p347 = scmp.ne.s32.totalorder %s336, %s339
    %p348 = scmp.eq.s32.totalorder %s25, 1
    %p349 = por %p347, %p348
    %p350 = scmp.ne.s32.totalorder %s339, %s340
    %p351 = scmp.eq.s32.totalorder %s25, 0
    %p352 = por %p350, %p351
    %p353 = scmp.ne.s32.totalorder %s339, %s340
    %p354 = scmp.eq.s32.totalorder %s26, 1
    %p355 = por %p353, %p354
    %p357 = scmp.ne.s32.totalorder %s340, %s356
    %p358 = scmp.eq.s32.totalorder %s26, 0
    %p359 = por %p357, %p358
    %p360 = scmp.le.s32.totalorder 1, %s20
    %p361 = scmp.lt.s32.totalorder %s20, 3
    %p362 = pnand %p360, %p361
    %p363 = pneg %p362
    // Predicated region
    $region9: #{regressor_forward.1} parent=5 // pred_check
      _
    $region10: #{regressor_forward.1} parent=5 // pred_check_branch
      %365 = sbr.rel (%p362) target = $region12
    $region11: #{regressor_forward.1} parent=5 // pred_region
      %s366 = ssub.s32 %s20, 1
      // Predicated region
      $region13: #{regressor_forward.1} parent=11 // pred_check
        %p367 = pneg %p86
      $region14: #{regressor_forward.1} parent=11 // pred_check_branch
        %369 = sbr.rel (%p367) target = $region16
      $region15: #{regressor_forward.1} parent=11 // pred_region
        %s370 = smul.u32 32, %s30
        %p371 = scmp.lt.s32.totalorder %s370, 31
        %s372 = scalar_select %p371, %s370, 31
        %s373 = smul.addr %s372, 8
        %s374 = scalar_lea.vmem %s1, %s373
        %s375 = smul.u32 32, %s30
      $region16: #{regressor_forward.1} parent=11 // pred_fallthru
        _
      // Predicated region
      $region17: #{regressor_forward.1} parent=11 // pred_check
        %p376 = pneg %p107
      $region18: #{regressor_forward.1} parent=11 // pred_check_branch
        %378 = sbr.rel (%p376) target = $region20
      $region19: #{regressor_forward.1} parent=11 // pred_region
        _
      $region20: #{regressor_forward.1} parent=11 // pred_fallthru
        _
      // Predicated region
      $region21: #{regressor_forward.1} parent=11 // pred_check
        %p379 = pneg %p128
      $region22: #{regressor_forward.1} parent=11 // pred_check_branch
        %381 = sbr.rel (%p379) target = $region24
      $region23: #{regressor_forward.1} parent=11 // pred_region
        _
      $region24: #{regressor_forward.1} parent=11 // pred_fallthru
        _
      // Predicated region
      $region25: #{regressor_forward.1} parent=11 // pred_check
        %p382 = pneg %p149
      $region26: #{regressor_forward.1} parent=11 // pred_check_branch
        %384 = sbr.rel (%p382) target = $region28
      $region27: #{regressor_forward.1} parent=11 // pred_region
        _
      $region28: #{regressor_forward.1} parent=11 // pred_fallthru
        _
      // Predicated region
      $region29: #{regressor_forward.1} parent=11 // pred_check
        %p385 = pneg %p170
      $region30: #{regressor_forward.1} parent=11 // pred_check_branch
        %387 = sbr.rel (%p385) target = $region32
      $region31: #{regressor_forward.1} parent=11 // pred_region
        _
      $region32: #{regressor_forward.1} parent=11 // pred_fallthru
        _
      // Predicated region
      $region33: #{regressor_forward.1} parent=11 // pred_check
        %p388 = pneg %p191
      $region34: #{regressor_forward.1} parent=11 // pred_check_branch
        %390 = sbr.rel (%p388) target = $region36
      $region35: #{regressor_forward.1} parent=11 // pred_region
        _
      $region36: #{regressor_forward.1} parent=11 // pred_fallthru
        _
      // Predicated region
      $region37: #{regressor_forward.1} parent=11 // pred_check
        %p391 = pneg %p212
      $region38: #{regressor_forward.1} parent=11 // pred_check_branch
        %393 = sbr.rel (%p391) target = $region40
      $region39: #{regressor_forward.1} parent=11 // pred_region
        _
      $region40: #{regressor_forward.1} parent=11 // pred_fallthru
        _
      // Predicated region
      $region41: #{regressor_forward.1} parent=11 // pred_check
        %p394 = pneg %p233
      $region42: #{regressor_forward.1} parent=11 // pred_check_branch
        %396 = sbr.rel (%p394) target = $region44
      $region43: #{regressor_forward.1} parent=11 // pred_region
        _
      $region44: #{regressor_forward.1} parent=11 // pred_fallthru
        _
      // Predicated region
      $region45: #{regressor_forward.1} parent=11 // pred_check
        %p397 = pneg %p254
      $region46: #{regressor_forward.1} parent=11 // pred_check_branch
        %399 = sbr.rel (%p397) target = $region48
      $region47: #{regressor_forward.1} parent=11 // pred_region
        _
      $region48: #{regressor_forward.1} parent=11 // pred_fallthru
        _
      // Predicated region
      $region49: #{regressor_forward.1} parent=11 // pred_check
        %p400 = pneg %p275
      $region50: #{regressor_forward.1} parent=11 // pred_check_branch
        %402 = sbr.rel (%p400) target = $region52
      $region51: #{regressor_forward.1} parent=11 // pred_region
        _
      $region52: #{regressor_forward.1} parent=11 // pred_fallthru
        _
      // Predicated region
      $region53: #{regressor_forward.1} parent=11 // pred_check
        %p403 = pneg %p296
      $region54: #{regressor_forward.1} parent=11 // pred_check_branch
        %405 = sbr.rel (%p403) target = $region56
      $region55: #{regressor_forward.1} parent=11 // pred_region
        _
      $region56: #{regressor_forward.1} parent=11 // pred_fallthru
        _
    $region12: #{regressor_forward.1} parent=5 // pred_fallthru
      _
    %p406 = scmp.lt.s32.totalorder %s20, 2
    // Predicated region
    $region57: #{regressor_forward.1} parent=5 // pred_check
      %p407 = pneg %p406
    $region58: #{regressor_forward.1} parent=5 // pred_check_branch
      %409 = sbr.rel (%p407) target = $region60
    $region59: #{regressor_forward.1} parent=5 // pred_region
      // Predicated region
      $region61: #{regressor_forward.1} parent=59 // pred_check
        %p410 = pneg %p54
      $region62: #{regressor_forward.1} parent=59 // pred_check_branch
        %412 = sbr.rel (%p410) target = $region64
      $region63: #{regressor_forward.1} parent=59 // pred_region
        %s413 = smul.u32 32, %s28
        %p414 = scmp.lt.s32.totalorder %s27, 1
        %s415 = scalar_select %p414, %s27, 1
        %p416 = scmp.lt.s32.totalorder %s413, 31
        %s417 = scalar_select %p416, %s413, 31
        %s418 = smul.addr %s417, 6
        %s419 = smul.addr %s415, 192
        %s420 = sadd.s32 %s418, %s419
        %s421 = smul.addr %s420, 4
        %s422 = scalar_lea.vmem %s0, %s421
        %s423 = smul.u32 32, %s28
      $region64: #{regressor_forward.1} parent=59 // pred_fallthru
        _
    $region60: #{regressor_forward.1} parent=5 // pred_fallthru
      _
    %p424 = scmp.le.s32.totalorder 1, %s20
    %p425 = scmp.lt.s32.totalorder %s20, 3
    %p426 = pnand %p424, %p425
    %p427 = pneg %p426
    // Predicated region
    $region65: #{regressor_forward.1} parent=5 // pred_check
      _
    $region66: #{regressor_forward.1} parent=5 // pred_check_branch
      %429 = sbr.rel (%p426) target = $region68
    $region67: #{regressor_forward.1} parent=5 // pred_region
      %s430 = ssub.s32 %s20, 1
      %s431 = smul.u32 32, %s30
      %p432 = scmp.lt.s32.totalorder %s29, 1
      %s433 = scalar_select %p432, %s29, 1
      %p434 = scmp.lt.s32.totalorder %s431, 31
      %s435 = scalar_select %p434, %s431, 31
      %s436 = smul.addr %s435, 6
      %s437 = smul.addr %s433, 192
      %s438 = sadd.s32 %s436, %s437
      %s439 = smul.addr %s438, 4
      %s440 = scalar_lea.vmem %s0, %s439
      %p441 = pneg %p60
      %p442 = pneg %p57
      %s443 = smul.u32 32, %s30
      %p444 = scmp.lt.s32.totalorder %s443, 31
      %s445 = scalar_select %p444, %s443, 31
      %s446 = smul.addr %s445, 8
      %s447 = scalar_lea.vmem %s1, %s446
      %p448 = pneg %p86
      %p449 = pneg %p83
      %p450 = pneg %p107
      %p451 = pneg %p104
      %p452 = pneg %p128
      %p453 = pneg %p125
      %p454 = pneg %p149
      %p455 = pneg %p146
      %p456 = pneg %p170
      %p457 = pneg %p167
      %p458 = pneg %p191
      %p459 = pneg %p188
      %p460 = pneg %p212
      %p461 = pneg %p209
      %p462 = pneg %p233
      %p463 = pneg %p230
      %p464 = pneg %p254
      %p465 = pneg %p251
      %p466 = pneg %p275
      %p467 = pneg %p272
      %p468 = pneg %p296
      %p469 = pneg %p293
      %p470 = pneg %p324
      %p471 = pneg %p321
      %s472 = smul.u32 32, %s30
      %p473 = scmp.lt.s32.totalorder %s29, 1
      %s474 = scalar_select %p473, %s29, 1
      %p475 = scmp.lt.s32.totalorder %s472, 31
      %s476 = scalar_select %p475, %s472, 31
      %s477 = smul.addr %s474, 32
      %s478 = sadd.s32 %s476, %s477
      %s479 = smul.addr %s478, 8
      %s480 = scalar_lea.vmem %s12, %s479
      %p481 = pneg %p352
      %p482 = pneg %p349
      %s483 = smul.u32 32, %s30
      %p484 = scmp.lt.s32.totalorder %s29, 1
      %s485 = scalar_select %p484, %s29, 1
      %p486 = scmp.lt.s32.totalorder %s483, 31
      %s487 = scalar_select %p486, %s483, 31
      %s488 = smul.addr %s487, 2
      %s489 = smul.addr %s485, 64
      %s490 = sadd.s32 %s488, %s489
      %s491 = smul.addr %s490, 8
      %s492 = scalar_lea.vmem %s13, %s491
      %s493 = smul.u32 32, %s30
      %p494 = scmp.lt.s32.totalorder %s29, 1
      %s495 = scalar_select %p494, %s29, 1
      %p496 = scmp.lt.s32.totalorder %s493, 31
      %s497 = scalar_select %p496, %s493, 31
      %s498 = smul.addr %s497, 6
      %s499 = smul.addr %s495, 192
      %s500 = sadd.s32 %s498, %s499
      %s501 = smul.addr %s500, 4
      %s502 = scalar_lea.vmem %s0, %s501
      %s503 = smul.u32 32, %s30
      %s504 = smul.u32 32, %s30
      %p505 = scmp.lt.s32.totalorder %s504, 31
      %s506 = scalar_select %p505, %s504, 31
      %s507 = smul.addr %s506, 8
      %s508 = scalar_lea.vmem %s1, %s507
      %s509 = smul.u32 32, %s30
      %s510 = smul.u32 32, %s30
      %p511 = scmp.lt.s32.totalorder %s29, 1
      %s512 = scalar_select %p511, %s29, 1
      %p513 = scmp.lt.s32.totalorder %s510, 31
      %s514 = scalar_select %p513, %s510, 31
      %s515 = smul.addr %s512, 32
      %s516 = sadd.s32 %s514, %s515
      %s517 = smul.addr %s516, 8
      %s518 = scalar_lea.vmem %s12, %s517
      %s519 = smul.u32 32, %s30
      %s520 = smul.u32 32, %s30
      %p521 = scmp.lt.s32.totalorder %s29, 1
      %s522 = scalar_select %p521, %s29, 1
      %p523 = scmp.lt.s32.totalorder %s520, 31
      %s524 = scalar_select %p523, %s520, 31
      %s525 = smul.addr %s524, 2
      %s526 = smul.addr %s522, 64
      %s527 = sadd.s32 %s525, %s526
      %s528 = smul.addr %s527, 8
      %s529 = scalar_lea.vmem %s13, %s528
      %s530 = smul.u32 32, %s30
      %v532 = vld [vmem:[%s502] sm:$0xff]
      %v533 = vld [vmem:[%s502 + $0x8] sm:$0xff]
      %v534 = vld [vmem:[%s502 + $0x10] sm:$0xff]
      %v535 = vld [vmem:[%s502 + $0x18] sm:$0xff]
      %v536 = vld [vmem:[%s502 + $0x20] sm:$0xff]
      %v537 = vld [vmem:[%s502 + $0x28] sm:$0xff]
      %v538 = vld [vmem:[%s502 + $0x30] sm:$0xff]
      %v539 = vld [vmem:[%s502 + $0x38] sm:$0xff]
      %v540 = vld [vmem:[%s502 + $0x40] sm:$0xff]
      %v541 = vld [vmem:[%s502 + $0x48] sm:$0xff]
      %v542 = vld [vmem:[%s502 + $0x50] sm:$0xff]
      %v543 = vld [vmem:[%s502 + $0x58] sm:$0xff]
      %v544 = vld [vmem:[%s502 + $0x60] sm:$0xff]
      %v545 = vld [vmem:[%s502 + $0x68] sm:$0xff]
      %v546 = vld [vmem:[%s502 + $0x70] sm:$0xff]
      %v547 = vld [vmem:[%s502 + $0x78] sm:$0xff]
      %v548 = vld [vmem:[%s502 + $0x80] sm:$0xff]
      %v549 = vld [vmem:[%s502 + $0x88] sm:$0xff]
      %v550 = vld [vmem:[%s502 + $0x90] sm:$0xff]
      %v551 = vld [vmem:[%s502 + $0x98] sm:$0xff]
      %v552 = vld [vmem:[%s502 + $0xa0] sm:$0xff]
      %v553 = vld [vmem:[%s502 + $0xa8] sm:$0xff]
      %v554 = vld [vmem:[%s502 + $0xb0] sm:$0xff]
      %v555 = vld [vmem:[%s502 + $0xb8] sm:$0xff]
      %v556 = vld [vmem:[%s502 + $0xc0] sm:$0xff]
      %v557 = vld [vmem:[%s502 + $0xc8] sm:$0xff]
      %v558 = vld [vmem:[%s502 + $0xd0] sm:$0xff]
      %v559 = vld [vmem:[%s502 + $0xd8] sm:$0xff]
      %v560 = vld [vmem:[%s502 + $0xe0] sm:$0xff]
      %v561 = vld [vmem:[%s502 + $0xe8] sm:$0xff]
      %v562 = vld [vmem:[%s502 + $0xf0] sm:$0xff]
      %v563 = vld [vmem:[%s502 + $0xf8] sm:$0xff]
      %v564 = vld [vmem:[%s502 + $0x100] sm:$0xff]
      %v565 = vld [vmem:[%s502 + $0x108] sm:$0xff]
      %v566 = vld [vmem:[%s502 + $0x110] sm:$0xff]
      %v567 = vld [vmem:[%s502 + $0x118] sm:$0xff]
      %v568 = vld [vmem:[%s502 + $0x120] sm:$0xff]
      %v569 = vld [vmem:[%s502 + $0x128] sm:$0xff]
      %v570 = vld [vmem:[%s502 + $0x130] sm:$0xff]
      %v571 = vld [vmem:[%s502 + $0x138] sm:$0xff]
      %v572 = vld [vmem:[%s502 + $0x140] sm:$0xff]
      %v573 = vld [vmem:[%s502 + $0x148] sm:$0xff]
      %v574 = vld [vmem:[%s502 + $0x150] sm:$0xff]
      %v575 = vld [vmem:[%s502 + $0x158] sm:$0xff]
      %v576 = vld [vmem:[%s502 + $0x160] sm:$0xff]
      %v577 = vld [vmem:[%s502 + $0x168] sm:$0xff]
      %v578 = vld [vmem:[%s502 + $0x170] sm:$0xff]
      %v579 = vld [vmem:[%s502 + $0x178] sm:$0xff]
      %v580 = vld [vmem:[%s502 + $0x180] sm:$0xff]
      %v581 = vld [vmem:[%s502 + $0x188] sm:$0xff]
      %v582 = vld [vmem:[%s502 + $0x190] sm:$0xff]
      %v583 = vld [vmem:[%s502 + $0x198] sm:$0xff]
      %v584 = vld [vmem:[%s502 + $0x1a0] sm:$0xff]
      %v585 = vld [vmem:[%s502 + $0x1a8] sm:$0xff]
      %v586 = vld [vmem:[%s502 + $0x1b0] sm:$0xff]
      %v587 = vld [vmem:[%s502 + $0x1b8] sm:$0xff]
      %v588 = vld [vmem:[%s502 + $0x1c0] sm:$0xff]
      %v589 = vld [vmem:[%s502 + $0x1c8] sm:$0xff]
      %v590 = vld [vmem:[%s502 + $0x1d0] sm:$0xff]
      %v591 = vld [vmem:[%s502 + $0x1d8] sm:$0xff]
      %v592 = vld [vmem:[%s502 + $0x1e0] sm:$0xff]
      %v593 = vld [vmem:[%s502 + $0x1e8] sm:$0xff]
      %v594 = vld [vmem:[%s502 + $0x1f0] sm:$0xff]
      %v595 = vld [vmem:[%s502 + $0x1f8] sm:$0xff]
      %v596 = vld [vmem:[%s502 + $0x200] sm:$0xff]
      %v597 = vld [vmem:[%s502 + $0x208] sm:$0xff]
      %v598 = vld [vmem:[%s502 + $0x210] sm:$0xff]
      %v599 = vld [vmem:[%s502 + $0x218] sm:$0xff]
      %v600 = vld [vmem:[%s502 + $0x220] sm:$0xff]
      %v601 = vld [vmem:[%s502 + $0x228] sm:$0xff]
      %v602 = vld [vmem:[%s502 + $0x230] sm:$0xff]
      %v603 = vld [vmem:[%s502 + $0x238] sm:$0xff]
      %v604 = vld [vmem:[%s502 + $0x240] sm:$0xff]
      %v605 = vld [vmem:[%s502 + $0x248] sm:$0xff]
      %v606 = vld [vmem:[%s502 + $0x250] sm:$0xff]
      %v607 = vld [vmem:[%s502 + $0x258] sm:$0xff]
      %v608 = vld [vmem:[%s502 + $0x260] sm:$0xff]
      %v609 = vld [vmem:[%s502 + $0x268] sm:$0xff]
      %v610 = vld [vmem:[%s502 + $0x270] sm:$0xff]
      %v611 = vld [vmem:[%s502 + $0x278] sm:$0xff]
      %v612 = vld [vmem:[%s502 + $0x280] sm:$0xff]
      %v613 = vld [vmem:[%s502 + $0x288] sm:$0xff]
      %v614 = vld [vmem:[%s502 + $0x290] sm:$0xff]
      %v615 = vld [vmem:[%s502 + $0x298] sm:$0xff]
      %v616 = vld [vmem:[%s502 + $0x2a0] sm:$0xff]
      %v617 = vld [vmem:[%s502 + $0x2a8] sm:$0xff]
      %v618 = vld [vmem:[%s502 + $0x2b0] sm:$0xff]
      %v619 = vld [vmem:[%s502 + $0x2b8] sm:$0xff]
      %v620 = vld [vmem:[%s502 + $0x2c0] sm:$0xff]
      %v621 = vld [vmem:[%s502 + $0x2c8] sm:$0xff]
      %v622 = vld [vmem:[%s502 + $0x2d0] sm:$0xff]
      %v623 = vld [vmem:[%s502 + $0x2d8] sm:$0xff]
      %v624 = vld [vmem:[%s502 + $0x2e0] sm:$0xff]
      %v625 = vld [vmem:[%s502 + $0x2e8] sm:$0xff]
      %v626 = vld [vmem:[%s502 + $0x2f0] sm:$0xff]
      %v627 = vld [vmem:[%s502 + $0x2f8] sm:$0xff]
      %v628 = vld [vmem:[%s2] sm:$0xf]
      %v629 = vld [vmem:[%s2 + $0x4] sm:$0xf]
      %v630 = vld [vmem:[%s2 + $0x8] sm:$0xf]
      %v631 = vld [vmem:[%s2 + $0xc] sm:$0xf]
      %v632 = vld [vmem:[%s2 + $0x10] sm:$0xf]
      %v633 = vld [vmem:[%s2 + $0x14] sm:$0xf]
      %v634 = vld [vmem:[%s2 + $0x18] sm:$0xf]
      %v635 = vld [vmem:[%s2 + $0x1c] sm:$0xf]
      %v636 = vld [vmem:[%s2 + $0x20] sm:$0xf]
      %v637 = vld [vmem:[%s2 + $0x24] sm:$0xf]
      %v638 = vld [vmem:[%s2 + $0x28] sm:$0xf]
      %v639 = vld [vmem:[%s2 + $0x2c] sm:$0xf]
      %v640 = vld [vmem:[%s2 + $0x30] sm:$0xf]
      %v641 = vld [vmem:[%s2 + $0x34] sm:$0xf]
      %v642 = vld [vmem:[%s2 + $0x38] sm:$0xf]
      %v643 = vld [vmem:[%s2 + $0x3c] sm:$0xf]
      %v644 = vld [vmem:[%s2 + $0x40] sm:$0xf]
      %v645 = vld [vmem:[%s2 + $0x44] sm:$0xf]
      %v646 = vld [vmem:[%s2 + $0x48] sm:$0xf]
      %v647 = vld [vmem:[%s2 + $0x4c] sm:$0xf]
      %v648 = vld [vmem:[%s2 + $0x50] sm:$0xf]
      %v649 = vld [vmem:[%s2 + $0x54] sm:$0xf]
      %v650 = vld [vmem:[%s2 + $0x58] sm:$0xf]
      %v651 = vld [vmem:[%s2 + $0x5c] sm:$0xf]
      %v652 = vld [vmem:[%s2 + $0x60] sm:$0xf]
      %v653 = vld [vmem:[%s2 + $0x64] sm:$0xf]
      %v654 = vld [vmem:[%s2 + $0x68] sm:$0xf]
      %v655 = vld [vmem:[%s2 + $0x6c] sm:$0xf]
      %v656 = vld [vmem:[%s2 + $0x70] sm:$0xf]
      %v657 = vld [vmem:[%s2 + $0x74] sm:$0xf]
      %v658 = vld [vmem:[%s2 + $0x78] sm:$0xf]
      %v659 = vld [vmem:[%s2 + $0x7c] sm:$0xf]
      %v660 = vld [vmem:[%s3] sm:$0x1]
      %v662 = vlaneseq
      %v663 = vshrl.u32 %v662, 7
      %v664 = vsub.s32 0, %v663
      %v665 = vrot.slane %v660, %v664
      %v699 = vunpack.c.l.b16 %v532
      %v700 = vunpack.c.h.b16 %v532
      %v701 = vunpack.c.l.b16 %v535
      %v702 = vunpack.c.h.b16 %v535
      %v703 = vunpack.c.l.b16 %v538
      %v704 = vunpack.c.h.b16 %v538
      %v705 = vunpack.c.l.b16 %v541
      %v706 = vunpack.c.h.b16 %v541
      %v707 = vunpack.c.l.b16 %v544
      %v708 = vunpack.c.h.b16 %v544
      %v709 = vunpack.c.l.b16 %v547
      %v710 = vunpack.c.h.b16 %v547
      %v711 = vunpack.c.l.b16 %v550
      %v712 = vunpack.c.h.b16 %v550
      %v713 = vunpack.c.l.b16 %v553
      %v714 = vunpack.c.h.b16 %v553
      %v715 = vunpack.c.l.b16 %v556
      %v716 = vunpack.c.h.b16 %v556
      %v717 = vunpack.c.l.b16 %v559
      %v718 = vunpack.c.h.b16 %v559
      %v719 = vunpack.c.l.b16 %v562
      %v720 = vunpack.c.h.b16 %v562
      %v721 = vunpack.c.l.b16 %v565
      %v722 = vunpack.c.h.b16 %v565
      %v723 = vunpack.c.l.b16 %v568
      %v724 = vunpack.c.h.b16 %v568
      %v725 = vunpack.c.l.b16 %v571
      %v726 = vunpack.c.h.b16 %v571
      %v727 = vunpack.c.l.b16 %v574
      %v728 = vunpack.c.h.b16 %v574
      %v729 = vunpack.c.l.b16 %v577
      %v730 = vunpack.c.h.b16 %v577
      %v731 = vunpack.c.l.b16 %v580
      %v732 = vunpack.c.h.b16 %v580
      %v733 = vunpack.c.l.b16 %v583
      %v734 = vunpack.c.h.b16 %v583
      %v735 = vunpack.c.l.b16 %v586
      %v736 = vunpack.c.h.b16 %v586
      %v737 = vunpack.c.l.b16 %v589
      %v738 = vunpack.c.h.b16 %v589
      %v739 = vunpack.c.l.b16 %v592
      %v740 = vunpack.c.h.b16 %v592
      %v741 = vunpack.c.l.b16 %v595
      %v742 = vunpack.c.h.b16 %v595
      %v743 = vunpack.c.l.b16 %v598
      %v744 = vunpack.c.h.b16 %v598
      %v745 = vunpack.c.l.b16 %v601
      %v746 = vunpack.c.h.b16 %v601
      %v747 = vunpack.c.l.b16 %v604
      %v748 = vunpack.c.h.b16 %v604
      %v749 = vunpack.c.l.b16 %v607
      %v750 = vunpack.c.h.b16 %v607
      %v751 = vunpack.c.l.b16 %v610
      %v752 = vunpack.c.h.b16 %v610
      %v753 = vunpack.c.l.b16 %v613
      %v754 = vunpack.c.h.b16 %v613
      %v755 = vunpack.c.l.b16 %v616
      %v756 = vunpack.c.h.b16 %v616
      %v757 = vunpack.c.l.b16 %v619
      %v758 = vunpack.c.h.b16 %v619
      %v759 = vunpack.c.l.b16 %v622
      %v760 = vunpack.c.h.b16 %v622
      %v761 = vunpack.c.l.b16 %v625
      %v762 = vunpack.c.h.b16 %v625
      %v763 = vpack.c.b16 %v701, %v699
      %v764 = vpack.c.b16 %v702, %v700
      %v765 = vpack.c.b16 %v705, %v703
      %v766 = vpack.c.b16 %v706, %v704
      %v767 = vpack.c.b16 %v709, %v707
      %v768 = vpack.c.b16 %v710, %v708
      %v769 = vpack.c.b16 %v713, %v711
      %v770 = vpack.c.b16 %v714, %v712
      %v771 = vpack.c.b16 %v717, %v715
      %v772 = vpack.c.b16 %v718, %v716
      %v773 = vpack.c.b16 %v721, %v719
      %v774 = vpack.c.b16 %v722, %v720
      %v775 = vpack.c.b16 %v725, %v723
      %v776 = vpack.c.b16 %v726, %v724
      %v777 = vpack.c.b16 %v729, %v727
      %v778 = vpack.c.b16 %v730, %v728
      %v779 = vpack.c.b16 %v733, %v731
      %v780 = vpack.c.b16 %v734, %v732
      %v781 = vpack.c.b16 %v737, %v735
      %v782 = vpack.c.b16 %v738, %v736
      %v783 = vpack.c.b16 %v741, %v739
      %v784 = vpack.c.b16 %v742, %v740
      %v785 = vpack.c.b16 %v745, %v743
      %v786 = vpack.c.b16 %v746, %v744
      %v787 = vpack.c.b16 %v749, %v747
      %v788 = vpack.c.b16 %v750, %v748
      %v789 = vpack.c.b16 %v753, %v751
      %v790 = vpack.c.b16 %v754, %v752
      %v791 = vpack.c.b16 %v757, %v755
      %v792 = vpack.c.b16 %v758, %v756
      %v793 = vpack.c.b16 %v761, %v759
      %v794 = vpack.c.b16 %v762, %v760
      %v859 = vunpack.c.l.b16 %v628
      %v860 = vunpack.c.l.b16 %v629
      %v861 = vunpack.c.l.b16 %v630
      %v862 = vunpack.c.l.b16 %v631
      %v863 = vunpack.c.l.b16 %v632
      %v864 = vunpack.c.l.b16 %v633
      %v865 = vunpack.c.l.b16 %v634
      %v866 = vunpack.c.l.b16 %v635
      %v867 = vunpack.c.l.b16 %v636
      %v868 = vunpack.c.l.b16 %v637
      %v869 = vunpack.c.l.b16 %v638
      %v870 = vunpack.c.l.b16 %v639
      %v871 = vunpack.c.l.b16 %v640
      %v872 = vunpack.c.l.b16 %v641
      %v873 = vunpack.c.l.b16 %v642
      %v874 = vunpack.c.l.b16 %v643
      %v875 = vunpack.c.l.b16 %v644
      %v876 = vunpack.c.l.b16 %v645
      %v877 = vunpack.c.l.b16 %v646
      %v878 = vunpack.c.l.b16 %v647
      %v879 = vunpack.c.l.b16 %v648
      %v880 = vunpack.c.l.b16 %v649
      %v881 = vunpack.c.l.b16 %v650
      %v882 = vunpack.c.l.b16 %v651
      %v883 = vunpack.c.l.b16 %v652
      %v884 = vunpack.c.l.b16 %v653
      %v885 = vunpack.c.l.b16 %v654
      %v886 = vunpack.c.l.b16 %v655
      %v887 = vunpack.c.l.b16 %v656
      %v888 = vunpack.c.l.b16 %v657
      %v889 = vunpack.c.l.b16 %v658
      %v890 = vunpack.c.l.b16 %v659
      %v891 = vpack.c.b16 %v860, %v859
      %v892 = vpack.c.b16 %v862, %v861
      %v893 = vpack.c.b16 %v864, %v863
      %v894 = vpack.c.b16 %v866, %v865
      %v895 = vpack.c.b16 %v868, %v867
      %v896 = vpack.c.b16 %v870, %v869
      %v897 = vpack.c.b16 %v872, %v871
      %v898 = vpack.c.b16 %v874, %v873
      %v899 = vpack.c.b16 %v876, %v875
      %v900 = vpack.c.b16 %v878, %v877
      %v901 = vpack.c.b16 %v880, %v879
      %v902 = vpack.c.b16 %v882, %v881
      %v903 = vpack.c.b16 %v884, %v883
      %v904 = vpack.c.b16 %v886, %v885
      %v905 = vpack.c.b16 %v888, %v887
      %v906 = vpack.c.b16 %v890, %v889
      %923 = vmatprep.subr.bf16.mxu0 0
      %924 = vmatpush1.bf16.msra.mxu0 %v891
      %925 = vmatprep.subr.bf16.mxu0 0
      %926 = vmatpush1.bf16.msra.mxu0 %v892
      %927 = vmatprep.subr.bf16.mxu0 0
      %928 = vmatpush1.bf16.msra.mxu0 %v893
      %929 = vmatprep.subr.bf16.mxu0 0
      %930 = vmatpush1.bf16.msra.mxu0 %v894
      %931 = vmatprep.subr.bf16.mxu0 0
      %932 = vmatpush1.bf16.msra.mxu0 %v895
      %933 = vmatprep.subr.bf16.mxu0 0
      %934 = vmatpush1.bf16.msra.mxu0 %v896
      %935 = vmatprep.subr.bf16.mxu0 0
      %936 = vmatpush1.bf16.msra.mxu0 %v897
      %937 = vmatprep.subr.bf16.mxu0 0
      %938 = vmatpush1.bf16.msra.mxu0 %v898
      %939 = vmatprep.subr.bf16.mxu0 0
      %940 = vmatpush1.bf16.msra.mxu0 %v899
      %941 = vmatprep.subr.bf16.mxu0 0
      %942 = vmatpush1.bf16.msra.mxu0 %v900
      %943 = vmatprep.subr.bf16.mxu0 0
      %944 = vmatpush1.bf16.msra.mxu0 %v901
      %945 = vmatprep.subr.bf16.mxu0 0
      %946 = vmatpush1.bf16.msra.mxu0 %v902
      %947 = vmatprep.subr.bf16.mxu0 0
      %948 = vmatpush1.bf16.msra.mxu0 %v903
      %949 = vmatprep.subr.bf16.mxu0 0
      %950 = vmatpush1.bf16.msra.mxu0 %v904
      %951 = vmatprep.subr.bf16.mxu0 0
      %952 = vmatpush1.bf16.msra.mxu0 %v905
      %953 = vmatprep.subr.bf16.mxu0 0
      %954 = vmatpush1.bf16.msra.mxu0 %v906
      %955 = vmatprep.mubr.bf16.mxu0 %v764
      %956 = vmatmul.mubr.bf16.gmra.mrb[0].mxu0 %v763
      %v957 = vpop.f32.mrb[0].mxu0
      %v958 = vadd.f32 %v665, %v957
      %v959 = vpop.f32.mrb[0].mxu0
      %v960 = vpop.f32.mrb[0].mxu0
      %v961 = vadd.f32 %v665, %v960
      %v962 = vpop.f32.mrb[0].mxu0
      %963 = vmatprep.mubr.bf16.mxu0 %v766
      %964 = vmatmul.mubr.bf16.gmra.mrb[0].mxu0 %v765
      %v965 = vpop.f32.mrb[0].mxu0
      %v966 = vadd.f32 %v665, %v965
      %v967 = vpop.f32.mrb[0].mxu0
      %v968 = vpop.f32.mrb[0].mxu0
      %v969 = vadd.f32 %v665, %v968
      %v970 = vpop.f32.mrb[0].mxu0
      %971 = vmatprep.mubr.bf16.mxu0 %v768
      %972 = vmatmul.mubr.bf16.gmra.mrb[0].mxu0 %v767
      %v973 = vpop.f32.mrb[0].mxu0
      %v974 = vadd.f32 %v665, %v973
      %v975 = vpop.f32.mrb[0].mxu0
      %v976 = vpop.f32.mrb[0].mxu0
      %v977 = vadd.f32 %v665, %v976
      %v978 = vpop.f32.mrb[0].mxu0
      %979 = vmatprep.mubr.bf16.mxu0 %v770
      %980 = vmatmul.mubr.bf16.gmra.mrb[0].mxu0 %v769
      %v981 = vpop.f32.mrb[0].mxu0
      %v982 = vadd.f32 %v665, %v981
      %v983 = vpop.f32.mrb[0].mxu0
      %v984 = vpop.f32.mrb[0].mxu0
      %v985 = vadd.f32 %v665, %v984
      %v986 = vpop.f32.mrb[0].mxu0
      %987 = vmatprep.mubr.bf16.mxu0 %v772
      %988 = vmatmul.mubr.bf16.gmra.mrb[0].mxu0 %v771
      %v989 = vpop.f32.mrb[0].mxu0
      %v990 = vadd.f32 %v665, %v989
      %v991 = vpop.f32.mrb[0].mxu0
      %v992 = vpop.f32.mrb[0].mxu0
      %v993 = vadd.f32 %v665, %v992
      %v994 = vpop.f32.mrb[0].mxu0
      %995 = vmatprep.mubr.bf16.mxu0 %v774
      %996 = vmatmul.mubr.bf16.gmra.mrb[0].mxu0 %v773
      %v997 = vpop.f32.mrb[0].mxu0
      %v998 = vadd.f32 %v665, %v997
      %v999 = vpop.f32.mrb[0].mxu0
      %v1000 = vpop.f32.mrb[0].mxu0
      %v1001 = vadd.f32 %v665, %v1000
      %v1002 = vpop.f32.mrb[0].mxu0
      %1003 = vmatprep.mubr.bf16.mxu0 %v776
      %1004 = vmatmul.mubr.bf16.gmra.mrb[0].mxu0 %v775
      %v1005 = vpop.f32.mrb[0].mxu0
      %v1006 = vadd.f32 %v665, %v1005
      %v1007 = vpop.f32.mrb[0].mxu0
      %v1008 = vpop.f32.mrb[0].mxu0
      %v1009 = vadd.f32 %v665, %v1008
      %v1010 = vpop.f32.mrb[0].mxu0
      %1011 = vmatprep.mubr.bf16.mxu0 %v778
      %1012 = vmatmul.mubr.bf16.gmra.mrb[0].mxu0 %v777
      %v1013 = vpop.f32.mrb[0].mxu0
      %v1014 = vadd.f32 %v665, %v1013
      %v1015 = vpop.f32.mrb[0].mxu0
      %v1016 = vpop.f32.mrb[0].mxu0
      %v1017 = vadd.f32 %v665, %v1016
      %v1018 = vpop.f32.mrb[0].mxu0
      %1019 = vmatprep.mubr.bf16.mxu0 %v780
      %1020 = vmatmul.mubr.bf16.gmra.mrb[0].mxu0 %v779
      %v1021 = vpop.f32.mrb[0].mxu0
      %v1022 = vadd.f32 %v665, %v1021
      %v1023 = vpop.f32.mrb[0].mxu0
      %v1024 = vpop.f32.mrb[0].mxu0
      %v1025 = vadd.f32 %v665, %v1024
      %v1026 = vpop.f32.mrb[0].mxu0
      %1027 = vmatprep.mubr.bf16.mxu0 %v782
      %1028 = vmatmul.mubr.bf16.gmra.mrb[0].mxu0 %v781
      %v1029 = vpop.f32.mrb[0].mxu0
      %v1030 = vadd.f32 %v665, %v1029
      %v1031 = vpop.f32.mrb[0].mxu0
      %v1032 = vpop.f32.mrb[0].mxu0
      %v1033 = vadd.f32 %v665, %v1032
      %v1034 = vpop.f32.mrb[0].mxu0
      %1035 = vmatprep.mubr.bf16.mxu0 %v784
      %1036 = vmatmul.mubr.bf16.gmra.mrb[0].mxu0 %v783
      %v1037 = vpop.f32.mrb[0].mxu0
      %v1038 = vadd.f32 %v665, %v1037
      %v1039 = vpop.f32.mrb[0].mxu0
      %v1040 = vpop.f32.mrb[0].mxu0
      %v1041 = vadd.f32 %v665, %v1040
      %v1042 = vpop.f32.mrb[0].mxu0
      %1043 = vmatprep.mubr.bf16.mxu0 %v786
      %1044 = vmatmul.mubr.bf16.gmra.mrb[0].mxu0 %v785
      %v1045 = vpop.f32.mrb[0].mxu0
      %v1046 = vadd.f32 %v665, %v1045
      %v1047 = vpop.f32.mrb[0].mxu0
      %v1048 = vpop.f32.mrb[0].mxu0
      %v1049 = vadd.f32 %v665, %v1048
      %v1050 = vpop.f32.mrb[0].mxu0
      %1051 = vmatprep.mubr.bf16.mxu0 %v788
      %1052 = vmatmul.mubr.bf16.gmra.mrb[0].mxu0 %v787
      %v1053 = vpop.f32.mrb[0].mxu0
      %v1054 = vadd.f32 %v665, %v1053
      %v1055 = vpop.f32.mrb[0].mxu0
      %v1056 = vpop.f32.mrb[0].mxu0
      %v1057 = vadd.f32 %v665, %v1056
      %v1058 = vpop.f32.mrb[0].mxu0
      %1059 = vmatprep.mubr.bf16.mxu0 %v790
      %1060 = vmatmul.mubr.bf16.gmra.mrb[0].mxu0 %v789
      %v1061 = vpop.f32.mrb[0].mxu0
      %v1062 = vadd.f32 %v665, %v1061
      %v1063 = vpop.f32.mrb[0].mxu0
      %v1064 = vpop.f32.mrb[0].mxu0
      %v1065 = vadd.f32 %v665, %v1064
      %v1066 = vpop.f32.mrb[0].mxu0
      %1067 = vmatprep.mubr.bf16.mxu0 %v792
      %1068 = vmatmul.mubr.bf16.gmra.mrb[0].mxu0 %v791
      %v1069 = vpop.f32.mrb[0].mxu0
      %v1070 = vadd.f32 %v665, %v1069
      %v1071 = vpop.f32.mrb[0].mxu0
      %v1072 = vpop.f32.mrb[0].mxu0
      %v1073 = vadd.f32 %v665, %v1072
      %v1074 = vpop.f32.mrb[0].mxu0
      %1075 = vmatprep.mubr.bf16.mxu0 %v794
      %1076 = vmatmul.mubr.bf16.gmra.mrb[0].mxu0 %v793
      %v1077 = vpop.f32.mrb[0].mxu0
      %v1078 = vadd.f32 %v665, %v1077
      %v1079 = vpop.f32.mrb[0].mxu0
      %v1080 = vpop.f32.mrb[0].mxu0
      %v1081 = vadd.f32 %v665, %v1080
      %v1082 = vpop.f32.mrb[0].mxu0
      %1083 = vdwg.mxu0
      %s1084 = scalar_lea.vmem %s2, 128
      %v1085 = vld [vmem:[%s1084] sm:$0xf]
      %v1086 = vld [vmem:[%s1084 + $0x4] sm:$0xf]
      %v1087 = vld [vmem:[%s1084 + $0x8] sm:$0xf]
      %v1088 = vld [vmem:[%s1084 + $0xc] sm:$0xf]
      %v1089 = vld [vmem:[%s1084 + $0x10] sm:$0xf]
      %v1090 = vld [vmem:[%s1084 + $0x14] sm:$0xf]
      %v1091 = vld [vmem:[%s1084 + $0x18] sm:$0xf]
      %v1092 = vld [vmem:[%s1084 + $0x1c] sm:$0xf]
      %v1093 = vld [vmem:[%s1084 + $0x20] sm:$0xf]
      %v1094 = vld [vmem:[%s1084 + $0x24] sm:$0xf]
      %v1095 = vld [vmem:[%s1084 + $0x28] sm:$0xf]
      %v1096 = vld [vmem:[%s1084 + $0x2c] sm:$0xf]
      %v1097 = vld [vmem:[%s1084 + $0x30] sm:$0xf]
      %v1098 = vld [vmem:[%s1084 + $0x34] sm:$0xf]
      %v1099 = vld [vmem:[%s1084 + $0x38] sm:$0xf]
      %v1100 = vld [vmem:[%s1084 + $0x3c] sm:$0xf]
      %v1101 = vld [vmem:[%s1084 + $0x40] sm:$0xf]
      %v1102 = vld [vmem:[%s1084 + $0x44] sm:$0xf]
      %v1103 = vld [vmem:[%s1084 + $0x48] sm:$0xf]
      %v1104 = vld [vmem:[%s1084 + $0x4c] sm:$0xf]
      %v1105 = vld [vmem:[%s1084 + $0x50] sm:$0xf]
      %v1106 = vld [vmem:[%s1084 + $0x54] sm:$0xf]
      %v1107 = vld [vmem:[%s1084 + $0x58] sm:$0xf]
      %v1108 = vld [vmem:[%s1084 + $0x5c] sm:$0xf]
      %v1109 = vld [vmem:[%s1084 + $0x60] sm:$0xf]
      %v1110 = vld [vmem:[%s1084 + $0x64] sm:$0xf]
      %v1111 = vld [vmem:[%s1084 + $0x68] sm:$0xf]
      %v1112 = vld [vmem:[%s1084 + $0x6c] sm:$0xf]
      %v1113 = vld [vmem:[%s1084 + $0x70] sm:$0xf]
      %v1114 = vld [vmem:[%s1084 + $0x74] sm:$0xf]
      %v1115 = vld [vmem:[%s1084 + $0x78] sm:$0xf]
      %v1116 = vld [vmem:[%s1084 + $0x7c] sm:$0xf]
      %s1117 = scalar_lea.vmem %s3, 1
      %v1118 = vld [vmem:[%s1117] sm:$0x1]
      %v1120 = vlaneseq
      %v1121 = vshrl.u32 %v1120, 7
      %v1122 = vsub.s32 0, %v1121
      %v1123 = vrot.slane %v1118, %v1122
      %v1157 = vunpack.c.l.b16 %v533
      %v1158 = vunpack.c.h.b16 %v533
      %v1159 = vunpack.c.l.b16 %v536
      %v1160 = vunpack.c.h.b16 %v536
      %v1161 = vunpack.c.l.b16 %v539
      %v1162 = vunpack.c.h.b16 %v539
      %v1163 = vunpack.c.l.b16 %v542
      %v1164 = vunpack.c.h.b16 %v542
      %v1165 = vunpack.c.l.b16 %v545
      %v1166 = vunpack.c.h.b16 %v545
      %v1167 = vunpack.c.l.b16 %v548
      %v1168 = vunpack.c.h.b16 %v548
      %v1169 = vunpack.c.l.b16 %v551
      %v1170 = vunpack.c.h.b16 %v551
      %v1171 = vunpack.c.l.b16 %v554
      %v1172 = vunpack.c.h.b16 %v554
      %v1173 = vunpack.c.l.b16 %v557
      %v1174 = vunpack.c.h.b16 %v557
      %v1175 = vunpack.c.l.b16 %v560
      %v1176 = vunpack.c.h.b16 %v560
      %v1177 = vunpack.c.l.b16 %v563
      %v1178 = vunpack.c.h.b16 %v563
      %v1179 = vunpack.c.l.b16 %v566
      %v1180 = vunpack.c.h.b16 %v566
      %v1181 = vunpack.c.l.b16 %v569
      %v1182 = vunpack.c.h.b16 %v569
      %v1183 = vunpack.c.l.b16 %v572
      %v1184 = vunpack.c.h.b16 %v572
      %v1185 = vunpack.c.l.b16 %v575
      %v1186 = vunpack.c.h.b16 %v575
      %v1187 = vunpack.c.l.b16 %v578
      %v1188 = vunpack.c.h.b16 %v578
      %v1189 = vunpack.c.l.b16 %v581
      %v1190 = vunpack.c.h.b16 %v581
      %v1191 = vunpack.c.l.b16 %v584
      %v1192 = vunpack.c.h.b16 %v584
      %v1193 = vunpack.c.l.b16 %v587
      %v1194 = vunpack.c.h.b16 %v587
      %v1195 = vunpack.c.l.b16 %v590
      %v1196 = vunpack.c.h.b16 %v590
      %v1197 = vunpack.c.l.b16 %v593
      %v1198 = vunpack.c.h.b16 %v593
      %v1199 = vunpack.c.l.b16 %v596
      %v1200 = vunpack.c.h.b16 %v596
      %v1201 = vunpack.c.l.b16 %v599
      %v1202 = vunpack.c.h.b16 %v599
      %v1203 = vunpack.c.l.b16 %v602
      %v1204 = vunpack.c.h.b16 %v602
      %v1205 = vunpack.c.l.b16 %v605
      %v1206 = vunpack.c.h.b16 %v605
      %v1207 = vunpack.c.l.b16 %v608
      %v1208 = vunpack.c.h.b16 %v608
      %v1209 = vunpack.c.l.b16 %v611
      %v1210 = vunpack.c.h.b16 %v611
      %v1211 = vunpack.c.l.b16 %v614
      %v1212 = vunpack.c.h.b16 %v614
      %v1213 = vunpack.c.l.b16 %v617
      %v1214 = vunpack.c.h.b16 %v617
      %v1215 = vunpack.c.l.b16 %v620
      %v1216 = vunpack.c.h.b16 %v620
      %v1217 = vunpack.c.l.b16 %v623
      %v1218 = vunpack.c.h.b16 %v623
      %v1219 = vunpack.c.l.b16 %v626
      %v1220 = vunpack.c.h.b16 %v626
      %v1221 = vpack.c.b16 %v1159, %v1157
      %v1222 = vpack.c.b16 %v1160, %v1158
      %v1223 = vpack.c.b16 %v1163, %v1161
      %v1224 = vpack.c.b16 %v1164, %v1162
      %v1225 = vpack.c.b16 %v1167, %v1165
      %v1226 = vpack.c.b16 %v1168, %v1166
      %v1227 = vpack.c.b16 %v1171, %v1169
      %v1228 = vpack.c.b16 %v1172, %v1170
      %v1229 = vpack.c.b16 %v1175, %v1173
      %v1230 = vpack.c.b16 %v1176, %v1174
      %v1231 = vpack.c.b16 %v1179, %v1177
      %v1232 = vpack.c.b16 %v1180, %v1178
      %v1233 = vpack.c.b16 %v1183, %v1181
      %v1234 = vpack.c.b16 %v1184, %v1182
      %v1235 = vpack.c.b16 %v1187, %v1185
      %v1236 = vpack.c.b16 %v1188, %v1186
      %v1237 = vpack.c.b16 %v1191, %v1189
      %v1238 = vpack.c.b16 %v1192, %v1190
      %v1239 = vpack.c.b16 %v1195, %v1193
      %v1240 = vpack.c.b16 %v1196, %v1194
      %v1241 = vpack.c.b16 %v1199, %v1197
      %v1242 = vpack.c.b16 %v1200, %v1198
      %v1243 = vpack.c.b16 %v1203, %v1201
      %v1244 = vpack.c.b16 %v1204, %v1202
      %v1245 = vpack.c.b16 %v1207, %v1205
      %v1246 = vpack.c.b16 %v1208, %v1206
      %v1247 = vpack.c.b16 %v1211, %v1209
      %v1248 = vpack.c.b16 %v1212, %v1210
      %v1249 = vpack.c.b16 %v1215, %v1213
      %v1250 = vpack.c.b16 %v1216, %v1214
      %v1251 = vpack.c.b16 %v1219, %v1217
      %v1252 = vpack.c.b16 %v1220, %v1218
      %v1317 = vunpack.c.l.b16 %v1085
      %v1318 = vunpack.c.l.b16 %v1086
      %v1319 = vunpack.c.l.b16 %v1087
      %v1320 = vunpack.c.l.b16 %v1088
      %v1321 = vunpack.c.l.b16 %v1089
      %v1322 = vunpack.c.l.b16 %v1090
      %v1323 = vunpack.c.l.b16 %v1091
      %v1324 = vunpack.c.l.b16 %v1092
      %v1325 = vunpack.c.l.b16 %v1093
      %v1326 = vunpack.c.l.b16 %v1094
      %v1327 = vunpack.c.l.b16 %v1095
      %v1328 = vunpack.c.l.b16 %v1096
      %v1329 = vunpack.c.l.b16 %v1097
      %v1330 = vunpack.c.l.b16 %v1098
      %v1331 = vunpack.c.l.b16 %v1099
      %v1332 = vunpack.c.l.b16 %v1100
      %v1333 = vunpack.c.l.b16 %v1101
      %v1334 = vunpack.c.l.b16 %v1102
      %v1335 = vunpack.c.l.b16 %v1103
      %v1336 = vunpack.c.l.b16 %v1104
      %v1337 = vunpack.c.l.b16 %v1105
      %v1338 = vunpack.c.l.b16 %v1106
      %v1339 = vunpack.c.l.b16 %v1107
      %v1340 = vunpack.c.l.b16 %v1108
      %v1341 = vunpack.c.l.b16 %v1109
      %v1342 = vunpack.c.l.b16 %v1110
      %v1343 = vunpack.c.l.b16 %v1111
      %v1344 = vunpack.c.l.b16 %v1112
      %v1345 = vunpack.c.l.b16 %v1113
      %v1346 = vunpack.c.l.b16 %v1114
      %v1347 = vunpack.c.l.b16 %v1115
      %v1348 = vunpack.c.l.b16 %v1116
      %v1349 = vpack.c.b16 %v1318, %v1317
      %v1350 = vpack.c.b16 %v1320, %v1319
      %v1351 = vpack.c.b16 %v1322, %v1321
      %v1352 = vpack.c.b16 %v1324, %v1323
      %v1353 = vpack.c.b16 %v1326, %v1325
      %v1354 = vpack.c.b16 %v1328, %v1327
      %v1355 = vpack.c.b16 %v1330, %v1329
      %v1356 = vpack.c.b16 %v1332, %v1331
      %v1357 = vpack.c.b16 %v1334, %v1333
      %v1358 = vpack.c.b16 %v1336, %v1335
      %v1359 = vpack.c.b16 %v1338, %v1337
      %v1360 = vpack.c.b16 %v1340, %v1339
      %v1361 = vpack.c.b16 %v1342, %v1341
      %v1362 = vpack.c.b16 %v1344, %v1343
      %v1363 = vpack.c.b16 %v1346, %v1345
      %v1364 = vpack.c.b16 %v1348, %v1347
      %1381 = vmatprep.subr.bf16.mxu0 0
      %1382 = vmatpush1.bf16.msra.mxu0 %v1349
      %1383 = vmatprep.subr.bf16.mxu0 0
      %1384 = vmatpush1.bf16.msra.mxu0 %v1350
      %1385 = vmatprep.subr.bf16.mxu0 0
      %1386 = vmatpush1.bf16.msra.mxu0 %v1351
      %1387 = vmatprep.subr.bf16.mxu0 0
      %1388 = vmatpush1.bf16.msra.mxu0 %v1352
      %1389 = vmatprep.subr.bf16.mxu0 0
      %1390 = vmatpush1.bf16.msra.mxu0 %v1353
      %1391 = vmatprep.subr.bf16.mxu0 0
      %1392 = vmatpush1.bf16.msra.mxu0 %v1354
      %1393 = vmatprep.subr.bf16.mxu0 0
      %1394 = vmatpush1.bf16.msra.mxu0 %v1355
      %1395 = vmatprep.subr.bf16.mxu0 0
      %1396 = vmatpush1.bf16.msra.mxu0 %v1356
      %1397 = vmatprep.subr.bf16.mxu0 0
      %1398 = vmatpush1.bf16.msra.mxu0 %v1357
      %1399 = vmatprep.subr.bf16.mxu0 0
      %1400 = vmatpush1.bf16.msra.mxu0 %v1358
      %1401 = vmatprep.subr.bf16.mxu0 0
      %1402 = vmatpush1.bf16.msra.mxu0 %v1359
      %1403 = vmatprep.subr.bf16.mxu0 0
      %1404 = vmatpush1.bf16.msra.mxu0 %v1360
      %1405 = vmatprep.subr.bf16.mxu0 0
      %1406 = vmatpush1.bf16.msra.mxu0 %v1361
      %1407 = vmatprep.subr.bf16.mxu0 0
      %1408 = vmatpush1.bf16.msra.mxu0 %v1362
      %1409 = vmatprep.subr.bf16.mxu0 0
      %1410 = vmatpush1.bf16.msra.mxu0 %v1363
      %1411 = vmatprep.subr.bf16.mxu0 0
      %1412 = vmatpush1.bf16.msra.mxu0 %v1364
      %1413 = vmatprep.mubr.bf16.mxu0 %v1222
      %1414 = vmatmul.mubr.bf16.gmra.mrb[0].mxu0 %v1221
      %v1415 = vpop.f32.mrb[0].mxu0
      %v1416 = vadd.f32 %v1123, %v1415
      %v1417 = vpop.f32.mrb[0].mxu0
      %v1418 = vpop.f32.mrb[0].mxu0
      %v1419 = vadd.f32 %v1123, %v1418
      %v1420 = vpop.f32.mrb[0].mxu0
      %1421 = vmatprep.mubr.bf16.mxu0 %v1224
      %1422 = vmatmul.mubr.bf16.gmra.mrb[0].mxu0 %v1223
      %v1423 = vpop.f32.mrb[0].mxu0
      %v1424 = vadd.f32 %v1123, %v1423
      %v1425 = vpop.f32.mrb[0].mxu0
      %v1426 = vpop.f32.mrb[0].mxu0
      %v1427 = vadd.f32 %v1123, %v1426
      %v1428 = vpop.f32.mrb[0].mxu0
      %1429 = vmatprep.mubr.bf16.mxu0 %v1226
      %1430 = vmatmul.mubr.bf16.gmra.mrb[0].mxu0 %v1225
      %v1431 = vpop.f32.mrb[0].mxu0
      %v1432 = vadd.f32 %v1123, %v1431
      %v1433 = vpop.f32.mrb[0].mxu0
      %v1434 = vpop.f32.mrb[0].mxu0
      %v1435 = vadd.f32 %v1123, %v1434
      %v1436 = vpop.f32.mrb[0].mxu0
      %1437 = vmatprep.mubr.bf16.mxu0 %v1228
      %1438 = vmatmul.mubr.bf16.gmra.mrb[0].mxu0 %v1227
      %v1439 = vpop.f32.mrb[0].mxu0
      %v1440 = vadd.f32 %v1123, %v1439
      %v1441 = vpop.f32.mrb[0].mxu0
      %v1442 = vpop.f32.mrb[0].mxu0
      %v1443 = vadd.f32 %v1123, %v1442
      %v1444 = vpop.f32.mrb[0].mxu0
      %1445 = vmatprep.mubr.bf16.mxu0 %v1230
      %1446 = vmatmul.mubr.bf16.gmra.mrb[0].mxu0 %v1229
      %v1447 = vpop.f32.mrb[0].mxu0
      %v1448 = vadd.f32 %v1123, %v1447
      %v1449 = vpop.f32.mrb[0].mxu0
      %v1450 = vpop.f32.mrb[0].mxu0
      %v1451 = vadd.f32 %v1123, %v1450
      %v1452 = vpop.f32.mrb[0].mxu0
      %1453 = vmatprep.mubr.bf16.mxu0 %v1232
      %1454 = vmatmul.mubr.bf16.gmra.mrb[0].mxu0 %v1231
      %v1455 = vpop.f32.mrb[0].mxu0
      %v1456 = vadd.f32 %v1123, %v1455
      %v1457 = vpop.f32.mrb[0].mxu0
      %v1458 = vpop.f32.mrb[0].mxu0
      %v1459 = vadd.f32 %v1123, %v1458
      %v1460 = vpop.f32.mrb[0].mxu0
      %1461 = vmatprep.mubr.bf16.mxu0 %v1234
      %1462 = vmatmul.mubr.bf16.gmra.mrb[0].mxu0 %v1233
      %v1463 = vpop.f32.mrb[0].mxu0
      %v1464 = vadd.f32 %v1123, %v1463
      %v1465 = vpop.f32.mrb[0].mxu0
      %v1466 = vpop.f32.mrb[0].mxu0
      %v1467 = vadd.f32 %v1123, %v1466
      %v1468 = vpop.f32.mrb[0].mxu0
      %1469 = vmatprep.mubr.bf16.mxu0 %v1236
      %1470 = vmatmul.mubr.bf16.gmra.mrb[0].mxu0 %v1235
      %v1471 = vpop.f32.mrb[0].mxu0
      %v1472 = vadd.f32 %v1123, %v1471
      %v1473 = vpop.f32.mrb[0].mxu0
      %v1474 = vpop.f32.mrb[0].mxu0
      %v1475 = vadd.f32 %v1123, %v1474
      %v1476 = vpop.f32.mrb[0].mxu0
      %1477 = vmatprep.mubr.bf16.mxu0 %v1238
      %1478 = vmatmul.mubr.bf16.gmra.mrb[0].mxu0 %v1237
      %v1479 = vpop.f32.mrb[0].mxu0
      %v1480 = vadd.f32 %v1123, %v1479
      %v1481 = vpop.f32.mrb[0].mxu0
      %v1482 = vpop.f32.mrb[0].mxu0
      %v1483 = vadd.f32 %v1123, %v1482
      %v1484 = vpop.f32.mrb[0].mxu0
      %1485 = vmatprep.mubr.bf16.mxu0 %v1240
      %1486 = vmatmul.mubr.bf16.gmra.mrb[0].mxu0 %v1239
      %v1487 = vpop.f32.mrb[0].mxu0
      %v1488 = vadd.f32 %v1123, %v1487
      %v1489 = vpop.f32.mrb[0].mxu0
      %v1490 = vpop.f32.mrb[0].mxu0
      %v1491 = vadd.f32 %v1123, %v1490
      %v1492 = vpop.f32.mrb[0].mxu0
      %1493 = vmatprep.mubr.bf16.mxu0 %v1242
      %1494 = vmatmul.mubr.bf16.gmra.mrb[0].mxu0 %v1241
      %v1495 = vpop.f32.mrb[0].mxu0
      %v1496 = vadd.f32 %v1123, %v1495
      %v1497 = vpop.f32.mrb[0].mxu0
      %v1498 = vpop.f32.mrb[0].mxu0
      %v1499 = vadd.f32 %v1123, %v1498
      %v1500 = vpop.f32.mrb[0].mxu0
      %1501 = vmatprep.mubr.bf16.mxu0 %v1244
      %1502 = vmatmul.mubr.bf16.gmra.mrb[0].mxu0 %v1243
      %v1503 = vpop.f32.mrb[0].mxu0
      %v1504 = vadd.f32 %v1123, %v1503
      %v1505 = vpop.f32.mrb[0].mxu0
      %v1506 = vpop.f32.mrb[0].mxu0
      %v1507 = vadd.f32 %v1123, %v1506
      %v1508 = vpop.f32.mrb[0].mxu0
      %1509 = vmatprep.mubr.bf16.mxu0 %v1246
      %1510 = vmatmul.mubr.bf16.gmra.mrb[0].mxu0 %v1245
      %v1511 = vpop.f32.mrb[0].mxu0
      %v1512 = vadd.f32 %v1123, %v1511
      %v1513 = vpop.f32.mrb[0].mxu0
      %v1514 = vpop.f32.mrb[0].mxu0
      %v1515 = vadd.f32 %v1123, %v1514
      %v1516 = vpop.f32.mrb[0].mxu0
      %1517 = vmatprep.mubr.bf16.mxu0 %v1248
      %1518 = vmatmul.mubr.bf16.gmra.mrb[0].mxu0 %v1247
      %v1519 = vpop.f32.mrb[0].mxu0
      %v1520 = vadd.f32 %v1123, %v1519
      %v1521 = vpop.f32.mrb[0].mxu0
      %v1522 = vpop.f32.mrb[0].mxu0
      %v1523 = vadd.f32 %v1123, %v1522
      %v1524 = vpop.f32.mrb[0].mxu0
      %1525 = vmatprep.mubr.bf16.mxu0 %v1250
      %1526 = vmatmul.mubr.bf16.gmra.mrb[0].mxu0 %v1249
      %v1527 = vpop.f32.mrb[0].mxu0
      %v1528 = vadd.f32 %v1123, %v1527
      %v1529 = vpop.f32.mrb[0].mxu0
      %v1530 = vpop.f32.mrb[0].mxu0
      %v1531 = vadd.f32 %v1123, %v1530
      %v1532 = vpop.f32.mrb[0].mxu0
      %1533 = vmatprep.mubr.bf16.mxu0 %v1252
      %1534 = vmatmul.mubr.bf16.gmra.mrb[0].mxu0 %v1251
      %v1535 = vpop.f32.mrb[0].mxu0
      %v1536 = vadd.f32 %v1123, %v1535
      %v1537 = vpop.f32.mrb[0].mxu0
      %v1538 = vpop.f32.mrb[0].mxu0
      %v1539 = vadd.f32 %v1123, %v1538
      %v1540 = vpop.f32.mrb[0].mxu0
      %1541 = vdwg.mxu0
      %s1542 = scalar_lea.vmem %s2, 256
      %v1543 = vld [vmem:[%s1542] sm:$0xf]
      %v1544 = vld [vmem:[%s1542 + $0x4] sm:$0xf]
      %v1545 = vld [vmem:[%s1542 + $0x8] sm:$0xf]
      %v1546 = vld [vmem:[%s1542 + $0xc] sm:$0xf]
      %v1547 = vld [vmem:[%s1542 + $0x10] sm:$0xf]
      %v1548 = vld [vmem:[%s1542 + $0x14] sm:$0xf]
      %v1549 = vld [vmem:[%s1542 + $0x18] sm:$0xf]
      %v1550 = vld [vmem:[%s1542 + $0x1c] sm:$0xf]
      %v1551 = vld [vmem:[%s1542 + $0x20] sm:$0xf]
      %v1552 = vld [vmem:[%s1542 + $0x24] sm:$0xf]
      %v1553 = vld [vmem:[%s1542 + $0x28] sm:$0xf]
      %v1554 = vld [vmem:[%s1542 + $0x2c] sm:$0xf]
      %v1555 = vld [vmem:[%s1542 + $0x30] sm:$0xf]
      %v1556 = vld [vmem:[%s1542 + $0x34] sm:$0xf]
      %v1557 = vld [vmem:[%s1542 + $0x38] sm:$0xf]
      %v1558 = vld [vmem:[%s1542 + $0x3c] sm:$0xf]
      %v1559 = vld [vmem:[%s1542 + $0x40] sm:$0xf]
      %v1560 = vld [vmem:[%s1542 + $0x44] sm:$0xf]
      %v1561 = vld [vmem:[%s1542 + $0x48] sm:$0xf]
      %v1562 = vld [vmem:[%s1542 + $0x4c] sm:$0xf]
      %v1563 = vld [vmem:[%s1542 + $0x50] sm:$0xf]
      %v1564 = vld [vmem:[%s1542 + $0x54] sm:$0xf]
      %v1565 = vld [vmem:[%s1542 + $0x58] sm:$0xf]
      %v1566 = vld [vmem:[%s1542 + $0x5c] sm:$0xf]
      %v1567 = vld [vmem:[%s1542 + $0x60] sm:$0xf]
      %v1568 = vld [vmem:[%s1542 + $0x64] sm:$0xf]
      %v1569 = vld [vmem:[%s1542 + $0x68] sm:$0xf]
      %v1570 = vld [vmem:[%s1542 + $0x6c] sm:$0xf]
      %v1571 = vld [vmem:[%s1542 + $0x70] sm:$0xf]
      %v1572 = vld [vmem:[%s1542 + $0x74] sm:$0xf]
      %v1573 = vld [vmem:[%s1542 + $0x78] sm:$0xf]
      %v1574 = vld [vmem:[%s1542 + $0x7c] sm:$0xf]
      %s1575 = scalar_lea.vmem %s3, 2
      %v1576 = vld [vmem:[%s1575] sm:$0x1]
      %v1578 = vlaneseq
      %v1579 = vshrl.u32 %v1578, 7
      %v1580 = vsub.s32 0, %v1579
      %v1581 = vrot.slane %v1576, %v1580
      %v1615 = vunpack.c.l.b16 %v534
      %v1616 = vunpack.c.h.b16 %v534
      %v1617 = vunpack.c.l.b16 %v537
      %v1618 = vunpack.c.h.b16 %v537
      %v1619 = vunpack.c.l.b16 %v540
      %v1620 = vunpack.c.h.b16 %v540
      %v1621 = vunpack.c.l.b16 %v543
      %v1622 = vunpack.c.h.b16 %v543
      %v1623 = vunpack.c.l.b16 %v546
      %v1624 = vunpack.c.h.b16 %v546
      %v1625 = vunpack.c.l.b16 %v549
      %v1626 = vunpack.c.h.b16 %v549
      %v1627 = vunpack.c.l.b16 %v552
      %v1628 = vunpack.c.h.b16 %v552
      %v1629 = vunpack.c.l.b16 %v555
      %v1630 = vunpack.c.h.b16 %v555
      %v1631 = vunpack.c.l.b16 %v558
      %v1632 = vunpack.c.h.b16 %v558
      %v1633 = vunpack.c.l.b16 %v561
      %v1634 = vunpack.c.h.b16 %v561
      %v1635 = vunpack.c.l.b16 %v564
      %v1636 = vunpack.c.h.b16 %v564
      %v1637 = vunpack.c.l.b16 %v567
      %v1638 = vunpack.c.h.b16 %v567
      %v1639 = vunpack.c.l.b16 %v570
      %v1640 = vunpack.c.h.b16 %v570
      %v1641 = vunpack.c.l.b16 %v573
      %v1642 = vunpack.c.h.b16 %v573
      %v1643 = vunpack.c.l.b16 %v576
      %v1644 = vunpack.c.h.b16 %v576
      %v1645 = vunpack.c.l.b16 %v579
      %v1646 = vunpack.c.h.b16 %v579
      %v1647 = vunpack.c.l.b16 %v582
      %v1648 = vunpack.c.h.b16 %v582
      %v1649 = vunpack.c.l.b16 %v585
      %v1650 = vunpack.c.h.b16 %v585
      %v1651 = vunpack.c.l.b16 %v588
      %v1652 = vunpack.c.h.b16 %v588
      %v1653 = vunpack.c.l.b16 %v591
      %v1654 = vunpack.c.h.b16 %v591
      %v1655 = vunpack.c.l.b16 %v594
      %v1656 = vunpack.c.h.b16 %v594
      %v1657 = vunpack.c.l.b16 %v597
      %v1658 = vunpack.c.h.b16 %v597
      %v1659 = vunpack.c.l.b16 %v600
      %v1660 = vunpack.c.h.b16 %v600
      %v1661 = vunpack.c.l.b16 %v603
      %v1662 = vunpack.c.h.b16 %v603
      %v1663 = vunpack.c.l.b16 %v606
      %v1664 = vunpack.c.h.b16 %v606
      %v1665 = vunpack.c.l.b16 %v609
      %v1666 = vunpack.c.h.b16 %v609
      %v1667 = vunpack.c.l.b16 %v612
      %v1668 = vunpack.c.h.b16 %v612
      %v1669 = vunpack.c.l.b16 %v615
      %v1670 = vunpack.c.h.b16 %v615
      %v1671 = vunpack.c.l.b16 %v618
      %v1672 = vunpack.c.h.b16 %v618
      %v1673 = vunpack.c.l.b16 %v621
      %v1674 = vunpack.c.h.b16 %v621
      %v1675 = vunpack.c.l.b16 %v624
      %v1676 = vunpack.c.h.b16 %v624
      %v1677 = vunpack.c.l.b16 %v627
      %v1678 = vunpack.c.h.b16 %v627
      %v1679 = vpack.c.b16 %v1617, %v1615
      %v1680 = vpack.c.b16 %v1618, %v1616
      %v1681 = vpack.c.b16 %v1621, %v1619
      %v1682 = vpack.c.b16 %v1622, %v1620
      %v1683 = vpack.c.b16 %v1625, %v1623
      %v1684 = vpack.c.b16 %v1626, %v1624
      %v1685 = vpack.c.b16 %v1629, %v1627
      %v1686 = vpack.c.b16 %v1630, %v1628
      %v1687 = vpack.c.b16 %v1633, %v1631
      %v1688 = vpack.c.b16 %v1634, %v1632
      %v1689 = vpack.c.b16 %v1637, %v1635
      %v1690 = vpack.c.b16 %v1638, %v1636
      %v1691 = vpack.c.b16 %v1641, %v1639
      %v1692 = vpack.c.b16 %v1642, %v1640
      %v1693 = vpack.c.b16 %v1645, %v1643
      %v1694 = vpack.c.b16 %v1646, %v1644
      %v1695 = vpack.c.b16 %v1649, %v1647
      %v1696 = vpack.c.b16 %v1650, %v1648
      %v1697 = vpack.c.b16 %v1653, %v1651
      %v1698 = vpack.c.b16 %v1654, %v1652
      %v1699 = vpack.c.b16 %v1657, %v1655
      %v1700 = vpack.c.b16 %v1658, %v1656
      %v1701 = vpack.c.b16 %v1661, %v1659
      %v1702 = vpack.c.b16 %v1662, %v1660
      %v1703 = vpack.c.b16 %v1665, %v1663
      %v1704 = vpack.c.b16 %v1666, %v1664
      %v1705 = vpack.c.b16 %v1669, %v1667
      %v1706 = vpack.c.b16 %v1670, %v1668
      %v1707 = vpack.c.b16 %v1673, %v1671
      %v1708 = vpack.c.b16 %v1674, %v1672
      %v1709 = vpack.c.b16 %v1677, %v1675
      %v1710 = vpack.c.b16 %v1678, %v1676
      %v1775 = vunpack.c.l.b16 %v1543
      %v1776 = vunpack.c.l.b16 %v1544
      %v1777 = vunpack.c.l.b16 %v1545
      %v1778 = vunpack.c.l.b16 %v1546
      %v1779 = vunpack.c.l.b16 %v1547
      %v1780 = vunpack.c.l.b16 %v1548
      %v1781 = vunpack.c.l.b16 %v1549
      %v1782 = vunpack.c.l.b16 %v1550
      %v1783 = vunpack.c.l.b16 %v1551
      %v1784 = vunpack.c.l.b16 %v1552
      %v1785 = vunpack.c.l.b16 %v1553
      %v1786 = vunpack.c.l.b16 %v1554
      %v1787 = vunpack.c.l.b16 %v1555
      %v1788 = vunpack.c.l.b16 %v1556
      %v1789 = vunpack.c.l.b16 %v1557
      %v1790 = vunpack.c.l.b16 %v1558
      %v1791 = vunpack.c.l.b16 %v1559
      %v1792 = vunpack.c.l.b16 %v1560
      %v1793 = vunpack.c.l.b16 %v1561
      %v1794 = vunpack.c.l.b16 %v1562
      %v1795 = vunpack.c.l.b16 %v1563
      %v1796 = vunpack.c.l.b16 %v1564
      %v1797 = vunpack.c.l.b16 %v1565
      %v1798 = vunpack.c.l.b16 %v1566
      %v1799 = vunpack.c.l.b16 %v1567
      %v1800 = vunpack.c.l.b16 %v1568
      %v1801 = vunpack.c.l.b16 %v1569
      %v1802 = vunpack.c.l.b16 %v1570
      %v1803 = vunpack.c.l.b16 %v1571
      %v1804 = vunpack.c.l.b16 %v1572
      %v1805 = vunpack.c.l.b16 %v1573
      %v1806 = vunpack.c.l.b16 %v1574
      %v1807 = vpack.c.b16 %v1776, %v1775
      %v1808 = vpack.c.b16 %v1778, %v1777
      %v1809 = vpack.c.b16 %v1780, %v1779
      %v1810 = vpack.c.b16 %v1782, %v1781
      %v1811 = vpack.c.b16 %v1784, %v1783
      %v1812 = vpack.c.b16 %v1786, %v1785
      %v1813 = vpack.c.b16 %v1788, %v1787
      %v1814 = vpack.c.b16 %v1790, %v1789
      %v1815 = vpack.c.b16 %v1792, %v1791
      %v1816 = vpack.c.b16 %v1794, %v1793
      %v1817 = vpack.c.b16 %v1796, %v1795
      %v1818 = vpack.c.b16 %v1798, %v1797
      %v1819 = vpack.c.b16 %v1800, %v1799
      %v1820 = vpack.c.b16 %v1802, %v1801
      %v1821 = vpack.c.b16 %v1804, %v1803
      %v1822 = vpack.c.b16 %v1806, %v1805
      %1839 = vmatprep.subr.bf16.mxu0 0
      %1840 = vmatpush1.bf16.msra.mxu0 %v1807
      %1841 = vmatprep.subr.bf16.mxu0 0
      %1842 = vmatpush1.bf16.msra.mxu0 %v1808
      %1843 = vmatprep.subr.bf16.mxu0 0
      %1844 = vmatpush1.bf16.msra.mxu0 %v1809
      %1845 = vmatprep.subr.bf16.mxu0 0
      %1846 = vmatpush1.bf16.msra.mxu0 %v1810
      %1847 = vmatprep.subr.bf16.mxu0 0
      %1848 = vmatpush1.bf16.msra.mxu0 %v1811
      %1849 = vmatprep.subr.bf16.mxu0 0
      %1850 = vmatpush1.bf16.msra.mxu0 %v1812
      %1851 = vmatprep.subr.bf16.mxu0 0
      %1852 = vmatpush1.bf16.msra.mxu0 %v1813
      %1853 = vmatprep.subr.bf16.mxu0 0
      %1854 = vmatpush1.bf16.msra.mxu0 %v1814
      %1855 = vmatprep.subr.bf16.mxu0 0
      %1856 = vmatpush1.bf16.msra.mxu0 %v1815
      %1857 = vmatprep.subr.bf16.mxu0 0
      %1858 = vmatpush1.bf16.msra.mxu0 %v1816
      %1859 = vmatprep.subr.bf16.mxu0 0
      %1860 = vmatpush1.bf16.msra.mxu0 %v1817
      %1861 = vmatprep.subr.bf16.mxu0 0
      %1862 = vmatpush1.bf16.msra.mxu0 %v1818
      %1863 = vmatprep.subr.bf16.mxu0 0
      %1864 = vmatpush1.bf16.msra.mxu0 %v1819
      %1865 = vmatprep.subr.bf16.mxu0 0
      %1866 = vmatpush1.bf16.msra.mxu0 %v1820
      %1867 = vmatprep.subr.bf16.mxu0 0
      %1868 = vmatpush1.bf16.msra.mxu0 %v1821
      %1869 = vmatprep.subr.bf16.mxu0 0
      %1870 = vmatpush1.bf16.msra.mxu0 %v1822
      %1871 = vmatprep.mubr.bf16.mxu0 %v1680
      %1872 = vmatmul.mubr.bf16.gmra.mrb[0].mxu0 %v1679
      %v1873 = vpop.f32.mrb[0].mxu0
      %v1874 = vadd.f32 %v1581, %v1873
      %v1875 = vpop.f32.mrb[0].mxu0
      %v1876 = vpop.f32.mrb[0].mxu0
      %v1877 = vadd.f32 %v1581, %v1876
      %v1878 = vpop.f32.mrb[0].mxu0
      %1879 = vmatprep.mubr.bf16.mxu0 %v1682
      %1880 = vmatmul.mubr.bf16.gmra.mrb[0].mxu0 %v1681
      %v1881 = vpop.f32.mrb[0].mxu0
      %v1882 = vadd.f32 %v1581, %v1881
      %v1883 = vpop.f32.mrb[0].mxu0
      %v1884 = vpop.f32.mrb[0].mxu0
      %v1885 = vadd.f32 %v1581, %v1884
      %v1886 = vpop.f32.mrb[0].mxu0
      %1887 = vmatprep.mubr.bf16.mxu0 %v1684
      %1888 = vmatmul.mubr.bf16.gmra.mrb[0].mxu0 %v1683
      %v1889 = vpop.f32.mrb[0].mxu0
      %v1890 = vadd.f32 %v1581, %v1889
      %v1891 = vpop.f32.mrb[0].mxu0
      %v1892 = vpop.f32.mrb[0].mxu0
      %v1893 = vadd.f32 %v1581, %v1892
      %v1894 = vpop.f32.mrb[0].mxu0
      %1895 = vmatprep.mubr.bf16.mxu0 %v1686
      %1896 = vmatmul.mubr.bf16.gmra.mrb[0].mxu0 %v1685
      %v1897 = vpop.f32.mrb[0].mxu0
      %v1898 = vadd.f32 %v1581, %v1897
      %v1899 = vpop.f32.mrb[0].mxu0
      %v1900 = vpop.f32.mrb[0].mxu0
      %v1901 = vadd.f32 %v1581, %v1900
      %v1902 = vpop.f32.mrb[0].mxu0
      %1903 = vmatprep.mubr.bf16.mxu0 %v1688
      %1904 = vmatmul.mubr.bf16.gmra.mrb[0].mxu0 %v1687
      %v1905 = vpop.f32.mrb[0].mxu0
      %v1906 = vadd.f32 %v1581, %v1905
      %v1907 = vpop.f32.mrb[0].mxu0
      %v1908 = vpop.f32.mrb[0].mxu0
      %v1909 = vadd.f32 %v1581, %v1908
      %v1910 = vpop.f32.mrb[0].mxu0
      %1911 = vmatprep.mubr.bf16.mxu0 %v1690
      %1912 = vmatmul.mubr.bf16.gmra.mrb[0].mxu0 %v1689
      %v1913 = vpop.f32.mrb[0].mxu0
      %v1914 = vadd.f32 %v1581, %v1913
      %v1915 = vpop.f32.mrb[0].mxu0
      %v1916 = vpop.f32.mrb[0].mxu0
      %v1917 = vadd.f32 %v1581, %v1916
      %v1918 = vpop.f32.mrb[0].mxu0
      %1919 = vmatprep.mubr.bf16.mxu0 %v1692
      %1920 = vmatmul.mubr.bf16.gmra.mrb[0].mxu0 %v1691
      %v1921 = vpop.f32.mrb[0].mxu0
      %v1922 = vadd.f32 %v1581, %v1921
      %v1923 = vpop.f32.mrb[0].mxu0
      %v1924 = vpop.f32.mrb[0].mxu0
      %v1925 = vadd.f32 %v1581, %v1924
      %v1926 = vpop.f32.mrb[0].mxu0
      %1927 = vmatprep.mubr.bf16.mxu0 %v1694
      %1928 = vmatmul.mubr.bf16.gmra.mrb[0].mxu0 %v1693
      %v1929 = vpop.f32.mrb[0].mxu0
      %v1930 = vadd.f32 %v1581, %v1929
      %v1931 = vpop.f32.mrb[0].mxu0
      %v1932 = vpop.f32.mrb[0].mxu0
      %v1933 = vadd.f32 %v1581, %v1932
      %v1934 = vpop.f32.mrb[0].mxu0
      %1935 = vmatprep.mubr.bf16.mxu0 %v1696
      %1936 = vmatmul.mubr.bf16.gmra.mrb[0].mxu0 %v1695
      %v1937 = vpop.f32.mrb[0].mxu0
      %v1938 = vadd.f32 %v1581, %v1937
      %v1939 = vpop.f32.mrb[0].mxu0
      %v1940 = vpop.f32.mrb[0].mxu0
      %v1941 = vadd.f32 %v1581, %v1940
      %v1942 = vpop.f32.mrb[0].mxu0
      %1943 = vmatprep.mubr.bf16.mxu0 %v1698
      %1944 = vmatmul.mubr.bf16.gmra.mrb[0].mxu0 %v1697
      %v1945 = vpop.f32.mrb[0].mxu0
      %v1946 = vadd.f32 %v1581, %v1945
      %v1947 = vpop.f32.mrb[0].mxu0
      %v1948 = vpop.f32.mrb[0].mxu0
      %v1949 = vadd.f32 %v1581, %v1948
      %v1950 = vpop.f32.mrb[0].mxu0
      %1951 = vmatprep.mubr.bf16.mxu0 %v1700
      %1952 = vmatmul.mubr.bf16.gmra.mrb[0].mxu0 %v1699
      %v1953 = vpop.f32.mrb[0].mxu0
      %v1954 = vadd.f32 %v1581, %v1953
      %v1955 = vpop.f32.mrb[0].mxu0
      %v1956 = vpop.f32.mrb[0].mxu0
      %v1957 = vadd.f32 %v1581, %v1956
      %v1958 = vpop.f32.mrb[0].mxu0
      %1959 = vmatprep.mubr.bf16.mxu0 %v1702
      %1960 = vmatmul.mubr.bf16.gmra.mrb[0].mxu0 %v1701
      %v1961 = vpop.f32.mrb[0].mxu0
      %v1962 = vadd.f32 %v1581, %v1961
      %v1963 = vpop.f32.mrb[0].mxu0
      %v1964 = vpop.f32.mrb[0].mxu0
      %v1965 = vadd.f32 %v1581, %v1964
      %v1966 = vpop.f32.mrb[0].mxu0
      %1967 = vmatprep.mubr.bf16.mxu0 %v1704
      %1968 = vmatmul.mubr.bf16.gmra.mrb[0].mxu0 %v1703
      %v1969 = vpop.f32.mrb[0].mxu0
      %v1970 = vadd.f32 %v1581, %v1969
      %v1971 = vpop.f32.mrb[0].mxu0
      %v1972 = vpop.f32.mrb[0].mxu0
      %v1973 = vadd.f32 %v1581, %v1972
      %v1974 = vpop.f32.mrb[0].mxu0
      %1975 = vmatprep.mubr.bf16.mxu0 %v1706
      %1976 = vmatmul.mubr.bf16.gmra.mrb[0].mxu0 %v1705
      %v1977 = vpop.f32.mrb[0].mxu0
      %v1978 = vadd.f32 %v1581, %v1977
      %v1979 = vpop.f32.mrb[0].mxu0
      %v1980 = vpop.f32.mrb[0].mxu0
      %v1981 = vadd.f32 %v1581, %v1980
      %v1982 = vpop.f32.mrb[0].mxu0
      %1983 = vmatprep.mubr.bf16.mxu0 %v1708
      %1984 = vmatmul.mubr.bf16.gmra.mrb[0].mxu0 %v1707
      %v1985 = vpop.f32.mrb[0].mxu0
      %v1986 = vadd.f32 %v1581, %v1985
      %v1987 = vpop.f32.mrb[0].mxu0
      %v1988 = vpop.f32.mrb[0].mxu0
      %v1989 = vadd.f32 %v1581, %v1988
      %v1990 = vpop.f32.mrb[0].mxu0
      %1991 = vmatprep.mubr.bf16.mxu0 %v1710
      %1992 = vmatmul.mubr.bf16.gmra.mrb[0].mxu0 %v1709
      %v1993 = vpop.f32.mrb[0].mxu0
      %v1994 = vadd.f32 %v1581, %v1993
      %v1995 = vpop.f32.mrb[0].mxu0
      %v1996 = vpop.f32.mrb[0].mxu0
      %v1997 = vadd.f32 %v1581, %v1996
      %v1998 = vpop.f32.mrb[0].mxu0
      %1999 = vdwg.mxu0
      %v2000 = vld [vmem:[%s508] sm:$0xff]
      %v2001 = vld [vmem:[%s508 + $0x8] sm:$0xff]
      %v2002 = vld [vmem:[%s508 + $0x10] sm:$0xff]
      %v2003 = vld [vmem:[%s508 + $0x18] sm:$0xff]
      %v2004 = vld [vmem:[%s508 + $0x20] sm:$0xff]
      %v2005 = vld [vmem:[%s508 + $0x28] sm:$0xff]
      %v2006 = vld [vmem:[%s508 + $0x30] sm:$0xff]
      %v2007 = vld [vmem:[%s508 + $0x38] sm:$0xff]
      %v2008 = vld [vmem:[%s508 + $0x40] sm:$0xff]
      %v2009 = vld [vmem:[%s508 + $0x48] sm:$0xff]
      %v2010 = vld [vmem:[%s508 + $0x50] sm:$0xff]
      %v2011 = vld [vmem:[%s508 + $0x58] sm:$0xff]
      %v2012 = vld [vmem:[%s508 + $0x60] sm:$0xff]
      %v2013 = vld [vmem:[%s508 + $0x68] sm:$0xff]
      %v2014 = vld [vmem:[%s508 + $0x70] sm:$0xff]
      %v2015 = vld [vmem:[%s508 + $0x78] sm:$0xff]
      %v2016 = vld [vmem:[%s508 + $0x80] sm:$0xff]
      %v2017 = vld [vmem:[%s508 + $0x88] sm:$0xff]
      %v2018 = vld [vmem:[%s508 + $0x90] sm:$0xff]
      %v2019 = vld [vmem:[%s508 + $0x98] sm:$0xff]
      %v2020 = vld [vmem:[%s508 + $0xa0] sm:$0xff]
      %v2021 = vld [vmem:[%s508 + $0xa8] sm:$0xff]
      %v2022 = vld [vmem:[%s508 + $0xb0] sm:$0xff]
      %v2023 = vld [vmem:[%s508 + $0xb8] sm:$0xff]
      %v2024 = vld [vmem:[%s508 + $0xc0] sm:$0xff]
      %v2025 = vld [vmem:[%s508 + $0xc8] sm:$0xff]
      %v2026 = vld [vmem:[%s508 + $0xd0] sm:$0xff]
      %v2027 = vld [vmem:[%s508 + $0xd8] sm:$0xff]
      %v2028 = vld [vmem:[%s508 + $0xe0] sm:$0xff]
      %v2029 = vld [vmem:[%s508 + $0xe8] sm:$0xff]
      %v2030 = vld [vmem:[%s508 + $0xf0] sm:$0xff]
      %v2031 = vld [vmem:[%s508 + $0xf8] sm:$0xff]
      %2064 = vrot.lane.b32.xlu0 %v1416, 64
      %v2065 = vpop.permute.xlu0 %2064
      %2066 = vrot.lane.b32.xlu0 %v1419, 64
      %v2067 = vpop.permute.xlu0 %2066
      %2068 = vrot.lane.b32.xlu0 %v1424, 64
      %v2069 = vpop.permute.xlu0 %2068
      %2070 = vrot.lane.b32.xlu0 %v1427, 64
      %v2071 = vpop.permute.xlu0 %2070
      %2072 = vrot.lane.b32.xlu0 %v1432, 64
      %v2073 = vpop.permute.xlu0 %2072
      %2074 = vrot.lane.b32.xlu0 %v1435, 64
      %v2075 = vpop.permute.xlu0 %2074
      %2076 = vrot.lane.b32.xlu0 %v1440, 64
      %v2077 = vpop.permute.xlu0 %2076
      %2078 = vrot.lane.b32.xlu0 %v1443, 64
      %v2079 = vpop.permute.xlu0 %2078
      %2080 = vrot.lane.b32.xlu0 %v1448, 64
      %v2081 = vpop.permute.xlu0 %2080
      %2082 = vrot.lane.b32.xlu0 %v1451, 64
      %v2083 = vpop.permute.xlu0 %2082
      %2084 = vrot.lane.b32.xlu0 %v1456, 64
      %v2085 = vpop.permute.xlu0 %2084
      %2086 = vrot.lane.b32.xlu0 %v1459, 64
      %v2087 = vpop.permute.xlu0 %2086
      %2088 = vrot.lane.b32.xlu0 %v1464, 64
      %v2089 = vpop.permute.xlu0 %2088
      %2090 = vrot.lane.b32.xlu0 %v1467, 64
      %v2091 = vpop.permute.xlu0 %2090
      %2092 = vrot.lane.b32.xlu0 %v1472, 64
      %v2093 = vpop.permute.xlu0 %2092
      %2094 = vrot.lane.b32.xlu0 %v1475, 64
      %v2095 = vpop.permute.xlu0 %2094
      %2096 = vrot.lane.b32.xlu0 %v1480, 64
      %v2097 = vpop.permute.xlu0 %2096
      %2098 = vrot.lane.b32.xlu0 %v1483, 64
      %v2099 = vpop.permute.xlu0 %2098
      %2100 = vrot.lane.b32.xlu0 %v1488, 64
      %v2101 = vpop.permute.xlu0 %2100
      %2102 = vrot.lane.b32.xlu0 %v1491, 64
      %v2103 = vpop.permute.xlu0 %2102
      %2104 = vrot.lane.b32.xlu0 %v1496, 64
      %v2105 = vpop.permute.xlu0 %2104
      %2106 = vrot.lane.b32.xlu0 %v1499, 64
      %v2107 = vpop.permute.xlu0 %2106
      %2108 = vrot.lane.b32.xlu0 %v1504, 64
      %v2109 = vpop.permute.xlu0 %2108
      %2110 = vrot.lane.b32.xlu0 %v1507, 64
      %v2111 = vpop.permute.xlu0 %2110
      %2112 = vrot.lane.b32.xlu0 %v1512, 64
      %v2113 = vpop.permute.xlu0 %2112
      %2114 = vrot.lane.b32.xlu0 %v1515, 64
      %v2115 = vpop.permute.xlu0 %2114
      %2116 = vrot.lane.b32.xlu0 %v1520, 64
      %v2117 = vpop.permute.xlu0 %2116
      %2118 = vrot.lane.b32.xlu0 %v1523, 64
      %v2119 = vpop.permute.xlu0 %2118
      %2120 = vrot.lane.b32.xlu0 %v1528, 64
      %v2121 = vpop.permute.xlu0 %2120
      %2122 = vrot.lane.b32.xlu0 %v1531, 64
      %v2123 = vpop.permute.xlu0 %2122
      %2124 = vrot.lane.b32.xlu0 %v1536, 64
      %v2125 = vpop.permute.xlu0 %2124
      %2126 = vrot.lane.b32.xlu0 %v1539, 64
      %v2127 = vpop.permute.xlu0 %2126
      %2192 = vrot.lane.b32.xlu0 %v2000, 64
      %v2193 = vpop.permute.xlu0 %2192
      %2194 = vrot.lane.b32.xlu0 %v2001, 64
      %v2195 = vpop.permute.xlu0 %2194
      %2196 = vrot.lane.b32.xlu0 %v2002, 64
      %v2197 = vpop.permute.xlu0 %2196
      %2198 = vrot.lane.b32.xlu0 %v2003, 64
      %v2199 = vpop.permute.xlu0 %2198
      %2200 = vrot.lane.b32.xlu0 %v2004, 64
      %v2201 = vpop.permute.xlu0 %2200
      %2202 = vrot.lane.b32.xlu0 %v2005, 64
      %v2203 = vpop.permute.xlu0 %2202
      %2204 = vrot.lane.b32.xlu0 %v2006, 64
      %v2205 = vpop.permute.xlu0 %2204
      %2206 = vrot.lane.b32.xlu0 %v2007, 64
      %v2207 = vpop.permute.xlu0 %2206
      %2208 = vrot.lane.b32.xlu0 %v2008, 64
      %v2209 = vpop.permute.xlu0 %2208
      %2210 = vrot.lane.b32.xlu0 %v2009, 64
      %v2211 = vpop.permute.xlu0 %2210
      %2212 = vrot.lane.b32.xlu0 %v2010, 64
      %v2213 = vpop.permute.xlu0 %2212
      %2214 = vrot.lane.b32.xlu0 %v2011, 64
      %v2215 = vpop.permute.xlu0 %2214
      %2216 = vrot.lane.b32.xlu0 %v2012, 64
      %v2217 = vpop.permute.xlu0 %2216
      %2218 = vrot.lane.b32.xlu0 %v2013, 64
      %v2219 = vpop.permute.xlu0 %2218
      %2220 = vrot.lane.b32.xlu0 %v2014, 64
      %v2221 = vpop.permute.xlu0 %2220
      %2222 = vrot.lane.b32.xlu0 %v2015, 64
      %v2223 = vpop.permute.xlu0 %2222
      %2224 = vrot.lane.b32.xlu0 %v2016, 64
      %v2225 = vpop.permute.xlu0 %2224
      %2226 = vrot.lane.b32.xlu0 %v2017, 64
      %v2227 = vpop.permute.xlu0 %2226
      %2228 = vrot.lane.b32.xlu0 %v2018, 64
      %v2229 = vpop.permute.xlu0 %2228
      %2230 = vrot.lane.b32.xlu0 %v2019, 64
      %v2231 = vpop.permute.xlu0 %2230
      %2232 = vrot.lane.b32.xlu0 %v2020, 64
      %v2233 = vpop.permute.xlu0 %2232
      %2234 = vrot.lane.b32.xlu0 %v2021, 64
      %v2235 = vpop.permute.xlu0 %2234
      %2236 = vrot.lane.b32.xlu0 %v2022, 64
      %v2237 = vpop.permute.xlu0 %2236
      %2238 = vrot.lane.b32.xlu0 %v2023, 64
      %v2239 = vpop.permute.xlu0 %2238
      %2240 = vrot.lane.b32.xlu0 %v2024, 64
      %v2241 = vpop.permute.xlu0 %2240
      %2242 = vrot.lane.b32.xlu0 %v2025, 64
      %v2243 = vpop.permute.xlu0 %2242
      %2244 = vrot.lane.b32.xlu0 %v2026, 64
      %v2245 = vpop.permute.xlu0 %2244
      %2246 = vrot.lane.b32.xlu0 %v2027, 64
      %v2247 = vpop.permute.xlu0 %2246
      %2248 = vrot.lane.b32.xlu0 %v2028, 64
      %v2249 = vpop.permute.xlu0 %2248
      %2250 = vrot.lane.b32.xlu0 %v2029, 64
      %v2251 = vpop.permute.xlu0 %2250
      %2252 = vrot.lane.b32.xlu0 %v2030, 64
      %v2253 = vpop.permute.xlu0 %2252
      %2254 = vrot.lane.b32.xlu0 %v2031, 64
      %v2255 = vpop.permute.xlu0 %2254
      %vm2288 = vcmask 523264
      %v2289 = vsel %vm2288, %v958, %v2065
      %v2290 = vsel %vm2288, %v961, %v2067
      %v2291 = vsel %vm2288, %v966, %v2069
      %v2292 = vsel %vm2288, %v969, %v2071
      %v2293 = vsel %vm2288, %v974, %v2073
      %v2294 = vsel %vm2288, %v977, %v2075
      %v2295 = vsel %vm2288, %v982, %v2077
      %v2296 = vsel %vm2288, %v985, %v2079
      %v2297 = vsel %vm2288, %v990, %v2081
      %v2298 = vsel %vm2288, %v993, %v2083
      %v2299 = vsel %vm2288, %v998, %v2085
      %v2300 = vsel %vm2288, %v1001, %v2087
      %v2301 = vsel %vm2288, %v1006, %v2089
      %v2302 = vsel %vm2288, %v1009, %v2091
      %v2303 = vsel %vm2288, %v1014, %v2093
      %v2304 = vsel %vm2288, %v1017, %v2095
      %v2305 = vsel %vm2288, %v1022, %v2097
      %v2306 = vsel %vm2288, %v1025, %v2099
      %v2307 = vsel %vm2288, %v1030, %v2101
      %v2308 = vsel %vm2288, %v1033, %v2103
      %v2309 = vsel %vm2288, %v1038, %v2105
      %v2310 = vsel %vm2288, %v1041, %v2107
      %v2311 = vsel %vm2288, %v1046, %v2109
      %v2312 = vsel %vm2288, %v1049, %v2111
      %v2313 = vsel %vm2288, %v1054, %v2113
      %v2314 = vsel %vm2288, %v1057, %v2115
      %v2315 = vsel %vm2288, %v1062, %v2117
      %v2316 = vsel %vm2288, %v1065, %v2119
      %v2317 = vsel %vm2288, %v1070, %v2121
      %v2318 = vsel %vm2288, %v1073, %v2123
      %v2319 = vsel %vm2288, %v1078, %v2125
      %v2320 = vsel %vm2288, %v1081, %v2127
      %v2321 = vsel %vm2288, %v1874, %v2193
      %v2322 = vsel %vm2288, %v1877, %v2195
      %v2323 = vsel %vm2288, %v1882, %v2197
      %v2324 = vsel %vm2288, %v1885, %v2199
      %v2325 = vsel %vm2288, %v1890, %v2201
      %v2326 = vsel %vm2288, %v1893, %v2203
      %v2327 = vsel %vm2288, %v1898, %v2205
      %v2328 = vsel %vm2288, %v1901, %v2207
      %v2329 = vsel %vm2288, %v1906, %v2209
      %v2330 = vsel %vm2288, %v1909, %v2211
      %v2331 = vsel %vm2288, %v1914, %v2213
      %v2332 = vsel %vm2288, %v1917, %v2215
      %v2333 = vsel %vm2288, %v1922, %v2217
      %v2334 = vsel %vm2288, %v1925, %v2219
      %v2335 = vsel %vm2288, %v1930, %v2221
      %v2336 = vsel %vm2288, %v1933, %v2223
      %v2337 = vsel %vm2288, %v1938, %v2225
      %v2338 = vsel %vm2288, %v1941, %v2227
      %v2339 = vsel %vm2288, %v1946, %v2229
      %v2340 = vsel %vm2288, %v1949, %v2231
      %v2341 = vsel %vm2288, %v1954, %v2233
      %v2342 = vsel %vm2288, %v1957, %v2235
      %v2343 = vsel %vm2288, %v1962, %v2237
      %v2344 = vsel %vm2288, %v1965, %v2239
      %v2345 = vsel %vm2288, %v1970, %v2241
      %v2346 = vsel %vm2288, %v1973, %v2243
      %v2347 = vsel %vm2288, %v1978, %v2245
      %v2348 = vsel %vm2288, %v1981, %v2247
      %v2349 = vsel %vm2288, %v1986, %v2249
      %v2350 = vsel %vm2288, %v1989, %v2251
      %v2351 = vsel %vm2288, %v1994, %v2253
      %v2352 = vsel %vm2288, %v1997, %v2255
      %v2353 = vpack.c.bf16 %v2290, %v2289
      %v2354 = vpack.c.bf16 %v2322, %v2321
      %v2355 = vpack.c.bf16 %v2292, %v2291
      %v2356 = vpack.c.bf16 %v2324, %v2323
      %v2357 = vpack.c.bf16 %v2294, %v2293
      %v2358 = vpack.c.bf16 %v2326, %v2325
      %v2359 = vpack.c.bf16 %v2296, %v2295
      %v2360 = vpack.c.bf16 %v2328, %v2327
      %v2361 = vpack.c.bf16 %v2298, %v2297
      %v2362 = vpack.c.bf16 %v2330, %v2329
      %v2363 = vpack.c.bf16 %v2300, %v2299
      %v2364 = vpack.c.bf16 %v2332, %v2331
      %v2365 = vpack.c.bf16 %v2302, %v2301
      %v2366 = vpack.c.bf16 %v2334, %v2333
      %v2367 = vpack.c.bf16 %v2304, %v2303
      %v2368 = vpack.c.bf16 %v2336, %v2335
      %v2369 = vpack.c.bf16 %v2306, %v2305
      %v2370 = vpack.c.bf16 %v2338, %v2337
      %v2371 = vpack.c.bf16 %v2308, %v2307
      %v2372 = vpack.c.bf16 %v2340, %v2339
      %v2373 = vpack.c.bf16 %v2310, %v2309
      %v2374 = vpack.c.bf16 %v2342, %v2341
      %v2375 = vpack.c.bf16 %v2312, %v2311
      %v2376 = vpack.c.bf16 %v2344, %v2343
      %v2377 = vpack.c.bf16 %v2314, %v2313
      %v2378 = vpack.c.bf16 %v2346, %v2345
      %v2379 = vpack.c.bf16 %v2316, %v2315
      %v2380 = vpack.c.bf16 %v2348, %v2347
      %v2381 = vpack.c.bf16 %v2318, %v2317
      %v2382 = vpack.c.bf16 %v2350, %v2349
      %v2383 = vpack.c.bf16 %v2320, %v2319
      %v2384 = vpack.c.bf16 %v2352, %v2351
      %v2385 = vld [vmem:[%s4] sm:$0xff]
      %v2386 = vld [vmem:[%s4 + $0x8] sm:$0xff]
      %v2387 = vld [vmem:[%s4 + $0x10] sm:$0xff]
      %v2388 = vld [vmem:[%s4 + $0x18] sm:$0xff]
      %v2389 = vld [vmem:[%s4 + $0x20] sm:$0xff]
      %v2390 = vld [vmem:[%s4 + $0x28] sm:$0xff]
      %v2391 = vld [vmem:[%s4 + $0x30] sm:$0xff]
      %v2392 = vld [vmem:[%s4 + $0x38] sm:$0xff]
      %v2393 = vld [vmem:[%s4 + $0x40] sm:$0xff]
      %v2394 = vld [vmem:[%s4 + $0x48] sm:$0xff]
      %v2395 = vld [vmem:[%s4 + $0x50] sm:$0xff]
      %v2396 = vld [vmem:[%s4 + $0x58] sm:$0xff]
      %v2397 = vld [vmem:[%s4 + $0x60] sm:$0xff]
      %v2398 = vld [vmem:[%s4 + $0x68] sm:$0xff]
      %v2399 = vld [vmem:[%s4 + $0x70] sm:$0xff]
      %v2400 = vld [vmem:[%s4 + $0x78] sm:$0xff]
      %v2401 = vld [vmem:[%s4 + $0x80] sm:$0xff]
      %v2402 = vld [vmem:[%s4 + $0x88] sm:$0xff]
      %v2403 = vld [vmem:[%s4 + $0x90] sm:$0xff]
      %v2404 = vld [vmem:[%s4 + $0x98] sm:$0xff]
      %v2405 = vld [vmem:[%s4 + $0xa0] sm:$0xff]
      %v2406 = vld [vmem:[%s4 + $0xa8] sm:$0xff]
      %v2407 = vld [vmem:[%s4 + $0xb0] sm:$0xff]
      %v2408 = vld [vmem:[%s4 + $0xb8] sm:$0xff]
      %v2409 = vld [vmem:[%s4 + $0xc0] sm:$0xff]
      %v2410 = vld [vmem:[%s4 + $0xc8] sm:$0xff]
      %v2411 = vld [vmem:[%s4 + $0xd0] sm:$0xff]
      %v2412 = vld [vmem:[%s4 + $0xd8] sm:$0xff]
      %v2413 = vld [vmem:[%s4 + $0xe0] sm:$0xff]
      %v2414 = vld [vmem:[%s4 + $0xe8] sm:$0xff]
      %v2415 = vld [vmem:[%s4 + $0xf0] sm:$0xff]
      %v2416 = vld [vmem:[%s4 + $0xf8] sm:$0xff]
      %v2417 = vld [vmem:[%s5] sm:$0x3]
      %v2419 = vlaneseq
      %v2420 = vshrl.u32 %v2419, 7
      %v2421 = vsub.s32 0, %v2420
      %v2422 = vrot.slane %v2417, %v2421
      %v2423 = vlaneseq
      %v2424 = vshrl.u32 %v2423, 7
      %v2425 = vsub.s32 1, %v2424
      %v2426 = vrot.slane %v2417, %v2425
      %v2461 = vunpack.c.l.b16 %v2385
      %v2462 = vunpack.c.h.b16 %v2385
      %v2463 = vunpack.c.l.b16 %v2386
      %v2464 = vunpack.c.h.b16 %v2386
      %v2465 = vunpack.c.l.b16 %v2387
      %v2466 = vunpack.c.h.b16 %v2387
      %v2467 = vunpack.c.l.b16 %v2388
      %v2468 = vunpack.c.h.b16 %v2388
      %v2469 = vunpack.c.l.b16 %v2389
      %v2470 = vunpack.c.h.b16 %v2389
      %v2471 = vunpack.c.l.b16 %v2390
      %v2472 = vunpack.c.h.b16 %v2390
      %v2473 = vunpack.c.l.b16 %v2391
      %v2474 = vunpack.c.h.b16 %v2391
      %v2475 = vunpack.c.l.b16 %v2392
      %v2476 = vunpack.c.h.b16 %v2392
      %v2477 = vunpack.c.l.b16 %v2393
      %v2478 = vunpack.c.h.b16 %v2393
      %v2479 = vunpack.c.l.b16 %v2394
      %v2480 = vunpack.c.h.b16 %v2394
      %v2481 = vunpack.c.l.b16 %v2395
      %v2482 = vunpack.c.h.b16 %v2395
      %v2483 = vunpack.c.l.b16 %v2396
      %v2484 = vunpack.c.h.b16 %v2396
      %v2485 = vunpack.c.l.b16 %v2397
      %v2486 = vunpack.c.h.b16 %v2397
      %v2487 = vunpack.c.l.b16 %v2398
      %v2488 = vunpack.c.h.b16 %v2398
      %v2489 = vunpack.c.l.b16 %v2399
      %v2490 = vunpack.c.h.b16 %v2399
      %v2491 = vunpack.c.l.b16 %v2400
      %v2492 = vunpack.c.h.b16 %v2400
      %v2493 = vunpack.c.l.b16 %v2401
      %v2494 = vunpack.c.h.b16 %v2401
      %v2495 = vunpack.c.l.b16 %v2402
      %v2496 = vunpack.c.h.b16 %v2402
      %v2497 = vunpack.c.l.b16 %v2403
      %v2498 = vunpack.c.h.b16 %v2403
      %v2499 = vunpack.c.l.b16 %v2404
      %v2500 = vunpack.c.h.b16 %v2404
      %v2501 = vunpack.c.l.b16 %v2405
      %v2502 = vunpack.c.h.b16 %v2405
      %v2503 = vunpack.c.l.b16 %v2406
      %v2504 = vunpack.c.h.b16 %v2406
      %v2505 = vunpack.c.l.b16 %v2407
      %v2506 = vunpack.c.h.b16 %v2407
      %v2507 = vunpack.c.l.b16 %v2408
      %v2508 = vunpack.c.h.b16 %v2408
      %v2509 = vunpack.c.l.b16 %v2409
      %v2510 = vunpack.c.h.b16 %v2409
      %v2511 = vunpack.c.l.b16 %v2410
      %v2512 = vunpack.c.h.b16 %v2410
      %v2513 = vunpack.c.l.b16 %v2411
      %v2514 = vunpack.c.h.b16 %v2411
      %v2515 = vunpack.c.l.b16 %v2412
      %v2516 = vunpack.c.h.b16 %v2412
      %v2517 = vunpack.c.l.b16 %v2413
      %v2518 = vunpack.c.h.b16 %v2413
      %v2519 = vunpack.c.l.b16 %v2414
      %v2520 = vunpack.c.h.b16 %v2414
      %v2521 = vunpack.c.l.b16 %v2415
      %v2522 = vunpack.c.h.b16 %v2415
      %v2523 = vunpack.c.l.b16 %v2416
      %v2524 = vunpack.c.h.b16 %v2416
      %v2525 = vpack.c.b16 %v2463, %v2461
      %v2526 = vpack.c.b16 %v2464, %v2462
      %v2527 = vpack.c.b16 %v2467, %v2465
      %v2528 = vpack.c.b16 %v2468, %v2466
      %v2529 = vpack.c.b16 %v2471, %v2469
      %v2530 = vpack.c.b16 %v2472, %v2470
      %v2531 = vpack.c.b16 %v2475, %v2473
      %v2532 = vpack.c.b16 %v2476, %v2474
      %v2533 = vpack.c.b16 %v2479, %v2477
      %v2534 = vpack.c.b16 %v2480, %v2478
      %v2535 = vpack.c.b16 %v2483, %v2481
      %v2536 = vpack.c.b16 %v2484, %v2482
      %v2537 = vpack.c.b16 %v2487, %v2485
      %v2538 = vpack.c.b16 %v2488, %v2486
      %v2539 = vpack.c.b16 %v2491, %v2489
      %v2540 = vpack.c.b16 %v2492, %v2490
      %v2541 = vpack.c.b16 %v2495, %v2493
      %v2542 = vpack.c.b16 %v2496, %v2494
      %v2543 = vpack.c.b16 %v2499, %v2497
      %v2544 = vpack.c.b16 %v2500, %v2498
      %v2545 = vpack.c.b16 %v2503, %v2501
      %v2546 = vpack.c.b16 %v2504, %v2502
      %v2547 = vpack.c.b16 %v2507, %v2505
      %v2548 = vpack.c.b16 %v2508, %v2506
      %v2549 = vpack.c.b16 %v2511, %v2509
      %v2550 = vpack.c.b16 %v2512, %v2510
      %v2551 = vpack.c.b16 %v2515, %v2513
      %v2552 = vpack.c.b16 %v2516, %v2514
      %v2553 = vpack.c.b16 %v2519, %v2517
      %v2554 = vpack.c.b16 %v2520, %v2518
      %v2555 = vpack.c.b16 %v2523, %v2521
      %v2556 = vpack.c.b16 %v2524, %v2522
      %2589 = vmatprep.subr.bf16.mxu0 %v2526
      %2590 = vmatpush1.bf16.msra.mxu0 %v2525
      %2591 = vmatprep.subr.bf16.mxu0 %v2528
      %2592 = vmatpush1.bf16.msra.mxu0 %v2527
      %2593 = vmatprep.subr.bf16.mxu0 %v2530
      %2594 = vmatpush1.bf16.msra.mxu0 %v2529
      %2595 = vmatprep.subr.bf16.mxu0 %v2532
      %2596 = vmatpush1.bf16.msra.mxu0 %v2531
      %2597 = vmatprep.subr.bf16.mxu0 %v2534
      %2598 = vmatpush1.bf16.msra.mxu0 %v2533
      %2599 = vmatprep.subr.bf16.mxu0 %v2536
      %2600 = vmatpush1.bf16.msra.mxu0 %v2535
      %2601 = vmatprep.subr.bf16.mxu0 %v2538
      %2602 = vmatpush1.bf16.msra.mxu0 %v2537
      %2603 = vmatprep.subr.bf16.mxu0 %v2540
      %2604 = vmatpush1.bf16.msra.mxu0 %v2539
      %2605 = vmatprep.subr.bf16.mxu0 %v2542
      %2606 = vmatpush1.bf16.msra.mxu0 %v2541
      %2607 = vmatprep.subr.bf16.mxu0 %v2544
      %2608 = vmatpush1.bf16.msra.mxu0 %v2543
      %2609 = vmatprep.subr.bf16.mxu0 %v2546
      %2610 = vmatpush1.bf16.msra.mxu0 %v2545
      %2611 = vmatprep.subr.bf16.mxu0 %v2548
      %2612 = vmatpush1.bf16.msra.mxu0 %v2547
      %2613 = vmatprep.subr.bf16.mxu0 %v2550
      %2614 = vmatpush1.bf16.msra.mxu0 %v2549
      %2615 = vmatprep.subr.bf16.mxu0 %v2552
      %2616 = vmatpush1.bf16.msra.mxu0 %v2551
      %2617 = vmatprep.subr.bf16.mxu0 %v2554
      %2618 = vmatpush1.bf16.msra.mxu0 %v2553
      %2619 = vmatprep.subr.bf16.mxu0 %v2556
      %2620 = vmatpush1.bf16.msra.mxu0 %v2555
      %2621 = vmatprep.mubr.bf16.mxu0 %v2354
      %2622 = vmatmul.mubr.bf16.gmra.mrb[0].mxu0 %v2353
      %v2623 = vpop.f32.mrb[0].mxu0
      %v2624 = vadd.f32 %v2422, %v2623
      %v2625 = vpop.f32.mrb[0].mxu0
      %v2626 = vadd.f32 %v2426, %v2625
      %v2627 = vpop.f32.mrb[0].mxu0
      %v2628 = vadd.f32 %v2422, %v2627
      %v2629 = vpop.f32.mrb[0].mxu0
      %v2630 = vadd.f32 %v2426, %v2629
      %2631 = vmatprep.mubr.bf16.mxu0 %v2356
      %2632 = vmatmul.mubr.bf16.gmra.mrb[0].mxu0 %v2355
      %v2633 = vpop.f32.mrb[0].mxu0
      %v2634 = vadd.f32 %v2422, %v2633
      %v2635 = vpop.f32.mrb[0].mxu0
      %v2636 = vadd.f32 %v2426, %v2635
      %v2637 = vpop.f32.mrb[0].mxu0
      %v2638 = vadd.f32 %v2422, %v2637
      %v2639 = vpop.f32.mrb[0].mxu0
      %v2640 = vadd.f32 %v2426, %v2639
      %2641 = vmatprep.mubr.bf16.mxu0 %v2358
      %2642 = vmatmul.mubr.bf16.gmra.mrb[0].mxu0 %v2357
      %v2643 = vpop.f32.mrb[0].mxu0
      %v2644 = vadd.f32 %v2422, %v2643
      %v2645 = vpop.f32.mrb[0].mxu0
      %v2646 = vadd.f32 %v2426, %v2645
      %v2647 = vpop.f32.mrb[0].mxu0
      %v2648 = vadd.f32 %v2422, %v2647
      %v2649 = vpop.f32.mrb[0].mxu0
      %v2650 = vadd.f32 %v2426, %v2649
      %2651 = vmatprep.mubr.bf16.mxu0 %v2360
      %2652 = vmatmul.mubr.bf16.gmra.mrb[0].mxu0 %v2359
      %v2653 = vpop.f32.mrb[0].mxu0
      %v2654 = vadd.f32 %v2422, %v2653
      %v2655 = vpop.f32.mrb[0].mxu0
      %v2656 = vadd.f32 %v2426, %v2655
      %v2657 = vpop.f32.mrb[0].mxu0
      %v2658 = vadd.f32 %v2422, %v2657
      %v2659 = vpop.f32.mrb[0].mxu0
      %v2660 = vadd.f32 %v2426, %v2659
      %2661 = vmatprep.mubr.bf16.mxu0 %v2362
      %2662 = vmatmul.mubr.bf16.gmra.mrb[0].mxu0 %v2361
      %v2663 = vpop.f32.mrb[0].mxu0
      %v2664 = vadd.f32 %v2422, %v2663
      %v2665 = vpop.f32.mrb[0].mxu0
      %v2666 = vadd.f32 %v2426, %v2665
      %v2667 = vpop.f32.mrb[0].mxu0
      %v2668 = vadd.f32 %v2422, %v2667
      %v2669 = vpop.f32.mrb[0].mxu0
      %v2670 = vadd.f32 %v2426, %v2669
      %2671 = vmatprep.mubr.bf16.mxu0 %v2364
      %2672 = vmatmul.mubr.bf16.gmra.mrb[0].mxu0 %v2363
      %v2673 = vpop.f32.mrb[0].mxu0
      %v2674 = vadd.f32 %v2422, %v2673
      %v2675 = vpop.f32.mrb[0].mxu0
      %v2676 = vadd.f32 %v2426, %v2675
      %v2677 = vpop.f32.mrb[0].mxu0
      %v2678 = vadd.f32 %v2422, %v2677
      %v2679 = vpop.f32.mrb[0].mxu0
      %v2680 = vadd.f32 %v2426, %v2679
      %2681 = vmatprep.mubr.bf16.mxu0 %v2366
      %2682 = vmatmul.mubr.bf16.gmra.mrb[0].mxu0 %v2365
      %v2683 = vpop.f32.mrb[0].mxu0
      %v2684 = vadd.f32 %v2422, %v2683
      %v2685 = vpop.f32.mrb[0].mxu0
      %v2686 = vadd.f32 %v2426, %v2685
      %v2687 = vpop.f32.mrb[0].mxu0
      %v2688 = vadd.f32 %v2422, %v2687
      %v2689 = vpop.f32.mrb[0].mxu0
      %v2690 = vadd.f32 %v2426, %v2689
      %2691 = vmatprep.mubr.bf16.mxu0 %v2368
      %2692 = vmatmul.mubr.bf16.gmra.mrb[0].mxu0 %v2367
      %v2693 = vpop.f32.mrb[0].mxu0
      %v2694 = vadd.f32 %v2422, %v2693
      %v2695 = vpop.f32.mrb[0].mxu0
      %v2696 = vadd.f32 %v2426, %v2695
      %v2697 = vpop.f32.mrb[0].mxu0
      %v2698 = vadd.f32 %v2422, %v2697
      %v2699 = vpop.f32.mrb[0].mxu0
      %v2700 = vadd.f32 %v2426, %v2699
      %2701 = vmatprep.mubr.bf16.mxu0 %v2370
      %2702 = vmatmul.mubr.bf16.gmra.mrb[0].mxu0 %v2369
      %v2703 = vpop.f32.mrb[0].mxu0
      %v2704 = vadd.f32 %v2422, %v2703
      %v2705 = vpop.f32.mrb[0].mxu0
      %v2706 = vadd.f32 %v2426, %v2705
      %v2707 = vpop.f32.mrb[0].mxu0
      %v2708 = vadd.f32 %v2422, %v2707
      %v2709 = vpop.f32.mrb[0].mxu0
      %v2710 = vadd.f32 %v2426, %v2709
      %2711 = vmatprep.mubr.bf16.mxu0 %v2372
      %2712 = vmatmul.mubr.bf16.gmra.mrb[0].mxu0 %v2371
      %v2713 = vpop.f32.mrb[0].mxu0
      %v2714 = vadd.f32 %v2422, %v2713
      %v2715 = vpop.f32.mrb[0].mxu0
      %v2716 = vadd.f32 %v2426, %v2715
      %v2717 = vpop.f32.mrb[0].mxu0
      %v2718 = vadd.f32 %v2422, %v2717
      %v2719 = vpop.f32.mrb[0].mxu0
      %v2720 = vadd.f32 %v2426, %v2719
      %2721 = vmatprep.mubr.bf16.mxu0 %v2374
      %2722 = vmatmul.mubr.bf16.gmra.mrb[0].mxu0 %v2373
      %v2723 = vpop.f32.mrb[0].mxu0
      %v2724 = vadd.f32 %v2422, %v2723
      %v2725 = vpop.f32.mrb[0].mxu0
      %v2726 = vadd.f32 %v2426, %v2725
      %v2727 = vpop.f32.mrb[0].mxu0
      %v2728 = vadd.f32 %v2422, %v2727
      %v2729 = vpop.f32.mrb[0].mxu0
      %v2730 = vadd.f32 %v2426, %v2729
      %2731 = vmatprep.mubr.bf16.mxu0 %v2376
      %2732 = vmatmul.mubr.bf16.gmra.mrb[0].mxu0 %v2375
      %v2733 = vpop.f32.mrb[0].mxu0
      %v2734 = vadd.f32 %v2422, %v2733
      %v2735 = vpop.f32.mrb[0].mxu0
      %v2736 = vadd.f32 %v2426, %v2735
      %v2737 = vpop.f32.mrb[0].mxu0
      %v2738 = vadd.f32 %v2422, %v2737
      %v2739 = vpop.f32.mrb[0].mxu0
      %v2740 = vadd.f32 %v2426, %v2739
      %2741 = vmatprep.mubr.bf16.mxu0 %v2378
      %2742 = vmatmul.mubr.bf16.gmra.mrb[0].mxu0 %v2377
      %v2743 = vpop.f32.mrb[0].mxu0
      %v2744 = vadd.f32 %v2422, %v2743
      %v2745 = vpop.f32.mrb[0].mxu0
      %v2746 = vadd.f32 %v2426, %v2745
      %v2747 = vpop.f32.mrb[0].mxu0
      %v2748 = vadd.f32 %v2422, %v2747
      %v2749 = vpop.f32.mrb[0].mxu0
      %v2750 = vadd.f32 %v2426, %v2749
      %2751 = vmatprep.mubr.bf16.mxu0 %v2380
      %2752 = vmatmul.mubr.bf16.gmra.mrb[0].mxu0 %v2379
      %v2753 = vpop.f32.mrb[0].mxu0
      %v2754 = vadd.f32 %v2422, %v2753
      %v2755 = vpop.f32.mrb[0].mxu0
      %v2756 = vadd.f32 %v2426, %v2755
      %v2757 = vpop.f32.mrb[0].mxu0
      %v2758 = vadd.f32 %v2422, %v2757
      %v2759 = vpop.f32.mrb[0].mxu0
      %v2760 = vadd.f32 %v2426, %v2759
      %2761 = vmatprep.mubr.bf16.mxu0 %v2382
      %2762 = vmatmul.mubr.bf16.gmra.mrb[0].mxu0 %v2381
      %v2763 = vpop.f32.mrb[0].mxu0
      %v2764 = vadd.f32 %v2422, %v2763
      %v2765 = vpop.f32.mrb[0].mxu0
      %v2766 = vadd.f32 %v2426, %v2765
      %v2767 = vpop.f32.mrb[0].mxu0
      %v2768 = vadd.f32 %v2422, %v2767
      %v2769 = vpop.f32.mrb[0].mxu0
      %v2770 = vadd.f32 %v2426, %v2769
      %2771 = vmatprep.mubr.bf16.mxu0 %v2384
      %2772 = vmatmul.mubr.bf16.gmra.mrb[0].mxu0 %v2383
      %v2773 = vpop.f32.mrb[0].mxu0
      %v2774 = vadd.f32 %v2422, %v2773
      %v2775 = vpop.f32.mrb[0].mxu0
      %v2776 = vadd.f32 %v2426, %v2775
      %v2777 = vpop.f32.mrb[0].mxu0
      %v2778 = vadd.f32 %v2422, %v2777
      %v2779 = vpop.f32.mrb[0].mxu0
      %v2780 = vadd.f32 %v2426, %v2779
      %2781 = vdwg.mxu0
      %v2782 = vmax.f32 %v2624, 0.0
      %v2783 = vmax.f32 %v2626, 0.0
      %v2784 = vmax.f32 %v2628, 0.0
      %v2785 = vmax.f32 %v2630, 0.0
      %v2786 = vmax.f32 %v2634, 0.0
      %v2787 = vmax.f32 %v2636, 0.0
      %v2788 = vmax.f32 %v2638, 0.0
      %v2789 = vmax.f32 %v2640, 0.0
      %v2790 = vmax.f32 %v2644, 0.0
      %v2791 = vmax.f32 %v2646, 0.0
      %v2792 = vmax.f32 %v2648, 0.0
      %v2793 = vmax.f32 %v2650, 0.0
      %v2794 = vmax.f32 %v2654, 0.0
      %v2795 = vmax.f32 %v2656, 0.0
      %v2796 = vmax.f32 %v2658, 0.0
      %v2797 = vmax.f32 %v2660, 0.0
      %v2798 = vmax.f32 %v2664, 0.0
      %v2799 = vmax.f32 %v2666, 0.0
      %v2800 = vmax.f32 %v2668, 0.0
      %v2801 = vmax.f32 %v2670, 0.0
      %v2802 = vmax.f32 %v2674, 0.0
      %v2803 = vmax.f32 %v2676, 0.0
      %v2804 = vmax.f32 %v2678, 0.0
      %v2805 = vmax.f32 %v2680, 0.0
      %v2806 = vmax.f32 %v2684, 0.0
      %v2807 = vmax.f32 %v2686, 0.0
      %v2808 = vmax.f32 %v2688, 0.0
      %v2809 = vmax.f32 %v2690, 0.0
      %v2810 = vmax.f32 %v2694, 0.0
      %v2811 = vmax.f32 %v2696, 0.0
      %v2812 = vmax.f32 %v2698, 0.0
      %v2813 = vmax.f32 %v2700, 0.0
      %v2814 = vmax.f32 %v2704, 0.0
      %v2815 = vmax.f32 %v2706, 0.0
      %v2816 = vmax.f32 %v2708, 0.0
      %v2817 = vmax.f32 %v2710, 0.0
      %v2818 = vmax.f32 %v2714, 0.0
      %v2819 = vmax.f32 %v2716, 0.0
      %v2820 = vmax.f32 %v2718, 0.0
      %v2821 = vmax.f32 %v2720, 0.0
      %v2822 = vmax.f32 %v2724, 0.0
      %v2823 = vmax.f32 %v2726, 0.0
      %v2824 = vmax.f32 %v2728, 0.0
      %v2825 = vmax.f32 %v2730, 0.0
      %v2826 = vmax.f32 %v2734, 0.0
      %v2827 = vmax.f32 %v2736, 0.0
      %v2828 = vmax.f32 %v2738, 0.0
      %v2829 = vmax.f32 %v2740, 0.0
      %v2830 = vmax.f32 %v2744, 0.0
      %v2831 = vmax.f32 %v2746, 0.0
      %v2832 = vmax.f32 %v2748, 0.0
      %v2833 = vmax.f32 %v2750, 0.0
      %v2834 = vmax.f32 %v2754, 0.0
      %v2835 = vmax.f32 %v2756, 0.0
      %v2836 = vmax.f32 %v2758, 0.0
      %v2837 = vmax.f32 %v2760, 0.0
      %v2838 = vmax.f32 %v2764, 0.0
      %v2839 = vmax.f32 %v2766, 0.0
      %v2840 = vmax.f32 %v2768, 0.0
      %v2841 = vmax.f32 %v2770, 0.0
      %v2842 = vmax.f32 %v2774, 0.0
      %v2843 = vmax.f32 %v2776, 0.0
      %v2844 = vmax.f32 %v2778, 0.0
      %v2845 = vmax.f32 %v2780, 0.0
      %v2846 = vadd.f32 %v2289, %v2782
      %v2847 = vadd.f32 %v2321, %v2783
      %v2848 = vadd.f32 %v2290, %v2784
      %v2849 = vadd.f32 %v2322, %v2785
      %v2850 = vadd.f32 %v2291, %v2786
      %v2851 = vadd.f32 %v2323, %v2787
      %v2852 = vadd.f32 %v2292, %v2788
      %v2853 = vadd.f32 %v2324, %v2789
      %v2854 = vadd.f32 %v2293, %v2790
      %v2855 = vadd.f32 %v2325, %v2791
      %v2856 = vadd.f32 %v2294, %v2792
      %v2857 = vadd.f32 %v2326, %v2793
      %v2858 = vadd.f32 %v2295, %v2794
      %v2859 = vadd.f32 %v2327, %v2795
      %v2860 = vadd.f32 %v2296, %v2796
      %v2861 = vadd.f32 %v2328, %v2797
      %v2862 = vadd.f32 %v2297, %v2798
      %v2863 = vadd.f32 %v2329, %v2799
      %v2864 = vadd.f32 %v2298, %v2800
      %v2865 = vadd.f32 %v2330, %v2801
      %v2866 = vadd.f32 %v2299, %v2802
      %v2867 = vadd.f32 %v2331, %v2803
      %v2868 = vadd.f32 %v2300, %v2804
      %v2869 = vadd.f32 %v2332, %v2805
      %v2870 = vadd.f32 %v2301, %v2806
      %v2871 = vadd.f32 %v2333, %v2807
      %v2872 = vadd.f32 %v2302, %v2808
      %v2873 = vadd.f32 %v2334, %v2809
      %v2874 = vadd.f32 %v2303, %v2810
      %v2875 = vadd.f32 %v2335, %v2811
      %v2876 = vadd.f32 %v2304, %v2812
      %v2877 = vadd.f32 %v2336, %v2813
      %v2878 = vadd.f32 %v2305, %v2814
      %v2879 = vadd.f32 %v2337, %v2815
      %v2880 = vadd.f32 %v2306, %v2816
      %v2881 = vadd.f32 %v2338, %v2817
      %v2882 = vadd.f32 %v2307, %v2818
      %v2883 = vadd.f32 %v2339, %v2819
      %v2884 = vadd.f32 %v2308, %v2820
      %v2885 = vadd.f32 %v2340, %v2821
      %v2886 = vadd.f32 %v2309, %v2822
      %v2887 = vadd.f32 %v2341, %v2823
      %v2888 = vadd.f32 %v2310, %v2824
      %v2889 = vadd.f32 %v2342, %v2825
      %v2890 = vadd.f32 %v2311, %v2826
      %v2891 = vadd.f32 %v2343, %v2827
      %v2892 = vadd.f32 %v2312, %v2828
      %v2893 = vadd.f32 %v2344, %v2829
      %v2894 = vadd.f32 %v2313, %v2830
      %v2895 = vadd.f32 %v2345, %v2831
      %v2896 = vadd.f32 %v2314, %v2832
      %v2897 = vadd.f32 %v2346, %v2833
      %v2898 = vadd.f32 %v2315, %v2834
      %v2899 = vadd.f32 %v2347, %v2835
      %v2900 = vadd.f32 %v2316, %v2836
      %v2901 = vadd.f32 %v2348, %v2837
      %v2902 = vadd.f32 %v2317, %v2838
      %v2903 = vadd.f32 %v2349, %v2839
      %v2904 = vadd.f32 %v2318, %v2840
      %v2905 = vadd.f32 %v2350, %v2841
      %v2906 = vadd.f32 %v2319, %v2842
      %v2907 = vadd.f32 %v2351, %v2843
      %v2908 = vadd.f32 %v2320, %v2844
      %v2909 = vadd.f32 %v2352, %v2845
      %v2910 = vpack.c.bf16 %v2848, %v2846
      %v2911 = vpack.c.bf16 %v2849, %v2847
      %v2912 = vpack.c.bf16 %v2852, %v2850
      %v2913 = vpack.c.bf16 %v2853, %v2851
      %v2914 = vpack.c.bf16 %v2856, %v2854
      %v2915 = vpack.c.bf16 %v2857, %v2855
      %v2916 = vpack.c.bf16 %v2860, %v2858
      %v2917 = vpack.c.bf16 %v2861, %v2859
      %v2918 = vpack.c.bf16 %v2864, %v2862
      %v2919 = vpack.c.bf16 %v2865, %v2863
      %v2920 = vpack.c.bf16 %v2868, %v2866
      %v2921 = vpack.c.bf16 %v2869, %v2867
      %v2922 = vpack.c.bf16 %v2872, %v2870
      %v2923 = vpack.c.bf16 %v2873, %v2871
      %v2924 = vpack.c.bf16 %v2876, %v2874
      %v2925 = vpack.c.bf16 %v2877, %v2875
      %v2926 = vpack.c.bf16 %v2880, %v2878
      %v2927 = vpack.c.bf16 %v2881, %v2879
      %v2928 = vpack.c.bf16 %v2884, %v2882
      %v2929 = vpack.c.bf16 %v2885, %v2883
      %v2930 = vpack.c.bf16 %v2888, %v2886
      %v2931 = vpack.c.bf16 %v2889, %v2887
      %v2932 = vpack.c.bf16 %v2892, %v2890
      %v2933 = vpack.c.bf16 %v2893, %v2891
      %v2934 = vpack.c.bf16 %v2896, %v2894
      %v2935 = vpack.c.bf16 %v2897, %v2895
      %v2936 = vpack.c.bf16 %v2900, %v2898
      %v2937 = vpack.c.bf16 %v2901, %v2899
      %v2938 = vpack.c.bf16 %v2904, %v2902
      %v2939 = vpack.c.bf16 %v2905, %v2903
      %v2940 = vpack.c.bf16 %v2908, %v2906
      %v2941 = vpack.c.bf16 %v2909, %v2907
      %s2942 = scalar_lea.vmem %s4, 256
      %v2943 = vld [vmem:[%s2942] sm:$0xff]
      %v2944 = vld [vmem:[%s2942 + $0x8] sm:$0xff]
      %v2945 = vld [vmem:[%s2942 + $0x10] sm:$0xff]
      %v2946 = vld [vmem:[%s2942 + $0x18] sm:$0xff]
      %v2947 = vld [vmem:[%s2942 + $0x20] sm:$0xff]
      %v2948 = vld [vmem:[%s2942 + $0x28] sm:$0xff]
      %v2949 = vld [vmem:[%s2942 + $0x30] sm:$0xff]
      %v2950 = vld [vmem:[%s2942 + $0x38] sm:$0xff]
      %v2951 = vld [vmem:[%s2942 + $0x40] sm:$0xff]
      %v2952 = vld [vmem:[%s2942 + $0x48] sm:$0xff]
      %v2953 = vld [vmem:[%s2942 + $0x50] sm:$0xff]
      %v2954 = vld [vmem:[%s2942 + $0x58] sm:$0xff]
      %v2955 = vld [vmem:[%s2942 + $0x60] sm:$0xff]
      %v2956 = vld [vmem:[%s2942 + $0x68] sm:$0xff]
      %v2957 = vld [vmem:[%s2942 + $0x70] sm:$0xff]
      %v2958 = vld [vmem:[%s2942 + $0x78] sm:$0xff]
      %v2959 = vld [vmem:[%s2942 + $0x80] sm:$0xff]
      %v2960 = vld [vmem:[%s2942 + $0x88] sm:$0xff]
      %v2961 = vld [vmem:[%s2942 + $0x90] sm:$0xff]
      %v2962 = vld [vmem:[%s2942 + $0x98] sm:$0xff]
      %v2963 = vld [vmem:[%s2942 + $0xa0] sm:$0xff]
      %v2964 = vld [vmem:[%s2942 + $0xa8] sm:$0xff]
      %v2965 = vld [vmem:[%s2942 + $0xb0] sm:$0xff]
      %v2966 = vld [vmem:[%s2942 + $0xb8] sm:$0xff]
      %v2967 = vld [vmem:[%s2942 + $0xc0] sm:$0xff]
      %v2968 = vld [vmem:[%s2942 + $0xc8] sm:$0xff]
      %v2969 = vld [vmem:[%s2942 + $0xd0] sm:$0xff]
      %v2970 = vld [vmem:[%s2942 + $0xd8] sm:$0xff]
      %v2971 = vld [vmem:[%s2942 + $0xe0] sm:$0xff]
      %v2972 = vld [vmem:[%s2942 + $0xe8] sm:$0xff]
      %v2973 = vld [vmem:[%s2942 + $0xf0] sm:$0xff]
      %v2974 = vld [vmem:[%s2942 + $0xf8] sm:$0xff]
      %s2975 = scalar_lea.vmem %s5, 2
      %v2976 = vld [vmem:[%s2975] sm:$0x3]
      %v2978 = vlaneseq
      %v2979 = vshrl.u32 %v2978, 7
      %v2980 = vsub.s32 0, %v2979
      %v2981 = vrot.slane %v2976, %v2980
      %v2982 = vlaneseq
      %v2983 = vshrl.u32 %v2982, 7
      %v2984 = vsub.s32 1, %v2983
      %v2985 = vrot.slane %v2976, %v2984
      %v3020 = vunpack.c.l.b16 %v2943
      %v3021 = vunpack.c.h.b16 %v2943
      %v3022 = vunpack.c.l.b16 %v2944
      %v3023 = vunpack.c.h.b16 %v2944
      %v3024 = vunpack.c.l.b16 %v2945
      %v3025 = vunpack.c.h.b16 %v2945
      %v3026 = vunpack.c.l.b16 %v2946
      %v3027 = vunpack.c.h.b16 %v2946
      %v3028 = vunpack.c.l.b16 %v2947
      %v3029 = vunpack.c.h.b16 %v2947
      %v3030 = vunpack.c.l.b16 %v2948
      %v3031 = vunpack.c.h.b16 %v2948
      %v3032 = vunpack.c.l.b16 %v2949
      %v3033 = vunpack.c.h.b16 %v2949
      %v3034 = vunpack.c.l.b16 %v2950
      %v3035 = vunpack.c.h.b16 %v2950
      %v3036 = vunpack.c.l.b16 %v2951
      %v3037 = vunpack.c.h.b16 %v2951
      %v3038 = vunpack.c.l.b16 %v2952
      %v3039 = vunpack.c.h.b16 %v2952
      %v3040 = vunpack.c.l.b16 %v2953
      %v3041 = vunpack.c.h.b16 %v2953
      %v3042 = vunpack.c.l.b16 %v2954
      %v3043 = vunpack.c.h.b16 %v2954
      %v3044 = vunpack.c.l.b16 %v2955
      %v3045 = vunpack.c.h.b16 %v2955
      %v3046 = vunpack.c.l.b16 %v2956
      %v3047 = vunpack.c.h.b16 %v2956
      %v3048 = vunpack.c.l.b16 %v2957
      %v3049 = vunpack.c.h.b16 %v2957
      %v3050 = vunpack.c.l.b16 %v2958
      %v3051 = vunpack.c.h.b16 %v2958
      %v3052 = vunpack.c.l.b16 %v2959
      %v3053 = vunpack.c.h.b16 %v2959
      %v3054 = vunpack.c.l.b16 %v2960
      %v3055 = vunpack.c.h.b16 %v2960
      %v3056 = vunpack.c.l.b16 %v2961
      %v3057 = vunpack.c.h.b16 %v2961
      %v3058 = vunpack.c.l.b16 %v2962
      %v3059 = vunpack.c.h.b16 %v2962
      %v3060 = vunpack.c.l.b16 %v2963
      %v3061 = vunpack.c.h.b16 %v2963
      %v3062 = vunpack.c.l.b16 %v2964
      %v3063 = vunpack.c.h.b16 %v2964
      %v3064 = vunpack.c.l.b16 %v2965
      %v3065 = vunpack.c.h.b16 %v2965
      %v3066 = vunpack.c.l.b16 %v2966
      %v3067 = vunpack.c.h.b16 %v2966
      %v3068 = vunpack.c.l.b16 %v2967
      %v3069 = vunpack.c.h.b16 %v2967
      %v3070 = vunpack.c.l.b16 %v2968
      %v3071 = vunpack.c.h.b16 %v2968
      %v3072 = vunpack.c.l.b16 %v2969
      %v3073 = vunpack.c.h.b16 %v2969
      %v3074 = vunpack.c.l.b16 %v2970
      %v3075 = vunpack.c.h.b16 %v2970
      %v3076 = vunpack.c.l.b16 %v2971
      %v3077 = vunpack.c.h.b16 %v2971
      %v3078 = vunpack.c.l.b16 %v2972
      %v3079 = vunpack.c.h.b16 %v2972
      %v3080 = vunpack.c.l.b16 %v2973
      %v3081 = vunpack.c.h.b16 %v2973
      %v3082 = vunpack.c.l.b16 %v2974
      %v3083 = vunpack.c.h.b16 %v2974
      %v3084 = vpack.c.b16 %v3022, %v3020
      %v3085 = vpack.c.b16 %v3023, %v3021
      %v3086 = vpack.c.b16 %v3026, %v3024
      %v3087 = vpack.c.b16 %v3027, %v3025
      %v3088 = vpack.c.b16 %v3030, %v3028
      %v3089 = vpack.c.b16 %v3031, %v3029
      %v3090 = vpack.c.b16 %v3034, %v3032
      %v3091 = vpack.c.b16 %v3035, %v3033
      %v3092 = vpack.c.b16 %v3038, %v3036
      %v3093 = vpack.c.b16 %v3039, %v3037
      %v3094 = vpack.c.b16 %v3042, %v3040
      %v3095 = vpack.c.b16 %v3043, %v3041
      %v3096 = vpack.c.b16 %v3046, %v3044
      %v3097 = vpack.c.b16 %v3047, %v3045
      %v3098 = vpack.c.b16 %v3050, %v3048
      %v3099 = vpack.c.b16 %v3051, %v3049
      %v3100 = vpack.c.b16 %v3054, %v3052
      %v3101 = vpack.c.b16 %v3055, %v3053
      %v3102 = vpack.c.b16 %v3058, %v3056
      %v3103 = vpack.c.b16 %v3059, %v3057
      %v3104 = vpack.c.b16 %v3062, %v3060
      %v3105 = vpack.c.b16 %v3063, %v3061
      %v3106 = vpack.c.b16 %v3066, %v3064
      %v3107 = vpack.c.b16 %v3067, %v3065
      %v3108 = vpack.c.b16 %v3070, %v3068
      %v3109 = vpack.c.b16 %v3071, %v3069
      %v3110 = vpack.c.b16 %v3074, %v3072
      %v3111 = vpack.c.b16 %v3075, %v3073
      %v3112 = vpack.c.b16 %v3078, %v3076
      %v3113 = vpack.c.b16 %v3079, %v3077
      %v3114 = vpack.c.b16 %v3082, %v3080
      %v3115 = vpack.c.b16 %v3083, %v3081
      %3148 = vmatprep.subr.bf16.mxu0 %v3085
      %3149 = vmatpush1.bf16.msra.mxu0 %v3084
      %3150 = vmatprep.subr.bf16.mxu0 %v3087
      %3151 = vmatpush1.bf16.msra.mxu0 %v3086
      %3152 = vmatprep.subr.bf16.mxu0 %v3089
      %3153 = vmatpush1.bf16.msra.mxu0 %v3088
      %3154 = vmatprep.subr.bf16.mxu0 %v3091
      %3155 = vmatpush1.bf16.msra.mxu0 %v3090
      %3156 = vmatprep.subr.bf16.mxu0 %v3093
      %3157 = vmatpush1.bf16.msra.mxu0 %v3092
      %3158 = vmatprep.subr.bf16.mxu0 %v3095
      %3159 = vmatpush1.bf16.msra.mxu0 %v3094
      %3160 = vmatprep.subr.bf16.mxu0 %v3097
      %3161 = vmatpush1.bf16.msra.mxu0 %v3096
      %3162 = vmatprep.subr.bf16.mxu0 %v3099
      %3163 = vmatpush1.bf16.msra.mxu0 %v3098
      %3164 = vmatprep.subr.bf16.mxu0 %v3101
      %3165 = vmatpush1.bf16.msra.mxu0 %v3100
      %3166 = vmatprep.subr.bf16.mxu0 %v3103
      %3167 = vmatpush1.bf16.msra.mxu0 %v3102
      %3168 = vmatprep.subr.bf16.mxu0 %v3105
      %3169 = vmatpush1.bf16.msra.mxu0 %v3104
      %3170 = vmatprep.subr.bf16.mxu0 %v3107
      %3171 = vmatpush1.bf16.msra.mxu0 %v3106
      %3172 = vmatprep.subr.bf16.mxu0 %v3109
      %3173 = vmatpush1.bf16.msra.mxu0 %v3108
      %3174 = vmatprep.subr.bf16.mxu0 %v3111
      %3175 = vmatpush1.bf16.msra.mxu0 %v3110
      %3176 = vmatprep.subr.bf16.mxu0 %v3113
      %3177 = vmatpush1.bf16.msra.mxu0 %v3112
      %3178 = vmatprep.subr.bf16.mxu0 %v3115
      %3179 = vmatpush1.bf16.msra.mxu0 %v3114
      %3180 = vmatprep.mubr.bf16.mxu0 %v2911
      %3181 = vmatmul.mubr.bf16.gmra.mrb[0].mxu0 %v2910
      %v3182 = vpop.f32.mrb[0].mxu0
      %v3183 = vadd.f32 %v2981, %v3182
      %v3184 = vpop.f32.mrb[0].mxu0
      %v3185 = vadd.f32 %v2985, %v3184
      %v3186 = vpop.f32.mrb[0].mxu0
      %v3187 = vadd.f32 %v2981, %v3186
      %v3188 = vpop.f32.mrb[0].mxu0
      %v3189 = vadd.f32 %v2985, %v3188
      %3190 = vmatprep.mubr.bf16.mxu0 %v2913
      %3191 = vmatmul.mubr.bf16.gmra.mrb[0].mxu0 %v2912
      %v3192 = vpop.f32.mrb[0].mxu0
      %v3193 = vadd.f32 %v2981, %v3192
      %v3194 = vpop.f32.mrb[0].mxu0
      %v3195 = vadd.f32 %v2985, %v3194
      %v3196 = vpop.f32.mrb[0].mxu0
      %v3197 = vadd.f32 %v2981, %v3196
      %v3198 = vpop.f32.mrb[0].mxu0
      %v3199 = vadd.f32 %v2985, %v3198
      %3200 = vmatprep.mubr.bf16.mxu0 %v2915
      %3201 = vmatmul.mubr.bf16.gmra.mrb[0].mxu0 %v2914
      %v3202 = vpop.f32.mrb[0].mxu0
      %v3203 = vadd.f32 %v2981, %v3202
      %v3204 = vpop.f32.mrb[0].mxu0
      %v3205 = vadd.f32 %v2985, %v3204
      %v3206 = vpop.f32.mrb[0].mxu0
      %v3207 = vadd.f32 %v2981, %v3206
      %v3208 = vpop.f32.mrb[0].mxu0
      %v3209 = vadd.f32 %v2985, %v3208
      %3210 = vmatprep.mubr.bf16.mxu0 %v2917
      %3211 = vmatmul.mubr.bf16.gmra.mrb[0].mxu0 %v2916
      %v3212 = vpop.f32.mrb[0].mxu0
      %v3213 = vadd.f32 %v2981, %v3212
      %v3214 = vpop.f32.mrb[0].mxu0
      %v3215 = vadd.f32 %v2985, %v3214
      %v3216 = vpop.f32.mrb[0].mxu0
      %v3217 = vadd.f32 %v2981, %v3216
      %v3218 = vpop.f32.mrb[0].mxu0
      %v3219 = vadd.f32 %v2985, %v3218
      %3220 = vmatprep.mubr.bf16.mxu0 %v2919
      %3221 = vmatmul.mubr.bf16.gmra.mrb[0].mxu0 %v2918
      %v3222 = vpop.f32.mrb[0].mxu0
      %v3223 = vadd.f32 %v2981, %v3222
      %v3224 = vpop.f32.mrb[0].mxu0
      %v3225 = vadd.f32 %v2985, %v3224
      %v3226 = vpop.f32.mrb[0].mxu0
      %v3227 = vadd.f32 %v2981, %v3226
      %v3228 = vpop.f32.mrb[0].mxu0
      %v3229 = vadd.f32 %v2985, %v3228
      %3230 = vmatprep.mubr.bf16.mxu0 %v2921
      %3231 = vmatmul.mubr.bf16.gmra.mrb[0].mxu0 %v2920
      %v3232 = vpop.f32.mrb[0].mxu0
      %v3233 = vadd.f32 %v2981, %v3232
      %v3234 = vpop.f32.mrb[0].mxu0
      %v3235 = vadd.f32 %v2985, %v3234
      %v3236 = vpop.f32.mrb[0].mxu0
      %v3237 = vadd.f32 %v2981, %v3236
      %v3238 = vpop.f32.mrb[0].mxu0
      %v3239 = vadd.f32 %v2985, %v3238
      %3240 = vmatprep.mubr.bf16.mxu0 %v2923
      %3241 = vmatmul.mubr.bf16.gmra.mrb[0].mxu0 %v2922
      %v3242 = vpop.f32.mrb[0].mxu0
      %v3243 = vadd.f32 %v2981, %v3242
      %v3244 = vpop.f32.mrb[0].mxu0
      %v3245 = vadd.f32 %v2985, %v3244
      %v3246 = vpop.f32.mrb[0].mxu0
      %v3247 = vadd.f32 %v2981, %v3246
      %v3248 = vpop.f32.mrb[0].mxu0
      %v3249 = vadd.f32 %v2985, %v3248
      %3250 = vmatprep.mubr.bf16.mxu0 %v2925
      %3251 = vmatmul.mubr.bf16.gmra.mrb[0].mxu0 %v2924
      %v3252 = vpop.f32.mrb[0].mxu0
      %v3253 = vadd.f32 %v2981, %v3252
      %v3254 = vpop.f32.mrb[0].mxu0
      %v3255 = vadd.f32 %v2985, %v3254
      %v3256 = vpop.f32.mrb[0].mxu0
      %v3257 = vadd.f32 %v2981, %v3256
      %v3258 = vpop.f32.mrb[0].mxu0
      %v3259 = vadd.f32 %v2985, %v3258
      %3260 = vmatprep.mubr.bf16.mxu0 %v2927
      %3261 = vmatmul.mubr.bf16.gmra.mrb[0].mxu0 %v2926
      %v3262 = vpop.f32.mrb[0].mxu0
      %v3263 = vadd.f32 %v2981, %v3262
      %v3264 = vpop.f32.mrb[0].mxu0
      %v3265 = vadd.f32 %v2985, %v3264
      %v3266 = vpop.f32.mrb[0].mxu0
      %v3267 = vadd.f32 %v2981, %v3266
      %v3268 = vpop.f32.mrb[0].mxu0
      %v3269 = vadd.f32 %v2985, %v3268
      %3270 = vmatprep.mubr.bf16.mxu0 %v2929
      %3271 = vmatmul.mubr.bf16.gmra.mrb[0].mxu0 %v2928
      %v3272 = vpop.f32.mrb[0].mxu0
      %v3273 = vadd.f32 %v2981, %v3272
      %v3274 = vpop.f32.mrb[0].mxu0
      %v3275 = vadd.f32 %v2985, %v3274
      %v3276 = vpop.f32.mrb[0].mxu0
      %v3277 = vadd.f32 %v2981, %v3276
      %v3278 = vpop.f32.mrb[0].mxu0
      %v3279 = vadd.f32 %v2985, %v3278
      %3280 = vmatprep.mubr.bf16.mxu0 %v2931
      %3281 = vmatmul.mubr.bf16.gmra.mrb[0].mxu0 %v2930
      %v3282 = vpop.f32.mrb[0].mxu0
      %v3283 = vadd.f32 %v2981, %v3282
      %v3284 = vpop.f32.mrb[0].mxu0
      %v3285 = vadd.f32 %v2985, %v3284
      %v3286 = vpop.f32.mrb[0].mxu0
      %v3287 = vadd.f32 %v2981, %v3286
      %v3288 = vpop.f32.mrb[0].mxu0
      %v3289 = vadd.f32 %v2985, %v3288
      %3290 = vmatprep.mubr.bf16.mxu0 %v2933
      %3291 = vmatmul.mubr.bf16.gmra.mrb[0].mxu0 %v2932
      %v3292 = vpop.f32.mrb[0].mxu0
      %v3293 = vadd.f32 %v2981, %v3292
      %v3294 = vpop.f32.mrb[0].mxu0
      %v3295 = vadd.f32 %v2985, %v3294
      %v3296 = vpop.f32.mrb[0].mxu0
      %v3297 = vadd.f32 %v2981, %v3296
      %v3298 = vpop.f32.mrb[0].mxu0
      %v3299 = vadd.f32 %v2985, %v3298
      %3300 = vmatprep.mubr.bf16.mxu0 %v2935
      %3301 = vmatmul.mubr.bf16.gmra.mrb[0].mxu0 %v2934
      %v3302 = vpop.f32.mrb[0].mxu0
      %v3303 = vadd.f32 %v2981, %v3302
      %v3304 = vpop.f32.mrb[0].mxu0
      %v3305 = vadd.f32 %v2985, %v3304
      %v3306 = vpop.f32.mrb[0].mxu0
      %v3307 = vadd.f32 %v2981, %v3306
      %v3308 = vpop.f32.mrb[0].mxu0
      %v3309 = vadd.f32 %v2985, %v3308
      %3310 = vmatprep.mubr.bf16.mxu0 %v2937
      %3311 = vmatmul.mubr.bf16.gmra.mrb[0].mxu0 %v2936
      %v3312 = vpop.f32.mrb[0].mxu0
      %v3313 = vadd.f32 %v2981, %v3312
      %v3314 = vpop.f32.mrb[0].mxu0
      %v3315 = vadd.f32 %v2985, %v3314
      %v3316 = vpop.f32.mrb[0].mxu0
      %v3317 = vadd.f32 %v2981, %v3316
      %v3318 = vpop.f32.mrb[0].mxu0
      %v3319 = vadd.f32 %v2985, %v3318
      %3320 = vmatprep.mubr.bf16.mxu0 %v2939
      %3321 = vmatmul.mubr.bf16.gmra.mrb[0].mxu0 %v2938
      %v3322 = vpop.f32.mrb[0].mxu0
      %v3323 = vadd.f32 %v2981, %v3322
      %v3324 = vpop.f32.mrb[0].mxu0
      %v3325 = vadd.f32 %v2985, %v3324
      %v3326 = vpop.f32.mrb[0].mxu0
      %v3327 = vadd.f32 %v2981, %v3326
      %v3328 = vpop.f32.mrb[0].mxu0
      %v3329 = vadd.f32 %v2985, %v3328
      %3330 = vmatprep.mubr.bf16.mxu0 %v2941
      %3331 = vmatmul.mubr.bf16.gmra.mrb[0].mxu0 %v2940
      %v3332 = vpop.f32.mrb[0].mxu0
      %v3333 = vadd.f32 %v2981, %v3332
      %v3334 = vpop.f32.mrb[0].mxu0
      %v3335 = vadd.f32 %v2985, %v3334
      %v3336 = vpop.f32.mrb[0].mxu0
      %v3337 = vadd.f32 %v2981, %v3336
      %v3338 = vpop.f32.mrb[0].mxu0
      %v3339 = vadd.f32 %v2985, %v3338
      %3340 = vdwg.mxu0
      %v3341 = vmax.f32 %v3183, 0.0
      %v3342 = vmax.f32 %v3185, 0.0
      %v3343 = vmax.f32 %v3187, 0.0
      %v3344 = vmax.f32 %v3189, 0.0
      %v3345 = vmax.f32 %v3193, 0.0
      %v3346 = vmax.f32 %v3195, 0.0
      %v3347 = vmax.f32 %v3197, 0.0
      %v3348 = vmax.f32 %v3199, 0.0
      %v3349 = vmax.f32 %v3203, 0.0
      %v3350 = vmax.f32 %v3205, 0.0
      %v3351 = vmax.f32 %v3207, 0.0
      %v3352 = vmax.f32 %v3209, 0.0
      %v3353 = vmax.f32 %v3213, 0.0
      %v3354 = vmax.f32 %v3215, 0.0
      %v3355 = vmax.f32 %v3217, 0.0
      %v3356 = vmax.f32 %v3219, 0.0
      %v3357 = vmax.f32 %v3223, 0.0
      %v3358 = vmax.f32 %v3225, 0.0
      %v3359 = vmax.f32 %v3227, 0.0
      %v3360 = vmax.f32 %v3229, 0.0
      %v3361 = vmax.f32 %v3233, 0.0
      %v3362 = vmax.f32 %v3235, 0.0
      %v3363 = vmax.f32 %v3237, 0.0
      %v3364 = vmax.f32 %v3239, 0.0
      %v3365 = vmax.f32 %v3243, 0.0
      %v3366 = vmax.f32 %v3245, 0.0
      %v3367 = vmax.f32 %v3247, 0.0
      %v3368 = vmax.f32 %v3249, 0.0
      %v3369 = vmax.f32 %v3253, 0.0
      %v3370 = vmax.f32 %v3255, 0.0
      %v3371 = vmax.f32 %v3257, 0.0
      %v3372 = vmax.f32 %v3259, 0.0
      %v3373 = vmax.f32 %v3263, 0.0
      %v3374 = vmax.f32 %v3265, 0.0
      %v3375 = vmax.f32 %v3267, 0.0
      %v3376 = vmax.f32 %v3269, 0.0
      %v3377 = vmax.f32 %v3273, 0.0
      %v3378 = vmax.f32 %v3275, 0.0
      %v3379 = vmax.f32 %v3277, 0.0
      %v3380 = vmax.f32 %v3279, 0.0
      %v3381 = vmax.f32 %v3283, 0.0
      %v3382 = vmax.f32 %v3285, 0.0
      %v3383 = vmax.f32 %v3287, 0.0
      %v3384 = vmax.f32 %v3289, 0.0
      %v3385 = vmax.f32 %v3293, 0.0
      %v3386 = vmax.f32 %v3295, 0.0
      %v3387 = vmax.f32 %v3297, 0.0
      %v3388 = vmax.f32 %v3299, 0.0
      %v3389 = vmax.f32 %v3303, 0.0
      %v3390 = vmax.f32 %v3305, 0.0
      %v3391 = vmax.f32 %v3307, 0.0
      %v3392 = vmax.f32 %v3309, 0.0
      %v3393 = vmax.f32 %v3313, 0.0
      %v3394 = vmax.f32 %v3315, 0.0
      %v3395 = vmax.f32 %v3317, 0.0
      %v3396 = vmax.f32 %v3319, 0.0
      %v3397 = vmax.f32 %v3323, 0.0
      %v3398 = vmax.f32 %v3325, 0.0
      %v3399 = vmax.f32 %v3327, 0.0
      %v3400 = vmax.f32 %v3329, 0.0
      %v3401 = vmax.f32 %v3333, 0.0
      %v3402 = vmax.f32 %v3335, 0.0
      %v3403 = vmax.f32 %v3337, 0.0
      %v3404 = vmax.f32 %v3339, 0.0
      %v3405 = vadd.f32 %v2846, %v3341
      %v3406 = vadd.f32 %v2847, %v3342
      %v3407 = vadd.f32 %v2848, %v3343
      %v3408 = vadd.f32 %v2849, %v3344
      %v3409 = vadd.f32 %v2850, %v3345
      %v3410 = vadd.f32 %v2851, %v3346
      %v3411 = vadd.f32 %v2852, %v3347
      %v3412 = vadd.f32 %v2853, %v3348
      %v3413 = vadd.f32 %v2854, %v3349
      %v3414 = vadd.f32 %v2855, %v3350
      %v3415 = vadd.f32 %v2856, %v3351
      %v3416 = vadd.f32 %v2857, %v3352
      %v3417 = vadd.f32 %v2858, %v3353
      %v3418 = vadd.f32 %v2859, %v3354
      %v3419 = vadd.f32 %v2860, %v3355
      %v3420 = vadd.f32 %v2861, %v3356
      %v3421 = vadd.f32 %v2862, %v3357
      %v3422 = vadd.f32 %v2863, %v3358
      %v3423 = vadd.f32 %v2864, %v3359
      %v3424 = vadd.f32 %v2865, %v3360
      %v3425 = vadd.f32 %v2866, %v3361
      %v3426 = vadd.f32 %v2867, %v3362
      %v3427 = vadd.f32 %v2868, %v3363
      %v3428 = vadd.f32 %v2869, %v3364
      %v3429 = vadd.f32 %v2870, %v3365
      %v3430 = vadd.f32 %v2871, %v3366
      %v3431 = vadd.f32 %v2872, %v3367
      %v3432 = vadd.f32 %v2873, %v3368
      %v3433 = vadd.f32 %v2874, %v3369
      %v3434 = vadd.f32 %v2875, %v3370
      %v3435 = vadd.f32 %v2876, %v3371
      %v3436 = vadd.f32 %v2877, %v3372
      %v3437 = vadd.f32 %v2878, %v3373
      %v3438 = vadd.f32 %v2879, %v3374
      %v3439 = vadd.f32 %v2880, %v3375
      %v3440 = vadd.f32 %v2881, %v3376
      %v3441 = vadd.f32 %v2882, %v3377
      %v3442 = vadd.f32 %v2883, %v3378
      %v3443 = vadd.f32 %v2884, %v3379
      %v3444 = vadd.f32 %v2885, %v3380
      %v3445 = vadd.f32 %v2886, %v3381
      %v3446 = vadd.f32 %v2887, %v3382
      %v3447 = vadd.f32 %v2888, %v3383
      %v3448 = vadd.f32 %v2889, %v3384
      %v3449 = vadd.f32 %v2890, %v3385
      %v3450 = vadd.f32 %v2891, %v3386
      %v3451 = vadd.f32 %v2892, %v3387
      %v3452 = vadd.f32 %v2893, %v3388
      %v3453 = vadd.f32 %v2894, %v3389
      %v3454 = vadd.f32 %v2895, %v3390
      %v3455 = vadd.f32 %v2896, %v3391
      %v3456 = vadd.f32 %v2897, %v3392
      %v3457 = vadd.f32 %v2898, %v3393
      %v3458 = vadd.f32 %v2899, %v3394
      %v3459 = vadd.f32 %v2900, %v3395
      %v3460 = vadd.f32 %v2901, %v3396
      %v3461 = vadd.f32 %v2902, %v3397
      %v3462 = vadd.f32 %v2903, %v3398
      %v3463 = vadd.f32 %v2904, %v3399
      %v3464 = vadd.f32 %v2905, %v3400
      %v3465 = vadd.f32 %v2906, %v3401
      %v3466 = vadd.f32 %v2907, %v3402
      %v3467 = vadd.f32 %v2908, %v3403
      %v3468 = vadd.f32 %v2909, %v3404
      %v3469 = vpack.c.bf16 %v3407, %v3405
      %v3470 = vpack.c.bf16 %v3408, %v3406
      %v3471 = vpack.c.bf16 %v3411, %v3409
      %v3472 = vpack.c.bf16 %v3412, %v3410
      %v3473 = vpack.c.bf16 %v3415, %v3413
      %v3474 = vpack.c.bf16 %v3416, %v3414
      %v3475 = vpack.c.bf16 %v3419, %v3417
      %v3476 = vpack.c.bf16 %v3420, %v3418
      %v3477 = vpack.c.bf16 %v3423, %v3421
      %v3478 = vpack.c.bf16 %v3424, %v3422
      %v3479 = vpack.c.bf16 %v3427, %v3425
      %v3480 = vpack.c.bf16 %v3428, %v3426
      %v3481 = vpack.c.bf16 %v3431, %v3429
      %v3482 = vpack.c.bf16 %v3432, %v3430
      %v3483 = vpack.c.bf16 %v3435, %v3433
      %v3484 = vpack.c.bf16 %v3436, %v3434
      %v3485 = vpack.c.bf16 %v3439, %v3437
      %v3486 = vpack.c.bf16 %v3440, %v3438
      %v3487 = vpack.c.bf16 %v3443, %v3441
      %v3488 = vpack.c.bf16 %v3444, %v3442
      %v3489 = vpack.c.bf16 %v3447, %v3445
      %v3490 = vpack.c.bf16 %v3448, %v3446
      %v3491 = vpack.c.bf16 %v3451, %v3449
      %v3492 = vpack.c.bf16 %v3452, %v3450
      %v3493 = vpack.c.bf16 %v3455, %v3453
      %v3494 = vpack.c.bf16 %v3456, %v3454
      %v3495 = vpack.c.bf16 %v3459, %v3457
      %v3496 = vpack.c.bf16 %v3460, %v3458
      %v3497 = vpack.c.bf16 %v3463, %v3461
      %v3498 = vpack.c.bf16 %v3464, %v3462
      %v3499 = vpack.c.bf16 %v3467, %v3465
      %v3500 = vpack.c.bf16 %v3468, %v3466
      %s3501 = scalar_lea.vmem %s4, 512
      %v3502 = vld [vmem:[%s3501] sm:$0xff]
      %v3503 = vld [vmem:[%s3501 + $0x8] sm:$0xff]
      %v3504 = vld [vmem:[%s3501 + $0x10] sm:$0xff]
      %v3505 = vld [vmem:[%s3501 + $0x18] sm:$0xff]
      %v3506 = vld [vmem:[%s3501 + $0x20] sm:$0xff]
      %v3507 = vld [vmem:[%s3501 + $0x28] sm:$0xff]
      %v3508 = vld [vmem:[%s3501 + $0x30] sm:$0xff]
      %v3509 = vld [vmem:[%s3501 + $0x38] sm:$0xff]
      %v3510 = vld [vmem:[%s3501 + $0x40] sm:$0xff]
      %v3511 = vld [vmem:[%s3501 + $0x48] sm:$0xff]
      %v3512 = vld [vmem:[%s3501 + $0x50] sm:$0xff]
      %v3513 = vld [vmem:[%s3501 + $0x58] sm:$0xff]
      %v3514 = vld [vmem:[%s3501 + $0x60] sm:$0xff]
      %v3515 = vld [vmem:[%s3501 + $0x68] sm:$0xff]
      %v3516 = vld [vmem:[%s3501 + $0x70] sm:$0xff]
      %v3517 = vld [vmem:[%s3501 + $0x78] sm:$0xff]
      %v3518 = vld [vmem:[%s3501 + $0x80] sm:$0xff]
      %v3519 = vld [vmem:[%s3501 + $0x88] sm:$0xff]
      %v3520 = vld [vmem:[%s3501 + $0x90] sm:$0xff]
      %v3521 = vld [vmem:[%s3501 + $0x98] sm:$0xff]
      %v3522 = vld [vmem:[%s3501 + $0xa0] sm:$0xff]
      %v3523 = vld [vmem:[%s3501 + $0xa8] sm:$0xff]
      %v3524 = vld [vmem:[%s3501 + $0xb0] sm:$0xff]
      %v3525 = vld [vmem:[%s3501 + $0xb8] sm:$0xff]
      %v3526 = vld [vmem:[%s3501 + $0xc0] sm:$0xff]
      %v3527 = vld [vmem:[%s3501 + $0xc8] sm:$0xff]
      %v3528 = vld [vmem:[%s3501 + $0xd0] sm:$0xff]
      %v3529 = vld [vmem:[%s3501 + $0xd8] sm:$0xff]
      %v3530 = vld [vmem:[%s3501 + $0xe0] sm:$0xff]
      %v3531 = vld [vmem:[%s3501 + $0xe8] sm:$0xff]
      %v3532 = vld [vmem:[%s3501 + $0xf0] sm:$0xff]
      %v3533 = vld [vmem:[%s3501 + $0xf8] sm:$0xff]
      %s3534 = scalar_lea.vmem %s5, 4
      %v3535 = vld [vmem:[%s3534] sm:$0x3]
      %v3537 = vlaneseq
      %v3538 = vshrl.u32 %v3537, 7
      %v3539 = vsub.s32 0, %v3538
      %v3540 = vrot.slane %v3535, %v3539
      %v3541 = vlaneseq
      %v3542 = vshrl.u32 %v3541, 7
      %v3543 = vsub.s32 1, %v3542
      %v3544 = vrot.slane %v3535, %v3543
      %v3579 = vunpack.c.l.b16 %v3502
      %v3580 = vunpack.c.h.b16 %v3502
      %v3581 = vunpack.c.l.b16 %v3503
      %v3582 = vunpack.c.h.b16 %v3503
      %v3583 = vunpack.c.l.b16 %v3504
      %v3584 = vunpack.c.h.b16 %v3504
      %v3585 = vunpack.c.l.b16 %v3505
      %v3586 = vunpack.c.h.b16 %v3505
      %v3587 = vunpack.c.l.b16 %v3506
      %v3588 = vunpack.c.h.b16 %v3506
      %v3589 = vunpack.c.l.b16 %v3507
      %v3590 = vunpack.c.h.b16 %v3507
      %v3591 = vunpack.c.l.b16 %v3508
      %v3592 = vunpack.c.h.b16 %v3508
      %v3593 = vunpack.c.l.b16 %v3509
      %v3594 = vunpack.c.h.b16 %v3509
      %v3595 = vunpack.c.l.b16 %v3510
      %v3596 = vunpack.c.h.b16 %v3510
      %v3597 = vunpack.c.l.b16 %v3511
      %v3598 = vunpack.c.h.b16 %v3511
      %v3599 = vunpack.c.l.b16 %v3512
      %v3600 = vunpack.c.h.b16 %v3512
      %v3601 = vunpack.c.l.b16 %v3513
      %v3602 = vunpack.c.h.b16 %v3513
      %v3603 = vunpack.c.l.b16 %v3514
      %v3604 = vunpack.c.h.b16 %v3514
      %v3605 = vunpack.c.l.b16 %v3515
      %v3606 = vunpack.c.h.b16 %v3515
      %v3607 = vunpack.c.l.b16 %v3516
      %v3608 = vunpack.c.h.b16 %v3516
      %v3609 = vunpack.c.l.b16 %v3517
      %v3610 = vunpack.c.h.b16 %v3517
      %v3611 = vunpack.c.l.b16 %v3518
      %v3612 = vunpack.c.h.b16 %v3518
      %v3613 = vunpack.c.l.b16 %v3519
      %v3614 = vunpack.c.h.b16 %v3519
      %v3615 = vunpack.c.l.b16 %v3520
      %v3616 = vunpack.c.h.b16 %v3520
      %v3617 = vunpack.c.l.b16 %v3521
      %v3618 = vunpack.c.h.b16 %v3521
      %v3619 = vunpack.c.l.b16 %v3522
      %v3620 = vunpack.c.h.b16 %v3522
      %v3621 = vunpack.c.l.b16 %v3523
      %v3622 = vunpack.c.h.b16 %v3523
      %v3623 = vunpack.c.l.b16 %v3524
      %v3624 = vunpack.c.h.b16 %v3524
      %v3625 = vunpack.c.l.b16 %v3525
      %v3626 = vunpack.c.h.b16 %v3525
      %v3627 = vunpack.c.l.b16 %v3526
      %v3628 = vunpack.c.h.b16 %v3526
      %v3629 = vunpack.c.l.b16 %v3527
      %v3630 = vunpack.c.h.b16 %v3527
      %v3631 = vunpack.c.l.b16 %v3528
      %v3632 = vunpack.c.h.b16 %v3528
      %v3633 = vunpack.c.l.b16 %v3529
      %v3634 = vunpack.c.h.b16 %v3529
      %v3635 = vunpack.c.l.b16 %v3530
      %v3636 = vunpack.c.h.b16 %v3530
      %v3637 = vunpack.c.l.b16 %v3531
      %v3638 = vunpack.c.h.b16 %v3531
      %v3639 = vunpack.c.l.b16 %v3532
      %v3640 = vunpack.c.h.b16 %v3532
      %v3641 = vunpack.c.l.b16 %v3533
      %v3642 = vunpack.c.h.b16 %v3533
      %v3643 = vpack.c.b16 %v3581, %v3579
      %v3644 = vpack.c.b16 %v3582, %v3580
      %v3645 = vpack.c.b16 %v3585, %v3583
      %v3646 = vpack.c.b16 %v3586, %v3584
      %v3647 = vpack.c.b16 %v3589, %v3587
      %v3648 = vpack.c.b16 %v3590, %v3588
      %v3649 = vpack.c.b16 %v3593, %v3591
      %v3650 = vpack.c.b16 %v3594, %v3592
      %v3651 = vpack.c.b16 %v3597, %v3595
      %v3652 = vpack.c.b16 %v3598, %v3596
      %v3653 = vpack.c.b16 %v3601, %v3599
      %v3654 = vpack.c.b16 %v3602, %v3600
      %v3655 = vpack.c.b16 %v3605, %v3603
      %v3656 = vpack.c.b16 %v3606, %v3604
      %v3657 = vpack.c.b16 %v3609, %v3607
      %v3658 = vpack.c.b16 %v3610, %v3608
      %v3659 = vpack.c.b16 %v3613, %v3611
      %v3660 = vpack.c.b16 %v3614, %v3612
      %v3661 = vpack.c.b16 %v3617, %v3615
      %v3662 = vpack.c.b16 %v3618, %v3616
      %v3663 = vpack.c.b16 %v3621, %v3619
      %v3664 = vpack.c.b16 %v3622, %v3620
      %v3665 = vpack.c.b16 %v3625, %v3623
      %v3666 = vpack.c.b16 %v3626, %v3624
      %v3667 = vpack.c.b16 %v3629, %v3627
      %v3668 = vpack.c.b16 %v3630, %v3628
      %v3669 = vpack.c.b16 %v3633, %v3631
      %v3670 = vpack.c.b16 %v3634, %v3632
      %v3671 = vpack.c.b16 %v3637, %v3635
      %v3672 = vpack.c.b16 %v3638, %v3636
      %v3673 = vpack.c.b16 %v3641, %v3639
      %v3674 = vpack.c.b16 %v3642, %v3640
      %3707 = vmatprep.subr.bf16.mxu0 %v3644
      %3708 = vmatpush1.bf16.msra.mxu0 %v3643
      %3709 = vmatprep.subr.bf16.mxu0 %v3646
      %3710 = vmatpush1.bf16.msra.mxu0 %v3645
      %3711 = vmatprep.subr.bf16.mxu0 %v3648
      %3712 = vmatpush1.bf16.msra.mxu0 %v3647
      %3713 = vmatprep.subr.bf16.mxu0 %v3650
      %3714 = vmatpush1.bf16.msra.mxu0 %v3649
      %3715 = vmatprep.subr.bf16.mxu0 %v3652
      %3716 = vmatpush1.bf16.msra.mxu0 %v3651
      %3717 = vmatprep.subr.bf16.mxu0 %v3654
      %3718 = vmatpush1.bf16.msra.mxu0 %v3653
      %3719 = vmatprep.subr.bf16.mxu0 %v3656
      %3720 = vmatpush1.bf16.msra.mxu0 %v3655
      %3721 = vmatprep.subr.bf16.mxu0 %v3658
      %3722 = vmatpush1.bf16.msra.mxu0 %v3657
      %3723 = vmatprep.subr.bf16.mxu0 %v3660
      %3724 = vmatpush1.bf16.msra.mxu0 %v3659
      %3725 = vmatprep.subr.bf16.mxu0 %v3662
      %3726 = vmatpush1.bf16.msra.mxu0 %v3661
      %3727 = vmatprep.subr.bf16.mxu0 %v3664
      %3728 = vmatpush1.bf16.msra.mxu0 %v3663
      %3729 = vmatprep.subr.bf16.mxu0 %v3666
      %3730 = vmatpush1.bf16.msra.mxu0 %v3665
      %3731 = vmatprep.subr.bf16.mxu0 %v3668
      %3732 = vmatpush1.bf16.msra.mxu0 %v3667
      %3733 = vmatprep.subr.bf16.mxu0 %v3670
      %3734 = vmatpush1.bf16.msra.mxu0 %v3669
      %3735 = vmatprep.subr.bf16.mxu0 %v3672
      %3736 = vmatpush1.bf16.msra.mxu0 %v3671
      %3737 = vmatprep.subr.bf16.mxu0 %v3674
      %3738 = vmatpush1.bf16.msra.mxu0 %v3673
      %3739 = vmatprep.mubr.bf16.mxu0 %v3470
      %3740 = vmatmul.mubr.bf16.gmra.mrb[0].mxu0 %v3469
      %v3741 = vpop.f32.mrb[0].mxu0
      %v3742 = vadd.f32 %v3540, %v3741
      %v3743 = vpop.f32.mrb[0].mxu0
      %v3744 = vadd.f32 %v3544, %v3743
      %v3745 = vpop.f32.mrb[0].mxu0
      %v3746 = vadd.f32 %v3540, %v3745
      %v3747 = vpop.f32.mrb[0].mxu0
      %v3748 = vadd.f32 %v3544, %v3747
      %3749 = vmatprep.mubr.bf16.mxu0 %v3472
      %3750 = vmatmul.mubr.bf16.gmra.mrb[0].mxu0 %v3471
      %v3751 = vpop.f32.mrb[0].mxu0
      %v3752 = vadd.f32 %v3540, %v3751
      %v3753 = vpop.f32.mrb[0].mxu0
      %v3754 = vadd.f32 %v3544, %v3753
      %v3755 = vpop.f32.mrb[0].mxu0
      %v3756 = vadd.f32 %v3540, %v3755
      %v3757 = vpop.f32.mrb[0].mxu0
      %v3758 = vadd.f32 %v3544, %v3757
      %3759 = vmatprep.mubr.bf16.mxu0 %v3474
      %3760 = vmatmul.mubr.bf16.gmra.mrb[0].mxu0 %v3473
      %v3761 = vpop.f32.mrb[0].mxu0
      %v3762 = vadd.f32 %v3540, %v3761
      %v3763 = vpop.f32.mrb[0].mxu0
      %v3764 = vadd.f32 %v3544, %v3763
      %v3765 = vpop.f32.mrb[0].mxu0
      %v3766 = vadd.f32 %v3540, %v3765
      %v3767 = vpop.f32.mrb[0].mxu0
      %v3768 = vadd.f32 %v3544, %v3767
      %3769 = vmatprep.mubr.bf16.mxu0 %v3476
      %3770 = vmatmul.mubr.bf16.gmra.mrb[0].mxu0 %v3475
      %v3771 = vpop.f32.mrb[0].mxu0
      %v3772 = vadd.f32 %v3540, %v3771
      %v3773 = vpop.f32.mrb[0].mxu0
      %v3774 = vadd.f32 %v3544, %v3773
      %v3775 = vpop.f32.mrb[0].mxu0
      %v3776 = vadd.f32 %v3540, %v3775
      %v3777 = vpop.f32.mrb[0].mxu0
      %v3778 = vadd.f32 %v3544, %v3777
      %3779 = vmatprep.mubr.bf16.mxu0 %v3478
      %3780 = vmatmul.mubr.bf16.gmra.mrb[0].mxu0 %v3477
      %v3781 = vpop.f32.mrb[0].mxu0
      %v3782 = vadd.f32 %v3540, %v3781
      %v3783 = vpop.f32.mrb[0].mxu0
      %v3784 = vadd.f32 %v3544, %v3783
      %v3785 = vpop.f32.mrb[0].mxu0
      %v3786 = vadd.f32 %v3540, %v3785
      %v3787 = vpop.f32.mrb[0].mxu0
      %v3788 = vadd.f32 %v3544, %v3787
      %3789 = vmatprep.mubr.bf16.mxu0 %v3480
      %3790 = vmatmul.mubr.bf16.gmra.mrb[0].mxu0 %v3479
      %v3791 = vpop.f32.mrb[0].mxu0
      %v3792 = vadd.f32 %v3540, %v3791
      %v3793 = vpop.f32.mrb[0].mxu0
      %v3794 = vadd.f32 %v3544, %v3793
      %v3795 = vpop.f32.mrb[0].mxu0
      %v3796 = vadd.f32 %v3540, %v3795
      %v3797 = vpop.f32.mrb[0].mxu0
      %v3798 = vadd.f32 %v3544, %v3797
      %3799 = vmatprep.mubr.bf16.mxu0 %v3482
      %3800 = vmatmul.mubr.bf16.gmra.mrb[0].mxu0 %v3481
      %v3801 = vpop.f32.mrb[0].mxu0
      %v3802 = vadd.f32 %v3540, %v3801
      %v3803 = vpop.f32.mrb[0].mxu0
      %v3804 = vadd.f32 %v3544, %v3803
      %v3805 = vpop.f32.mrb[0].mxu0
      %v3806 = vadd.f32 %v3540, %v3805
      %v3807 = vpop.f32.mrb[0].mxu0
      %v3808 = vadd.f32 %v3544, %v3807
      %3809 = vmatprep.mubr.bf16.mxu0 %v3484
      %3810 = vmatmul.mubr.bf16.gmra.mrb[0].mxu0 %v3483
      %v3811 = vpop.f32.mrb[0].mxu0
      %v3812 = vadd.f32 %v3540, %v3811
      %v3813 = vpop.f32.mrb[0].mxu0
      %v3814 = vadd.f32 %v3544, %v3813
      %v3815 = vpop.f32.mrb[0].mxu0
      %v3816 = vadd.f32 %v3540, %v3815
      %v3817 = vpop.f32.mrb[0].mxu0
      %v3818 = vadd.f32 %v3544, %v3817
      %3819 = vmatprep.mubr.bf16.mxu0 %v3486
      %3820 = vmatmul.mubr.bf16.gmra.mrb[0].mxu0 %v3485
      %v3821 = vpop.f32.mrb[0].mxu0
      %v3822 = vadd.f32 %v3540, %v3821
      %v3823 = vpop.f32.mrb[0].mxu0
      %v3824 = vadd.f32 %v3544, %v3823
      %v3825 = vpop.f32.mrb[0].mxu0
      %v3826 = vadd.f32 %v3540, %v3825
      %v3827 = vpop.f32.mrb[0].mxu0
      %v3828 = vadd.f32 %v3544, %v3827
      %3829 = vmatprep.mubr.bf16.mxu0 %v3488
      %3830 = vmatmul.mubr.bf16.gmra.mrb[0].mxu0 %v3487
      %v3831 = vpop.f32.mrb[0].mxu0
      %v3832 = vadd.f32 %v3540, %v3831
      %v3833 = vpop.f32.mrb[0].mxu0
      %v3834 = vadd.f32 %v3544, %v3833
      %v3835 = vpop.f32.mrb[0].mxu0
      %v3836 = vadd.f32 %v3540, %v3835
      %v3837 = vpop.f32.mrb[0].mxu0
      %v3838 = vadd.f32 %v3544, %v3837
      %3839 = vmatprep.mubr.bf16.mxu0 %v3490
      %3840 = vmatmul.mubr.bf16.gmra.mrb[0].mxu0 %v3489
      %v3841 = vpop.f32.mrb[0].mxu0
      %v3842 = vadd.f32 %v3540, %v3841
      %v3843 = vpop.f32.mrb[0].mxu0
      %v3844 = vadd.f32 %v3544, %v3843
      %v3845 = vpop.f32.mrb[0].mxu0
      %v3846 = vadd.f32 %v3540, %v3845
      %v3847 = vpop.f32.mrb[0].mxu0
      %v3848 = vadd.f32 %v3544, %v3847
      %3849 = vmatprep.mubr.bf16.mxu0 %v3492
      %3850 = vmatmul.mubr.bf16.gmra.mrb[0].mxu0 %v3491
      %v3851 = vpop.f32.mrb[0].mxu0
      %v3852 = vadd.f32 %v3540, %v3851
      %v3853 = vpop.f32.mrb[0].mxu0
      %v3854 = vadd.f32 %v3544, %v3853
      %v3855 = vpop.f32.mrb[0].mxu0
      %v3856 = vadd.f32 %v3540, %v3855
      %v3857 = vpop.f32.mrb[0].mxu0
      %v3858 = vadd.f32 %v3544, %v3857
      %3859 = vmatprep.mubr.bf16.mxu0 %v3494
      %3860 = vmatmul.mubr.bf16.gmra.mrb[0].mxu0 %v3493
      %v3861 = vpop.f32.mrb[0].mxu0
      %v3862 = vadd.f32 %v3540, %v3861
      %v3863 = vpop.f32.mrb[0].mxu0
      %v3864 = vadd.f32 %v3544, %v3863
      %v3865 = vpop.f32.mrb[0].mxu0
      %v3866 = vadd.f32 %v3540, %v3865
      %v3867 = vpop.f32.mrb[0].mxu0
      %v3868 = vadd.f32 %v3544, %v3867
      %3869 = vmatprep.mubr.bf16.mxu0 %v3496
      %3870 = vmatmul.mubr.bf16.gmra.mrb[0].mxu0 %v3495
      %v3871 = vpop.f32.mrb[0].mxu0
      %v3872 = vadd.f32 %v3540, %v3871
      %v3873 = vpop.f32.mrb[0].mxu0
      %v3874 = vadd.f32 %v3544, %v3873
      %v3875 = vpop.f32.mrb[0].mxu0
      %v3876 = vadd.f32 %v3540, %v3875
      %v3877 = vpop.f32.mrb[0].mxu0
      %v3878 = vadd.f32 %v3544, %v3877
      %3879 = vmatprep.mubr.bf16.mxu0 %v3498
      %3880 = vmatmul.mubr.bf16.gmra.mrb[0].mxu0 %v3497
      %v3881 = vpop.f32.mrb[0].mxu0
      %v3882 = vadd.f32 %v3540, %v3881
      %v3883 = vpop.f32.mrb[0].mxu0
      %v3884 = vadd.f32 %v3544, %v3883
      %v3885 = vpop.f32.mrb[0].mxu0
      %v3886 = vadd.f32 %v3540, %v3885
      %v3887 = vpop.f32.mrb[0].mxu0
      %v3888 = vadd.f32 %v3544, %v3887
      %3889 = vmatprep.mubr.bf16.mxu0 %v3500
      %3890 = vmatmul.mubr.bf16.gmra.mrb[0].mxu0 %v3499
      %v3891 = vpop.f32.mrb[0].mxu0
      %v3892 = vadd.f32 %v3540, %v3891
      %v3893 = vpop.f32.mrb[0].mxu0
      %v3894 = vadd.f32 %v3544, %v3893
      %v3895 = vpop.f32.mrb[0].mxu0
      %v3896 = vadd.f32 %v3540, %v3895
      %v3897 = vpop.f32.mrb[0].mxu0
      %v3898 = vadd.f32 %v3544, %v3897
      %3899 = vdwg.mxu0
      %v3900 = vmax.f32 %v3742, 0.0
      %v3901 = vmax.f32 %v3744, 0.0
      %v3902 = vmax.f32 %v3746, 0.0
      %v3903 = vmax.f32 %v3748, 0.0
      %v3904 = vmax.f32 %v3752, 0.0
      %v3905 = vmax.f32 %v3754, 0.0
      %v3906 = vmax.f32 %v3756, 0.0
      %v3907 = vmax.f32 %v3758, 0.0
      %v3908 = vmax.f32 %v3762, 0.0
      %v3909 = vmax.f32 %v3764, 0.0
      %v3910 = vmax.f32 %v3766, 0.0
      %v3911 = vmax.f32 %v3768, 0.0
      %v3912 = vmax.f32 %v3772, 0.0
      %v3913 = vmax.f32 %v3774, 0.0
      %v3914 = vmax.f32 %v3776, 0.0
      %v3915 = vmax.f32 %v3778, 0.0
      %v3916 = vmax.f32 %v3782, 0.0
      %v3917 = vmax.f32 %v3784, 0.0
      %v3918 = vmax.f32 %v3786, 0.0
      %v3919 = vmax.f32 %v3788, 0.0
      %v3920 = vmax.f32 %v3792, 0.0
      %v3921 = vmax.f32 %v3794, 0.0
      %v3922 = vmax.f32 %v3796, 0.0
      %v3923 = vmax.f32 %v3798, 0.0
      %v3924 = vmax.f32 %v3802, 0.0
      %v3925 = vmax.f32 %v3804, 0.0
      %v3926 = vmax.f32 %v3806, 0.0
      %v3927 = vmax.f32 %v3808, 0.0
      %v3928 = vmax.f32 %v3812, 0.0
      %v3929 = vmax.f32 %v3814, 0.0
      %v3930 = vmax.f32 %v3816, 0.0
      %v3931 = vmax.f32 %v3818, 0.0
      %v3932 = vmax.f32 %v3822, 0.0
      %v3933 = vmax.f32 %v3824, 0.0
      %v3934 = vmax.f32 %v3826, 0.0
      %v3935 = vmax.f32 %v3828, 0.0
      %v3936 = vmax.f32 %v3832, 0.0
      %v3937 = vmax.f32 %v3834, 0.0
      %v3938 = vmax.f32 %v3836, 0.0
      %v3939 = vmax.f32 %v3838, 0.0
      %v3940 = vmax.f32 %v3842, 0.0
      %v3941 = vmax.f32 %v3844, 0.0
      %v3942 = vmax.f32 %v3846, 0.0
      %v3943 = vmax.f32 %v3848, 0.0
      %v3944 = vmax.f32 %v3852, 0.0
      %v3945 = vmax.f32 %v3854, 0.0
      %v3946 = vmax.f32 %v3856, 0.0
      %v3947 = vmax.f32 %v3858, 0.0
      %v3948 = vmax.f32 %v3862, 0.0
      %v3949 = vmax.f32 %v3864, 0.0
      %v3950 = vmax.f32 %v3866, 0.0
      %v3951 = vmax.f32 %v3868, 0.0
      %v3952 = vmax.f32 %v3872, 0.0
      %v3953 = vmax.f32 %v3874, 0.0
      %v3954 = vmax.f32 %v3876, 0.0
      %v3955 = vmax.f32 %v3878, 0.0
      %v3956 = vmax.f32 %v3882, 0.0
      %v3957 = vmax.f32 %v3884, 0.0
      %v3958 = vmax.f32 %v3886, 0.0
      %v3959 = vmax.f32 %v3888, 0.0
      %v3960 = vmax.f32 %v3892, 0.0
      %v3961 = vmax.f32 %v3894, 0.0
      %v3962 = vmax.f32 %v3896, 0.0
      %v3963 = vmax.f32 %v3898, 0.0
      %v3964 = vadd.f32 %v3405, %v3900
      %v3965 = vadd.f32 %v3406, %v3901
      %v3966 = vadd.f32 %v3407, %v3902
      %v3967 = vadd.f32 %v3408, %v3903
      %v3968 = vadd.f32 %v3409, %v3904
      %v3969 = vadd.f32 %v3410, %v3905
      %v3970 = vadd.f32 %v3411, %v3906
      %v3971 = vadd.f32 %v3412, %v3907
      %v3972 = vadd.f32 %v3413, %v3908
      %v3973 = vadd.f32 %v3414, %v3909
      %v3974 = vadd.f32 %v3415, %v3910
      %v3975 = vadd.f32 %v3416, %v3911
      %v3976 = vadd.f32 %v3417, %v3912
      %v3977 = vadd.f32 %v3418, %v3913
      %v3978 = vadd.f32 %v3419, %v3914
      %v3979 = vadd.f32 %v3420, %v3915
      %v3980 = vadd.f32 %v3421, %v3916
      %v3981 = vadd.f32 %v3422, %v3917
      %v3982 = vadd.f32 %v3423, %v3918
      %v3983 = vadd.f32 %v3424, %v3919
      %v3984 = vadd.f32 %v3425, %v3920
      %v3985 = vadd.f32 %v3426, %v3921
      %v3986 = vadd.f32 %v3427, %v3922
      %v3987 = vadd.f32 %v3428, %v3923
      %v3988 = vadd.f32 %v3429, %v3924
      %v3989 = vadd.f32 %v3430, %v3925
      %v3990 = vadd.f32 %v3431, %v3926
      %v3991 = vadd.f32 %v3432, %v3927
      %v3992 = vadd.f32 %v3433, %v3928
      %v3993 = vadd.f32 %v3434, %v3929
      %v3994 = vadd.f32 %v3435, %v3930
      %v3995 = vadd.f32 %v3436, %v3931
      %v3996 = vadd.f32 %v3437, %v3932
      %v3997 = vadd.f32 %v3438, %v3933
      %v3998 = vadd.f32 %v3439, %v3934
      %v3999 = vadd.f32 %v3440, %v3935
      %v4000 = vadd.f32 %v3441, %v3936
      %v4001 = vadd.f32 %v3442, %v3937
      %v4002 = vadd.f32 %v3443, %v3938
      %v4003 = vadd.f32 %v3444, %v3939
      %v4004 = vadd.f32 %v3445, %v3940
      %v4005 = vadd.f32 %v3446, %v3941
      %v4006 = vadd.f32 %v3447, %v3942
      %v4007 = vadd.f32 %v3448, %v3943
      %v4008 = vadd.f32 %v3449, %v3944
      %v4009 = vadd.f32 %v3450, %v3945
      %v4010 = vadd.f32 %v3451, %v3946
      %v4011 = vadd.f32 %v3452, %v3947
      %v4012 = vadd.f32 %v3453, %v3948
      %v4013 = vadd.f32 %v3454, %v3949
      %v4014 = vadd.f32 %v3455, %v3950
      %v4015 = vadd.f32 %v3456, %v3951
      %v4016 = vadd.f32 %v3457, %v3952
      %v4017 = vadd.f32 %v3458, %v3953
      %v4018 = vadd.f32 %v3459, %v3954
      %v4019 = vadd.f32 %v3460, %v3955
      %v4020 = vadd.f32 %v3461, %v3956
      %v4021 = vadd.f32 %v3462, %v3957
      %v4022 = vadd.f32 %v3463, %v3958
      %v4023 = vadd.f32 %v3464, %v3959
      %v4024 = vadd.f32 %v3465, %v3960
      %v4025 = vadd.f32 %v3466, %v3961
      %v4026 = vadd.f32 %v3467, %v3962
      %v4027 = vadd.f32 %v3468, %v3963
      %v4028 = vpack.c.bf16 %v3966, %v3964
      %v4029 = vpack.c.bf16 %v3967, %v3965
      %v4030 = vpack.c.bf16 %v3970, %v3968
      %v4031 = vpack.c.bf16 %v3971, %v3969
      %v4032 = vpack.c.bf16 %v3974, %v3972
      %v4033 = vpack.c.bf16 %v3975, %v3973
      %v4034 = vpack.c.bf16 %v3978, %v3976
      %v4035 = vpack.c.bf16 %v3979, %v3977
      %v4036 = vpack.c.bf16 %v3982, %v3980
      %v4037 = vpack.c.bf16 %v3983, %v3981
      %v4038 = vpack.c.bf16 %v3986, %v3984
      %v4039 = vpack.c.bf16 %v3987, %v3985
      %v4040 = vpack.c.bf16 %v3990, %v3988
      %v4041 = vpack.c.bf16 %v3991, %v3989
      %v4042 = vpack.c.bf16 %v3994, %v3992
      %v4043 = vpack.c.bf16 %v3995, %v3993
      %v4044 = vpack.c.bf16 %v3998, %v3996
      %v4045 = vpack.c.bf16 %v3999, %v3997
      %v4046 = vpack.c.bf16 %v4002, %v4000
      %v4047 = vpack.c.bf16 %v4003, %v4001
      %v4048 = vpack.c.bf16 %v4006, %v4004
      %v4049 = vpack.c.bf16 %v4007, %v4005
      %v4050 = vpack.c.bf16 %v4010, %v4008
      %v4051 = vpack.c.bf16 %v4011, %v4009
      %v4052 = vpack.c.bf16 %v4014, %v4012
      %v4053 = vpack.c.bf16 %v4015, %v4013
      %v4054 = vpack.c.bf16 %v4018, %v4016
      %v4055 = vpack.c.bf16 %v4019, %v4017
      %v4056 = vpack.c.bf16 %v4022, %v4020
      %v4057 = vpack.c.bf16 %v4023, %v4021
      %v4058 = vpack.c.bf16 %v4026, %v4024
      %v4059 = vpack.c.bf16 %v4027, %v4025
      %v4060 = vld [vmem:[%s6] sm:$0xff]
      %v4061 = vld [vmem:[%s6 + $0x8] sm:$0xff]
      %v4062 = vld [vmem:[%s6 + $0x10] sm:$0xff]
      %v4063 = vld [vmem:[%s6 + $0x18] sm:$0xff]
      %v4064 = vld [vmem:[%s6 + $0x20] sm:$0xff]
      %v4065 = vld [vmem:[%s6 + $0x28] sm:$0xff]
      %v4066 = vld [vmem:[%s6 + $0x30] sm:$0xff]
      %v4067 = vld [vmem:[%s6 + $0x38] sm:$0xff]
      %v4068 = vld [vmem:[%s6 + $0x40] sm:$0xff]
      %v4069 = vld [vmem:[%s6 + $0x48] sm:$0xff]
      %v4070 = vld [vmem:[%s6 + $0x50] sm:$0xff]
      %v4071 = vld [vmem:[%s6 + $0x58] sm:$0xff]
      %v4072 = vld [vmem:[%s6 + $0x60] sm:$0xff]
      %v4073 = vld [vmem:[%s6 + $0x68] sm:$0xff]
      %v4074 = vld [vmem:[%s6 + $0x70] sm:$0xff]
      %v4075 = vld [vmem:[%s6 + $0x78] sm:$0xff]
      %v4076 = vld [vmem:[%s6 + $0x80] sm:$0xff]
      %v4077 = vld [vmem:[%s6 + $0x88] sm:$0xff]
      %v4078 = vld [vmem:[%s6 + $0x90] sm:$0xff]
      %v4079 = vld [vmem:[%s6 + $0x98] sm:$0xff]
      %v4080 = vld [vmem:[%s6 + $0xa0] sm:$0xff]
      %v4081 = vld [vmem:[%s6 + $0xa8] sm:$0xff]
      %v4082 = vld [vmem:[%s6 + $0xb0] sm:$0xff]
      %v4083 = vld [vmem:[%s6 + $0xb8] sm:$0xff]
      %v4084 = vld [vmem:[%s6 + $0xc0] sm:$0xff]
      %v4085 = vld [vmem:[%s6 + $0xc8] sm:$0xff]
      %v4086 = vld [vmem:[%s6 + $0xd0] sm:$0xff]
      %v4087 = vld [vmem:[%s6 + $0xd8] sm:$0xff]
      %v4088 = vld [vmem:[%s6 + $0xe0] sm:$0xff]
      %v4089 = vld [vmem:[%s6 + $0xe8] sm:$0xff]
      %v4090 = vld [vmem:[%s6 + $0xf0] sm:$0xff]
      %v4091 = vld [vmem:[%s6 + $0xf8] sm:$0xff]
      %v4092 = vld [vmem:[%s7] sm:$0x3]
      %v4094 = vlaneseq
      %v4095 = vshrl.u32 %v4094, 7
      %v4096 = vsub.s32 0, %v4095
      %v4097 = vrot.slane %v4092, %v4096
      %v4098 = vlaneseq
      %v4099 = vshrl.u32 %v4098, 7
      %v4100 = vsub.s32 1, %v4099
      %v4101 = vrot.slane %v4092, %v4100
      %v4136 = vunpack.c.l.b16 %v4060
      %v4137 = vunpack.c.h.b16 %v4060
      %v4138 = vunpack.c.l.b16 %v4061
      %v4139 = vunpack.c.h.b16 %v4061
      %v4140 = vunpack.c.l.b16 %v4062
      %v4141 = vunpack.c.h.b16 %v4062
      %v4142 = vunpack.c.l.b16 %v4063
      %v4143 = vunpack.c.h.b16 %v4063
      %v4144 = vunpack.c.l.b16 %v4064
      %v4145 = vunpack.c.h.b16 %v4064
      %v4146 = vunpack.c.l.b16 %v4065
      %v4147 = vunpack.c.h.b16 %v4065
      %v4148 = vunpack.c.l.b16 %v4066
      %v4149 = vunpack.c.h.b16 %v4066
      %v4150 = vunpack.c.l.b16 %v4067
      %v4151 = vunpack.c.h.b16 %v4067
      %v4152 = vunpack.c.l.b16 %v4068
      %v4153 = vunpack.c.h.b16 %v4068
      %v4154 = vunpack.c.l.b16 %v4069
      %v4155 = vunpack.c.h.b16 %v4069
      %v4156 = vunpack.c.l.b16 %v4070
      %v4157 = vunpack.c.h.b16 %v4070
      %v4158 = vunpack.c.l.b16 %v4071
      %v4159 = vunpack.c.h.b16 %v4071
      %v4160 = vunpack.c.l.b16 %v4072
      %v4161 = vunpack.c.h.b16 %v4072
      %v4162 = vunpack.c.l.b16 %v4073
      %v4163 = vunpack.c.h.b16 %v4073
      %v4164 = vunpack.c.l.b16 %v4074
      %v4165 = vunpack.c.h.b16 %v4074
      %v4166 = vunpack.c.l.b16 %v4075
      %v4167 = vunpack.c.h.b16 %v4075
      %v4168 = vunpack.c.l.b16 %v4076
      %v4169 = vunpack.c.h.b16 %v4076
      %v4170 = vunpack.c.l.b16 %v4077
      %v4171 = vunpack.c.h.b16 %v4077
      %v4172 = vunpack.c.l.b16 %v4078
      %v4173 = vunpack.c.h.b16 %v4078
      %v4174 = vunpack.c.l.b16 %v4079
      %v4175 = vunpack.c.h.b16 %v4079
      %v4176 = vunpack.c.l.b16 %v4080
      %v4177 = vunpack.c.h.b16 %v4080
      %v4178 = vunpack.c.l.b16 %v4081
      %v4179 = vunpack.c.h.b16 %v4081
      %v4180 = vunpack.c.l.b16 %v4082
      %v4181 = vunpack.c.h.b16 %v4082
      %v4182 = vunpack.c.l.b16 %v4083
      %v4183 = vunpack.c.h.b16 %v4083
      %v4184 = vunpack.c.l.b16 %v4084
      %v4185 = vunpack.c.h.b16 %v4084
      %v4186 = vunpack.c.l.b16 %v4085
      %v4187 = vunpack.c.h.b16 %v4085
      %v4188 = vunpack.c.l.b16 %v4086
      %v4189 = vunpack.c.h.b16 %v4086
      %v4190 = vunpack.c.l.b16 %v4087
      %v4191 = vunpack.c.h.b16 %v4087
      %v4192 = vunpack.c.l.b16 %v4088
      %v4193 = vunpack.c.h.b16 %v4088
      %v4194 = vunpack.c.l.b16 %v4089
      %v4195 = vunpack.c.h.b16 %v4089
      %v4196 = vunpack.c.l.b16 %v4090
      %v4197 = vunpack.c.h.b16 %v4090
      %v4198 = vunpack.c.l.b16 %v4091
      %v4199 = vunpack.c.h.b16 %v4091
      %v4200 = vpack.c.b16 %v4138, %v4136
      %v4201 = vpack.c.b16 %v4139, %v4137
      %v4202 = vpack.c.b16 %v4142, %v4140
      %v4203 = vpack.c.b16 %v4143, %v4141
      %v4204 = vpack.c.b16 %v4146, %v4144
      %v4205 = vpack.c.b16 %v4147, %v4145
      %v4206 = vpack.c.b16 %v4150, %v4148
      %v4207 = vpack.c.b16 %v4151, %v4149
      %v4208 = vpack.c.b16 %v4154, %v4152
      %v4209 = vpack.c.b16 %v4155, %v4153
      %v4210 = vpack.c.b16 %v4158, %v4156
      %v4211 = vpack.c.b16 %v4159, %v4157
      %v4212 = vpack.c.b16 %v4162, %v4160
      %v4213 = vpack.c.b16 %v4163, %v4161
      %v4214 = vpack.c.b16 %v4166, %v4164
      %v4215 = vpack.c.b16 %v4167, %v4165
      %v4216 = vpack.c.b16 %v4170, %v4168
      %v4217 = vpack.c.b16 %v4171, %v4169
      %v4218 = vpack.c.b16 %v4174, %v4172
      %v4219 = vpack.c.b16 %v4175, %v4173
      %v4220 = vpack.c.b16 %v4178, %v4176
      %v4221 = vpack.c.b16 %v4179, %v4177
      %v4222 = vpack.c.b16 %v4182, %v4180
      %v4223 = vpack.c.b16 %v4183, %v4181
      %v4224 = vpack.c.b16 %v4186, %v4184
      %v4225 = vpack.c.b16 %v4187, %v4185
      %v4226 = vpack.c.b16 %v4190, %v4188
      %v4227 = vpack.c.b16 %v4191, %v4189
      %v4228 = vpack.c.b16 %v4194, %v4192
      %v4229 = vpack.c.b16 %v4195, %v4193
      %v4230 = vpack.c.b16 %v4198, %v4196
      %v4231 = vpack.c.b16 %v4199, %v4197
      %4264 = vmatprep.subr.bf16.mxu0 %v4201
      %4265 = vmatpush1.bf16.msra.mxu0 %v4200
      %4266 = vmatprep.subr.bf16.mxu0 %v4203
      %4267 = vmatpush1.bf16.msra.mxu0 %v4202
      %4268 = vmatprep.subr.bf16.mxu0 %v4205
      %4269 = vmatpush1.bf16.msra.mxu0 %v4204
      %4270 = vmatprep.subr.bf16.mxu0 %v4207
      %4271 = vmatpush1.bf16.msra.mxu0 %v4206
      %4272 = vmatprep.subr.bf16.mxu0 %v4209
      %4273 = vmatpush1.bf16.msra.mxu0 %v4208
      %4274 = vmatprep.subr.bf16.mxu0 %v4211
      %4275 = vmatpush1.bf16.msra.mxu0 %v4210
      %4276 = vmatprep.subr.bf16.mxu0 %v4213
      %4277 = vmatpush1.bf16.msra.mxu0 %v4212
      %4278 = vmatprep.subr.bf16.mxu0 %v4215
      %4279 = vmatpush1.bf16.msra.mxu0 %v4214
      %4280 = vmatprep.subr.bf16.mxu0 %v4217
      %4281 = vmatpush1.bf16.msra.mxu0 %v4216
      %4282 = vmatprep.subr.bf16.mxu0 %v4219
      %4283 = vmatpush1.bf16.msra.mxu0 %v4218
      %4284 = vmatprep.subr.bf16.mxu0 %v4221
      %4285 = vmatpush1.bf16.msra.mxu0 %v4220
      %4286 = vmatprep.subr.bf16.mxu0 %v4223
      %4287 = vmatpush1.bf16.msra.mxu0 %v4222
      %4288 = vmatprep.subr.bf16.mxu0 %v4225
      %4289 = vmatpush1.bf16.msra.mxu0 %v4224
      %4290 = vmatprep.subr.bf16.mxu0 %v4227
      %4291 = vmatpush1.bf16.msra.mxu0 %v4226
      %4292 = vmatprep.subr.bf16.mxu0 %v4229
      %4293 = vmatpush1.bf16.msra.mxu0 %v4228
      %4294 = vmatprep.subr.bf16.mxu0 %v4231
      %4295 = vmatpush1.bf16.msra.mxu0 %v4230
      %4296 = vmatprep.mubr.bf16.mxu0 %v4029
      %4297 = vmatmul.mubr.bf16.gmra.mrb[0].mxu0 %v4028
      %v4298 = vpop.f32.mrb[0].mxu0
      %v4299 = vadd.f32 %v4097, %v4298
      %v4300 = vpop.f32.mrb[0].mxu0
      %v4301 = vadd.f32 %v4101, %v4300
      %v4302 = vpop.f32.mrb[0].mxu0
      %v4303 = vadd.f32 %v4097, %v4302
      %v4304 = vpop.f32.mrb[0].mxu0
      %v4305 = vadd.f32 %v4101, %v4304
      %4306 = vmatprep.mubr.bf16.mxu0 %v4031
      %4307 = vmatmul.mubr.bf16.gmra.mrb[0].mxu0 %v4030
      %v4308 = vpop.f32.mrb[0].mxu0
      %v4309 = vadd.f32 %v4097, %v4308
      %v4310 = vpop.f32.mrb[0].mxu0
      %v4311 = vadd.f32 %v4101, %v4310
      %v4312 = vpop.f32.mrb[0].mxu0
      %v4313 = vadd.f32 %v4097, %v4312
      %v4314 = vpop.f32.mrb[0].mxu0
      %v4315 = vadd.f32 %v4101, %v4314
      %4316 = vmatprep.mubr.bf16.mxu0 %v4033
      %4317 = vmatmul.mubr.bf16.gmra.mrb[0].mxu0 %v4032
      %v4318 = vpop.f32.mrb[0].mxu0
      %v4319 = vadd.f32 %v4097, %v4318
      %v4320 = vpop.f32.mrb[0].mxu0
      %v4321 = vadd.f32 %v4101, %v4320
      %v4322 = vpop.f32.mrb[0].mxu0
      %v4323 = vadd.f32 %v4097, %v4322
      %v4324 = vpop.f32.mrb[0].mxu0
      %v4325 = vadd.f32 %v4101, %v4324
      %4326 = vmatprep.mubr.bf16.mxu0 %v4035
      %4327 = vmatmul.mubr.bf16.gmra.mrb[0].mxu0 %v4034
      %v4328 = vpop.f32.mrb[0].mxu0
      %v4329 = vadd.f32 %v4097, %v4328
      %v4330 = vpop.f32.mrb[0].mxu0
      %v4331 = vadd.f32 %v4101, %v4330
      %v4332 = vpop.f32.mrb[0].mxu0
      %v4333 = vadd.f32 %v4097, %v4332
      %v4334 = vpop.f32.mrb[0].mxu0
      %v4335 = vadd.f32 %v4101, %v4334
      %4336 = vmatprep.mubr.bf16.mxu0 %v4037
      %4337 = vmatmul.mubr.bf16.gmra.mrb[0].mxu0 %v4036
      %v4338 = vpop.f32.mrb[0].mxu0
      %v4339 = vadd.f32 %v4097, %v4338
      %v4340 = vpop.f32.mrb[0].mxu0
      %v4341 = vadd.f32 %v4101, %v4340
      %v4342 = vpop.f32.mrb[0].mxu0
      %v4343 = vadd.f32 %v4097, %v4342
      %v4344 = vpop.f32.mrb[0].mxu0
      %v4345 = vadd.f32 %v4101, %v4344
      %4346 = vmatprep.mubr.bf16.mxu0 %v4039
      %4347 = vmatmul.mubr.bf16.gmra.mrb[0].mxu0 %v4038
      %v4348 = vpop.f32.mrb[0].mxu0
      %v4349 = vadd.f32 %v4097, %v4348
      %v4350 = vpop.f32.mrb[0].mxu0
      %v4351 = vadd.f32 %v4101, %v4350
      %v4352 = vpop.f32.mrb[0].mxu0
      %v4353 = vadd.f32 %v4097, %v4352
      %v4354 = vpop.f32.mrb[0].mxu0
      %v4355 = vadd.f32 %v4101, %v4354
      %4356 = vmatprep.mubr.bf16.mxu0 %v4041
      %4357 = vmatmul.mubr.bf16.gmra.mrb[0].mxu0 %v4040
      %v4358 = vpop.f32.mrb[0].mxu0
      %v4359 = vadd.f32 %v4097, %v4358
      %v4360 = vpop.f32.mrb[0].mxu0
      %v4361 = vadd.f32 %v4101, %v4360
      %v4362 = vpop.f32.mrb[0].mxu0
      %v4363 = vadd.f32 %v4097, %v4362
      %v4364 = vpop.f32.mrb[0].mxu0
      %v4365 = vadd.f32 %v4101, %v4364
      %4366 = vmatprep.mubr.bf16.mxu0 %v4043
      %4367 = vmatmul.mubr.bf16.gmra.mrb[0].mxu0 %v4042
      %v4368 = vpop.f32.mrb[0].mxu0
      %v4369 = vadd.f32 %v4097, %v4368
      %v4370 = vpop.f32.mrb[0].mxu0
      %v4371 = vadd.f32 %v4101, %v4370
      %v4372 = vpop.f32.mrb[0].mxu0
      %v4373 = vadd.f32 %v4097, %v4372
      %v4374 = vpop.f32.mrb[0].mxu0
      %v4375 = vadd.f32 %v4101, %v4374
      %4376 = vmatprep.mubr.bf16.mxu0 %v4045
      %4377 = vmatmul.mubr.bf16.gmra.mrb[0].mxu0 %v4044
      %v4378 = vpop.f32.mrb[0].mxu0
      %v4379 = vadd.f32 %v4097, %v4378
      %v4380 = vpop.f32.mrb[0].mxu0
      %v4381 = vadd.f32 %v4101, %v4380
      %v4382 = vpop.f32.mrb[0].mxu0
      %v4383 = vadd.f32 %v4097, %v4382
      %v4384 = vpop.f32.mrb[0].mxu0
      %v4385 = vadd.f32 %v4101, %v4384
      %4386 = vmatprep.mubr.bf16.mxu0 %v4047
      %4387 = vmatmul.mubr.bf16.gmra.mrb[0].mxu0 %v4046
      %v4388 = vpop.f32.mrb[0].mxu0
      %v4389 = vadd.f32 %v4097, %v4388
      %v4390 = vpop.f32.mrb[0].mxu0
      %v4391 = vadd.f32 %v4101, %v4390
      %v4392 = vpop.f32.mrb[0].mxu0
      %v4393 = vadd.f32 %v4097, %v4392
      %v4394 = vpop.f32.mrb[0].mxu0
      %v4395 = vadd.f32 %v4101, %v4394
      %4396 = vmatprep.mubr.bf16.mxu0 %v4049
      %4397 = vmatmul.mubr.bf16.gmra.mrb[0].mxu0 %v4048
      %v4398 = vpop.f32.mrb[0].mxu0
      %v4399 = vadd.f32 %v4097, %v4398
      %v4400 = vpop.f32.mrb[0].mxu0
      %v4401 = vadd.f32 %v4101, %v4400
      %v4402 = vpop.f32.mrb[0].mxu0
      %v4403 = vadd.f32 %v4097, %v4402
      %v4404 = vpop.f32.mrb[0].mxu0
      %v4405 = vadd.f32 %v4101, %v4404
      %4406 = vmatprep.mubr.bf16.mxu0 %v4051
      %4407 = vmatmul.mubr.bf16.gmra.mrb[0].mxu0 %v4050
      %v4408 = vpop.f32.mrb[0].mxu0
      %v4409 = vadd.f32 %v4097, %v4408
      %v4410 = vpop.f32.mrb[0].mxu0
      %v4411 = vadd.f32 %v4101, %v4410
      %v4412 = vpop.f32.mrb[0].mxu0
      %v4413 = vadd.f32 %v4097, %v4412
      %v4414 = vpop.f32.mrb[0].mxu0
      %v4415 = vadd.f32 %v4101, %v4414
      %4416 = vmatprep.mubr.bf16.mxu0 %v4053
      %4417 = vmatmul.mubr.bf16.gmra.mrb[0].mxu0 %v4052
      %v4418 = vpop.f32.mrb[0].mxu0
      %v4419 = vadd.f32 %v4097, %v4418
      %v4420 = vpop.f32.mrb[0].mxu0
      %v4421 = vadd.f32 %v4101, %v4420
      %v4422 = vpop.f32.mrb[0].mxu0
      %v4423 = vadd.f32 %v4097, %v4422
      %v4424 = vpop.f32.mrb[0].mxu0
      %v4425 = vadd.f32 %v4101, %v4424
      %4426 = vmatprep.mubr.bf16.mxu0 %v4055
      %4427 = vmatmul.mubr.bf16.gmra.mrb[0].mxu0 %v4054
      %v4428 = vpop.f32.mrb[0].mxu0
      %v4429 = vadd.f32 %v4097, %v4428
      %v4430 = vpop.f32.mrb[0].mxu0
      %v4431 = vadd.f32 %v4101, %v4430
      %v4432 = vpop.f32.mrb[0].mxu0
      %v4433 = vadd.f32 %v4097, %v4432
      %v4434 = vpop.f32.mrb[0].mxu0
      %v4435 = vadd.f32 %v4101, %v4434
      %4436 = vmatprep.mubr.bf16.mxu0 %v4057
      %4437 = vmatmul.mubr.bf16.gmra.mrb[0].mxu0 %v4056
      %v4438 = vpop.f32.mrb[0].mxu0
      %v4439 = vadd.f32 %v4097, %v4438
      %v4440 = vpop.f32.mrb[0].mxu0
      %v4441 = vadd.f32 %v4101, %v4440
      %v4442 = vpop.f32.mrb[0].mxu0
      %v4443 = vadd.f32 %v4097, %v4442
      %v4444 = vpop.f32.mrb[0].mxu0
      %v4445 = vadd.f32 %v4101, %v4444
      %4446 = vmatprep.mubr.bf16.mxu0 %v4059
      %4447 = vmatmul.mubr.bf16.gmra.mrb[0].mxu0 %v4058
      %v4448 = vpop.f32.mrb[0].mxu0
      %v4449 = vadd.f32 %v4097, %v4448
      %v4450 = vpop.f32.mrb[0].mxu0
      %v4451 = vadd.f32 %v4101, %v4450
      %v4452 = vpop.f32.mrb[0].mxu0
      %v4453 = vadd.f32 %v4097, %v4452
      %v4454 = vpop.f32.mrb[0].mxu0
      %v4455 = vadd.f32 %v4101, %v4454
      %4456 = vdwg.mxu0
      %v4457 = vmax.f32 %v4299, 0.0
      %v4458 = vmax.f32 %v4301, 0.0
      %v4459 = vmax.f32 %v4303, 0.0
      %v4460 = vmax.f32 %v4305, 0.0
      %v4461 = vmax.f32 %v4309, 0.0
      %v4462 = vmax.f32 %v4311, 0.0
      %v4463 = vmax.f32 %v4313, 0.0
      %v4464 = vmax.f32 %v4315, 0.0
      %v4465 = vmax.f32 %v4319, 0.0
      %v4466 = vmax.f32 %v4321, 0.0
      %v4467 = vmax.f32 %v4323, 0.0
      %v4468 = vmax.f32 %v4325, 0.0
      %v4469 = vmax.f32 %v4329, 0.0
      %v4470 = vmax.f32 %v4331, 0.0
      %v4471 = vmax.f32 %v4333, 0.0
      %v4472 = vmax.f32 %v4335, 0.0
      %v4473 = vmax.f32 %v4339, 0.0
      %v4474 = vmax.f32 %v4341, 0.0
      %v4475 = vmax.f32 %v4343, 0.0
      %v4476 = vmax.f32 %v4345, 0.0
      %v4477 = vmax.f32 %v4349, 0.0
      %v4478 = vmax.f32 %v4351, 0.0
      %v4479 = vmax.f32 %v4353, 0.0
      %v4480 = vmax.f32 %v4355, 0.0
      %v4481 = vmax.f32 %v4359, 0.0
      %v4482 = vmax.f32 %v4361, 0.0
      %v4483 = vmax.f32 %v4363, 0.0
      %v4484 = vmax.f32 %v4365, 0.0
      %v4485 = vmax.f32 %v4369, 0.0
      %v4486 = vmax.f32 %v4371, 0.0
      %v4487 = vmax.f32 %v4373, 0.0
      %v4488 = vmax.f32 %v4375, 0.0
      %v4489 = vmax.f32 %v4379, 0.0
      %v4490 = vmax.f32 %v4381, 0.0
      %v4491 = vmax.f32 %v4383, 0.0
      %v4492 = vmax.f32 %v4385, 0.0
      %v4493 = vmax.f32 %v4389, 0.0
      %v4494 = vmax.f32 %v4391, 0.0
      %v4495 = vmax.f32 %v4393, 0.0
      %v4496 = vmax.f32 %v4395, 0.0
      %v4497 = vmax.f32 %v4399, 0.0
      %v4498 = vmax.f32 %v4401, 0.0
      %v4499 = vmax.f32 %v4403, 0.0
      %v4500 = vmax.f32 %v4405, 0.0
      %v4501 = vmax.f32 %v4409, 0.0
      %v4502 = vmax.f32 %v4411, 0.0
      %v4503 = vmax.f32 %v4413, 0.0
      %v4504 = vmax.f32 %v4415, 0.0
      %v4505 = vmax.f32 %v4419, 0.0
      %v4506 = vmax.f32 %v4421, 0.0
      %v4507 = vmax.f32 %v4423, 0.0
      %v4508 = vmax.f32 %v4425, 0.0
      %v4509 = vmax.f32 %v4429, 0.0
      %v4510 = vmax.f32 %v4431, 0.0
      %v4511 = vmax.f32 %v4433, 0.0
      %v4512 = vmax.f32 %v4435, 0.0
      %v4513 = vmax.f32 %v4439, 0.0
      %v4514 = vmax.f32 %v4441, 0.0
      %v4515 = vmax.f32 %v4443, 0.0
      %v4516 = vmax.f32 %v4445, 0.0
      %v4517 = vmax.f32 %v4449, 0.0
      %v4518 = vmax.f32 %v4451, 0.0
      %v4519 = vmax.f32 %v4453, 0.0
      %v4520 = vmax.f32 %v4455, 0.0
      %v4521 = vpack.c.bf16 %v4459, %v4457
      %v4522 = vpack.c.bf16 %v4460, %v4458
      %v4523 = vpack.c.bf16 %v4463, %v4461
      %v4524 = vpack.c.bf16 %v4464, %v4462
      %v4525 = vpack.c.bf16 %v4467, %v4465
      %v4526 = vpack.c.bf16 %v4468, %v4466
      %v4527 = vpack.c.bf16 %v4471, %v4469
      %v4528 = vpack.c.bf16 %v4472, %v4470
      %v4529 = vpack.c.bf16 %v4475, %v4473
      %v4530 = vpack.c.bf16 %v4476, %v4474
      %v4531 = vpack.c.bf16 %v4479, %v4477
      %v4532 = vpack.c.bf16 %v4480, %v4478
      %v4533 = vpack.c.bf16 %v4483, %v4481
      %v4534 = vpack.c.bf16 %v4484, %v4482
      %v4535 = vpack.c.bf16 %v4487, %v4485
      %v4536 = vpack.c.bf16 %v4488, %v4486
      %v4537 = vpack.c.bf16 %v4491, %v4489
      %v4538 = vpack.c.bf16 %v4492, %v4490
      %v4539 = vpack.c.bf16 %v4495, %v4493
      %v4540 = vpack.c.bf16 %v4496, %v4494
      %v4541 = vpack.c.bf16 %v4499, %v4497
      %v4542 = vpack.c.bf16 %v4500, %v4498
      %v4543 = vpack.c.bf16 %v4503, %v4501
      %v4544 = vpack.c.bf16 %v4504, %v4502
      %v4545 = vpack.c.bf16 %v4507, %v4505
      %v4546 = vpack.c.bf16 %v4508, %v4506
      %v4547 = vpack.c.bf16 %v4511, %v4509
      %v4548 = vpack.c.bf16 %v4512, %v4510
      %v4549 = vpack.c.bf16 %v4515, %v4513
      %v4550 = vpack.c.bf16 %v4516, %v4514
      %v4551 = vpack.c.bf16 %v4519, %v4517
      %v4552 = vpack.c.bf16 %v4520, %v4518
      %v4553 = vld [vmem:[%s8] sm:$0xff]
      %v4554 = vld [vmem:[%s8 + $0x8] sm:$0xff]
      %v4555 = vld [vmem:[%s8 + $0x10] sm:$0xff]
      %v4556 = vld [vmem:[%s8 + $0x18] sm:$0xff]
      %v4557 = vld [vmem:[%s8 + $0x20] sm:$0xff]
      %v4558 = vld [vmem:[%s8 + $0x28] sm:$0xff]
      %v4559 = vld [vmem:[%s8 + $0x30] sm:$0xff]
      %v4560 = vld [vmem:[%s8 + $0x38] sm:$0xff]
      %v4561 = vld [vmem:[%s8 + $0x40] sm:$0xff]
      %v4562 = vld [vmem:[%s8 + $0x48] sm:$0xff]
      %v4563 = vld [vmem:[%s8 + $0x50] sm:$0xff]
      %v4564 = vld [vmem:[%s8 + $0x58] sm:$0xff]
      %v4565 = vld [vmem:[%s8 + $0x60] sm:$0xff]
      %v4566 = vld [vmem:[%s8 + $0x68] sm:$0xff]
      %v4567 = vld [vmem:[%s8 + $0x70] sm:$0xff]
      %v4568 = vld [vmem:[%s8 + $0x78] sm:$0xff]
      %v4569 = vld [vmem:[%s8 + $0x80] sm:$0xff]
      %v4570 = vld [vmem:[%s8 + $0x88] sm:$0xff]
      %v4571 = vld [vmem:[%s8 + $0x90] sm:$0xff]
      %v4572 = vld [vmem:[%s8 + $0x98] sm:$0xff]
      %v4573 = vld [vmem:[%s8 + $0xa0] sm:$0xff]
      %v4574 = vld [vmem:[%s8 + $0xa8] sm:$0xff]
      %v4575 = vld [vmem:[%s8 + $0xb0] sm:$0xff]
      %v4576 = vld [vmem:[%s8 + $0xb8] sm:$0xff]
      %v4577 = vld [vmem:[%s8 + $0xc0] sm:$0xff]
      %v4578 = vld [vmem:[%s8 + $0xc8] sm:$0xff]
      %v4579 = vld [vmem:[%s8 + $0xd0] sm:$0xff]
      %v4580 = vld [vmem:[%s8 + $0xd8] sm:$0xff]
      %v4581 = vld [vmem:[%s8 + $0xe0] sm:$0xff]
      %v4582 = vld [vmem:[%s8 + $0xe8] sm:$0xff]
      %v4583 = vld [vmem:[%s8 + $0xf0] sm:$0xff]
      %v4584 = vld [vmem:[%s8 + $0xf8] sm:$0xff]
      %v4585 = vld [vmem:[%s8 + $0x100] sm:$0xff]
      %v4586 = vld [vmem:[%s8 + $0x108] sm:$0xff]
      %v4587 = vld [vmem:[%s8 + $0x110] sm:$0xff]
      %v4588 = vld [vmem:[%s8 + $0x118] sm:$0xff]
      %v4589 = vld [vmem:[%s8 + $0x120] sm:$0xff]
      %v4590 = vld [vmem:[%s8 + $0x128] sm:$0xff]
      %v4591 = vld [vmem:[%s8 + $0x130] sm:$0xff]
      %v4592 = vld [vmem:[%s8 + $0x138] sm:$0xff]
      %v4593 = vld [vmem:[%s8 + $0x140] sm:$0xff]
      %v4594 = vld [vmem:[%s8 + $0x148] sm:$0xff]
      %v4595 = vld [vmem:[%s8 + $0x150] sm:$0xff]
      %v4596 = vld [vmem:[%s8 + $0x158] sm:$0xff]
      %v4597 = vld [vmem:[%s8 + $0x160] sm:$0xff]
      %v4598 = vld [vmem:[%s8 + $0x168] sm:$0xff]
      %v4599 = vld [vmem:[%s8 + $0x170] sm:$0xff]
      %v4600 = vld [vmem:[%s8 + $0x178] sm:$0xff]
      %v4601 = vld [vmem:[%s8 + $0x180] sm:$0xff]
      %v4602 = vld [vmem:[%s8 + $0x188] sm:$0xff]
      %v4603 = vld [vmem:[%s8 + $0x190] sm:$0xff]
      %v4604 = vld [vmem:[%s8 + $0x198] sm:$0xff]
      %v4605 = vld [vmem:[%s8 + $0x1a0] sm:$0xff]
      %v4606 = vld [vmem:[%s8 + $0x1a8] sm:$0xff]
      %v4607 = vld [vmem:[%s8 + $0x1b0] sm:$0xff]
      %v4608 = vld [vmem:[%s8 + $0x1b8] sm:$0xff]
      %v4609 = vld [vmem:[%s8 + $0x1c0] sm:$0xff]
      %v4610 = vld [vmem:[%s8 + $0x1c8] sm:$0xff]
      %v4611 = vld [vmem:[%s8 + $0x1d0] sm:$0xff]
      %v4612 = vld [vmem:[%s8 + $0x1d8] sm:$0xff]
      %v4613 = vld [vmem:[%s8 + $0x1e0] sm:$0xff]
      %v4614 = vld [vmem:[%s8 + $0x1e8] sm:$0xff]
      %v4615 = vld [vmem:[%s8 + $0x1f0] sm:$0xff]
      %v4616 = vld [vmem:[%s8 + $0x1f8] sm:$0xff]
      %v4617 = vld [vmem:[%s9] sm:$0xf]
      %v4619 = vlaneseq
      %v4620 = vshrl.u32 %v4619, 7
      %v4621 = vsub.s32 0, %v4620
      %v4622 = vrot.slane %v4617, %v4621
      %v4623 = vlaneseq
      %v4624 = vshrl.u32 %v4623, 7
      %v4625 = vsub.s32 1, %v4624
      %v4626 = vrot.slane %v4617, %v4625
      %v4627 = vlaneseq
      %v4628 = vshrl.u32 %v4627, 7
      %v4629 = vsub.s32 2, %v4628
      %v4630 = vrot.slane %v4617, %v4629
      %v4631 = vlaneseq
      %v4632 = vshrl.u32 %v4631, 7
      %v4633 = vsub.s32 3, %v4632
      %v4634 = vrot.slane %v4617, %v4633
      %v4703 = vunpack.c.l.b16 %v4553
      %v4704 = vunpack.c.h.b16 %v4553
      %v4705 = vunpack.c.l.b16 %v4554
      %v4706 = vunpack.c.h.b16 %v4554
      %v4707 = vunpack.c.l.b16 %v4555
      %v4708 = vunpack.c.h.b16 %v4555
      %v4709 = vunpack.c.l.b16 %v4556
      %v4710 = vunpack.c.h.b16 %v4556
      %v4711 = vunpack.c.l.b16 %v4557
      %v4712 = vunpack.c.h.b16 %v4557
      %v4713 = vunpack.c.l.b16 %v4558
      %v4714 = vunpack.c.h.b16 %v4558
      %v4715 = vunpack.c.l.b16 %v4559
      %v4716 = vunpack.c.h.b16 %v4559
      %v4717 = vunpack.c.l.b16 %v4560
      %v4718 = vunpack.c.h.b16 %v4560
      %v4719 = vunpack.c.l.b16 %v4561
      %v4720 = vunpack.c.h.b16 %v4561
      %v4721 = vunpack.c.l.b16 %v4562
      %v4722 = vunpack.c.h.b16 %v4562
      %v4723 = vunpack.c.l.b16 %v4563
      %v4724 = vunpack.c.h.b16 %v4563
      %v4725 = vunpack.c.l.b16 %v4564
      %v4726 = vunpack.c.h.b16 %v4564
      %v4727 = vunpack.c.l.b16 %v4565
      %v4728 = vunpack.c.h.b16 %v4565
      %v4729 = vunpack.c.l.b16 %v4566
      %v4730 = vunpack.c.h.b16 %v4566
      %v4731 = vunpack.c.l.b16 %v4567
      %v4732 = vunpack.c.h.b16 %v4567
      %v4733 = vunpack.c.l.b16 %v4568
      %v4734 = vunpack.c.h.b16 %v4568
      %v4735 = vunpack.c.l.b16 %v4569
      %v4736 = vunpack.c.h.b16 %v4569
      %v4737 = vunpack.c.l.b16 %v4570
      %v4738 = vunpack.c.h.b16 %v4570
      %v4739 = vunpack.c.l.b16 %v4571
      %v4740 = vunpack.c.h.b16 %v4571
      %v4741 = vunpack.c.l.b16 %v4572
      %v4742 = vunpack.c.h.b16 %v4572
      %v4743 = vunpack.c.l.b16 %v4573
      %v4744 = vunpack.c.h.b16 %v4573
      %v4745 = vunpack.c.l.b16 %v4574
      %v4746 = vunpack.c.h.b16 %v4574
      %v4747 = vunpack.c.l.b16 %v4575
      %v4748 = vunpack.c.h.b16 %v4575
      %v4749 = vunpack.c.l.b16 %v4576
      %v4750 = vunpack.c.h.b16 %v4576
      %v4751 = vunpack.c.l.b16 %v4577
      %v4752 = vunpack.c.h.b16 %v4577
      %v4753 = vunpack.c.l.b16 %v4578
      %v4754 = vunpack.c.h.b16 %v4578
      %v4755 = vunpack.c.l.b16 %v4579
      %v4756 = vunpack.c.h.b16 %v4579
      %v4757 = vunpack.c.l.b16 %v4580
      %v4758 = vunpack.c.h.b16 %v4580
      %v4759 = vunpack.c.l.b16 %v4581
      %v4760 = vunpack.c.h.b16 %v4581
      %v4761 = vunpack.c.l.b16 %v4582
      %v4762 = vunpack.c.h.b16 %v4582
      %v4763 = vunpack.c.l.b16 %v4583
      %v4764 = vunpack.c.h.b16 %v4583
      %v4765 = vunpack.c.l.b16 %v4584
      %v4766 = vunpack.c.h.b16 %v4584
      %v4767 = vunpack.c.l.b16 %v4585
      %v4768 = vunpack.c.h.b16 %v4585
      %v4769 = vunpack.c.l.b16 %v4586
      %v4770 = vunpack.c.h.b16 %v4586
      %v4771 = vunpack.c.l.b16 %v4587
      %v4772 = vunpack.c.h.b16 %v4587
      %v4773 = vunpack.c.l.b16 %v4588
      %v4774 = vunpack.c.h.b16 %v4588
      %v4775 = vunpack.c.l.b16 %v4589
      %v4776 = vunpack.c.h.b16 %v4589
      %v4777 = vunpack.c.l.b16 %v4590
      %v4778 = vunpack.c.h.b16 %v4590
      %v4779 = vunpack.c.l.b16 %v4591
      %v4780 = vunpack.c.h.b16 %v4591
      %v4781 = vunpack.c.l.b16 %v4592
      %v4782 = vunpack.c.h.b16 %v4592
      %v4783 = vunpack.c.l.b16 %v4593
      %v4784 = vunpack.c.h.b16 %v4593
      %v4785 = vunpack.c.l.b16 %v4594
      %v4786 = vunpack.c.h.b16 %v4594
      %v4787 = vunpack.c.l.b16 %v4595
      %v4788 = vunpack.c.h.b16 %v4595
      %v4789 = vunpack.c.l.b16 %v4596
      %v4790 = vunpack.c.h.b16 %v4596
      %v4791 = vunpack.c.l.b16 %v4597
      %v4792 = vunpack.c.h.b16 %v4597
      %v4793 = vunpack.c.l.b16 %v4598
      %v4794 = vunpack.c.h.b16 %v4598
      %v4795 = vunpack.c.l.b16 %v4599
      %v4796 = vunpack.c.h.b16 %v4599
      %v4797 = vunpack.c.l.b16 %v4600
      %v4798 = vunpack.c.h.b16 %v4600
      %v4799 = vunpack.c.l.b16 %v4601
      %v4800 = vunpack.c.h.b16 %v4601
      %v4801 = vunpack.c.l.b16 %v4602
      %v4802 = vunpack.c.h.b16 %v4602
      %v4803 = vunpack.c.l.b16 %v4603
      %v4804 = vunpack.c.h.b16 %v4603
      %v4805 = vunpack.c.l.b16 %v4604
      %v4806 = vunpack.c.h.b16 %v4604
      %v4807 = vunpack.c.l.b16 %v4605
      %v4808 = vunpack.c.h.b16 %v4605
      %v4809 = vunpack.c.l.b16 %v4606
      %v4810 = vunpack.c.h.b16 %v4606
      %v4811 = vunpack.c.l.b16 %v4607
      %v4812 = vunpack.c.h.b16 %v4607
      %v4813 = vunpack.c.l.b16 %v4608
      %v4814 = vunpack.c.h.b16 %v4608
      %v4815 = vunpack.c.l.b16 %v4609
      %v4816 = vunpack.c.h.b16 %v4609
      %v4817 = vunpack.c.l.b16 %v4610
      %v4818 = vunpack.c.h.b16 %v4610
      %v4819 = vunpack.c.l.b16 %v4611
      %v4820 = vunpack.c.h.b16 %v4611
      %v4821 = vunpack.c.l.b16 %v4612
      %v4822 = vunpack.c.h.b16 %v4612
      %v4823 = vunpack.c.l.b16 %v4613
      %v4824 = vunpack.c.h.b16 %v4613
      %v4825 = vunpack.c.l.b16 %v4614
      %v4826 = vunpack.c.h.b16 %v4614
      %v4827 = vunpack.c.l.b16 %v4615
      %v4828 = vunpack.c.h.b16 %v4615
      %v4829 = vunpack.c.l.b16 %v4616
      %v4830 = vunpack.c.h.b16 %v4616
      %v4831 = vpack.c.b16 %v4707, %v4703
      %v4832 = vpack.c.b16 %v4708, %v4704
      %v4833 = vpack.c.b16 %v4709, %v4705
      %v4834 = vpack.c.b16 %v4710, %v4706
      %v4835 = vpack.c.b16 %v4715, %v4711
      %v4836 = vpack.c.b16 %v4716, %v4712
      %v4837 = vpack.c.b16 %v4717, %v4713
      %v4838 = vpack.c.b16 %v4718, %v4714
      %v4839 = vpack.c.b16 %v4723, %v4719
      %v4840 = vpack.c.b16 %v4724, %v4720
      %v4841 = vpack.c.b16 %v4725, %v4721
      %v4842 = vpack.c.b16 %v4726, %v4722
      %v4843 = vpack.c.b16 %v4731, %v4727
      %v4844 = vpack.c.b16 %v4732, %v4728
      %v4845 = vpack.c.b16 %v4733, %v4729
      %v4846 = vpack.c.b16 %v4734, %v4730
      %v4847 = vpack.c.b16 %v4739, %v4735
      %v4848 = vpack.c.b16 %v4740, %v4736
      %v4849 = vpack.c.b16 %v4741, %v4737
      %v4850 = vpack.c.b16 %v4742, %v4738
      %v4851 = vpack.c.b16 %v4747, %v4743
      %v4852 = vpack.c.b16 %v4748, %v4744
      %v4853 = vpack.c.b16 %v4749, %v4745
      %v4854 = vpack.c.b16 %v4750, %v4746
      %v4855 = vpack.c.b16 %v4755, %v4751
      %v4856 = vpack.c.b16 %v4756, %v4752
      %v4857 = vpack.c.b16 %v4757, %v4753
      %v4858 = vpack.c.b16 %v4758, %v4754
      %v4859 = vpack.c.b16 %v4763, %v4759
      %v4860 = vpack.c.b16 %v4764, %v4760
      %v4861 = vpack.c.b16 %v4765, %v4761
      %v4862 = vpack.c.b16 %v4766, %v4762
      %v4863 = vpack.c.b16 %v4771, %v4767
      %v4864 = vpack.c.b16 %v4772, %v4768
      %v4865 = vpack.c.b16 %v4773, %v4769
      %v4866 = vpack.c.b16 %v4774, %v4770
      %v4867 = vpack.c.b16 %v4779, %v4775
      %v4868 = vpack.c.b16 %v4780, %v4776
      %v4869 = vpack.c.b16 %v4781, %v4777
      %v4870 = vpack.c.b16 %v4782, %v4778
      %v4871 = vpack.c.b16 %v4787, %v4783
      %v4872 = vpack.c.b16 %v4788, %v4784
      %v4873 = vpack.c.b16 %v4789, %v4785
      %v4874 = vpack.c.b16 %v4790, %v4786
      %v4875 = vpack.c.b16 %v4795, %v4791
      %v4876 = vpack.c.b16 %v4796, %v4792
      %v4877 = vpack.c.b16 %v4797, %v4793
      %v4878 = vpack.c.b16 %v4798, %v4794
      %v4879 = vpack.c.b16 %v4803, %v4799
      %v4880 = vpack.c.b16 %v4804, %v4800
      %v4881 = vpack.c.b16 %v4805, %v4801
      %v4882 = vpack.c.b16 %v4806, %v4802
      %v4883 = vpack.c.b16 %v4811, %v4807
      %v4884 = vpack.c.b16 %v4812, %v4808
      %v4885 = vpack.c.b16 %v4813, %v4809
      %v4886 = vpack.c.b16 %v4814, %v4810
      %v4887 = vpack.c.b16 %v4819, %v4815
      %v4888 = vpack.c.b16 %v4820, %v4816
      %v4889 = vpack.c.b16 %v4821, %v4817
      %v4890 = vpack.c.b16 %v4822, %v4818
      %v4891 = vpack.c.b16 %v4827, %v4823
      %v4892 = vpack.c.b16 %v4828, %v4824
      %v4893 = vpack.c.b16 %v4829, %v4825
      %v4894 = vpack.c.b16 %v4830, %v4826
      %4959 = vmatprep.subr.bf16.mxu0 %v4832
      %4960 = vmatpush1.bf16.msra.mxu0 %v4831
      %4961 = vmatprep.subr.bf16.mxu0 %v4836
      %4962 = vmatpush1.bf16.msra.mxu0 %v4835
      %4963 = vmatprep.subr.bf16.mxu0 %v4840
      %4964 = vmatpush1.bf16.msra.mxu0 %v4839
      %4965 = vmatprep.subr.bf16.mxu0 %v4844
      %4966 = vmatpush1.bf16.msra.mxu0 %v4843
      %4967 = vmatprep.subr.bf16.mxu0 %v4848
      %4968 = vmatpush1.bf16.msra.mxu0 %v4847
      %4969 = vmatprep.subr.bf16.mxu0 %v4852
      %4970 = vmatpush1.bf16.msra.mxu0 %v4851
      %4971 = vmatprep.subr.bf16.mxu0 %v4856
      %4972 = vmatpush1.bf16.msra.mxu0 %v4855
      %4973 = vmatprep.subr.bf16.mxu0 %v4860
      %4974 = vmatpush1.bf16.msra.mxu0 %v4859
      %4975 = vmatprep.subr.bf16.mxu0 %v4864
      %4976 = vmatpush1.bf16.msra.mxu0 %v4863
      %4977 = vmatprep.subr.bf16.mxu0 %v4868
      %4978 = vmatpush1.bf16.msra.mxu0 %v4867
      %4979 = vmatprep.subr.bf16.mxu0 %v4872
      %4980 = vmatpush1.bf16.msra.mxu0 %v4871
      %4981 = vmatprep.subr.bf16.mxu0 %v4876
      %4982 = vmatpush1.bf16.msra.mxu0 %v4875
      %4983 = vmatprep.subr.bf16.mxu0 %v4880
      %4984 = vmatpush1.bf16.msra.mxu0 %v4879
      %4985 = vmatprep.subr.bf16.mxu0 %v4884
      %4986 = vmatpush1.bf16.msra.mxu0 %v4883
      %4987 = vmatprep.subr.bf16.mxu0 %v4888
      %4988 = vmatpush1.bf16.msra.mxu0 %v4887
      %4989 = vmatprep.subr.bf16.mxu0 %v4892
      %4990 = vmatpush1.bf16.msra.mxu0 %v4891
      %4991 = vmatprep.mubr.bf16.mxu0 %v4522
      %4992 = vmatmul.mubr.bf16.gmra.mrb[0].mxu0 %v4521
      %v4993 = vpop.f32.mrb[0].mxu0
      %v4994 = vadd.f32 %v4622, %v4993
      %v4995 = vpop.f32.mrb[0].mxu0
      %v4996 = vadd.f32 %v4626, %v4995
      %v4997 = vpop.f32.mrb[0].mxu0
      %v4998 = vadd.f32 %v4622, %v4997
      %v4999 = vpop.f32.mrb[0].mxu0
      %v5000 = vadd.f32 %v4626, %v4999
      %5001 = vmatprep.mubr.bf16.mxu0 %v4524
      %5002 = vmatmul.mubr.bf16.gmra.mrb[0].mxu0 %v4523
      %v5003 = vpop.f32.mrb[0].mxu0
      %v5004 = vadd.f32 %v4622, %v5003
      %v5005 = vpop.f32.mrb[0].mxu0
      %v5006 = vadd.f32 %v4626, %v5005
      %v5007 = vpop.f32.mrb[0].mxu0
      %v5008 = vadd.f32 %v4622, %v5007
      %v5009 = vpop.f32.mrb[0].mxu0
      %v5010 = vadd.f32 %v4626, %v5009
      %5011 = vmatprep.mubr.bf16.mxu0 %v4526
      %5012 = vmatmul.mubr.bf16.gmra.mrb[0].mxu0 %v4525
      %v5013 = vpop.f32.mrb[0].mxu0
      %v5014 = vadd.f32 %v4622, %v5013
      %v5015 = vpop.f32.mrb[0].mxu0
      %v5016 = vadd.f32 %v4626, %v5015
      %v5017 = vpop.f32.mrb[0].mxu0
      %v5018 = vadd.f32 %v4622, %v5017
      %v5019 = vpop.f32.mrb[0].mxu0
      %v5020 = vadd.f32 %v4626, %v5019
      %5021 = vmatprep.mubr.bf16.mxu0 %v4528
      %5022 = vmatmul.mubr.bf16.gmra.mrb[0].mxu0 %v4527
      %v5023 = vpop.f32.mrb[0].mxu0
      %v5024 = vadd.f32 %v4622, %v5023
      %v5025 = vpop.f32.mrb[0].mxu0
      %v5026 = vadd.f32 %v4626, %v5025
      %v5027 = vpop.f32.mrb[0].mxu0
      %v5028 = vadd.f32 %v4622, %v5027
      %v5029 = vpop.f32.mrb[0].mxu0
      %v5030 = vadd.f32 %v4626, %v5029
      %5031 = vmatprep.mubr.bf16.mxu0 %v4530
      %5032 = vmatmul.mubr.bf16.gmra.mrb[0].mxu0 %v4529
      %v5033 = vpop.f32.mrb[0].mxu0
      %v5034 = vadd.f32 %v4622, %v5033
      %v5035 = vpop.f32.mrb[0].mxu0
      %v5036 = vadd.f32 %v4626, %v5035
      %v5037 = vpop.f32.mrb[0].mxu0
      %v5038 = vadd.f32 %v4622, %v5037
      %v5039 = vpop.f32.mrb[0].mxu0
      %v5040 = vadd.f32 %v4626, %v5039
      %5041 = vmatprep.mubr.bf16.mxu0 %v4532
      %5042 = vmatmul.mubr.bf16.gmra.mrb[0].mxu0 %v4531
      %v5043 = vpop.f32.mrb[0].mxu0
      %v5044 = vadd.f32 %v4622, %v5043
      %v5045 = vpop.f32.mrb[0].mxu0
      %v5046 = vadd.f32 %v4626, %v5045
      %v5047 = vpop.f32.mrb[0].mxu0
      %v5048 = vadd.f32 %v4622, %v5047
      %v5049 = vpop.f32.mrb[0].mxu0
      %v5050 = vadd.f32 %v4626, %v5049
      %5051 = vmatprep.mubr.bf16.mxu0 %v4534
      %5052 = vmatmul.mubr.bf16.gmra.mrb[0].mxu0 %v4533
      %v5053 = vpop.f32.mrb[0].mxu0
      %v5054 = vadd.f32 %v4622, %v5053
      %v5055 = vpop.f32.mrb[0].mxu0
      %v5056 = vadd.f32 %v4626, %v5055
      %v5057 = vpop.f32.mrb[0].mxu0
      %v5058 = vadd.f32 %v4622, %v5057
      %v5059 = vpop.f32.mrb[0].mxu0
      %v5060 = vadd.f32 %v4626, %v5059
      %5061 = vmatprep.mubr.bf16.mxu0 %v4536
      %5062 = vmatmul.mubr.bf16.gmra.mrb[0].mxu0 %v4535
      %v5063 = vpop.f32.mrb[0].mxu0
      %v5064 = vadd.f32 %v4622, %v5063
      %v5065 = vpop.f32.mrb[0].mxu0
      %v5066 = vadd.f32 %v4626, %v5065
      %v5067 = vpop.f32.mrb[0].mxu0
      %v5068 = vadd.f32 %v4622, %v5067
      %v5069 = vpop.f32.mrb[0].mxu0
      %v5070 = vadd.f32 %v4626, %v5069
      %5071 = vmatprep.mubr.bf16.mxu0 %v4538
      %5072 = vmatmul.mubr.bf16.gmra.mrb[0].mxu0 %v4537
      %v5073 = vpop.f32.mrb[0].mxu0
      %v5074 = vadd.f32 %v4622, %v5073
      %v5075 = vpop.f32.mrb[0].mxu0
      %v5076 = vadd.f32 %v4626, %v5075
      %v5077 = vpop.f32.mrb[0].mxu0
      %v5078 = vadd.f32 %v4622, %v5077
      %v5079 = vpop.f32.mrb[0].mxu0
      %v5080 = vadd.f32 %v4626, %v5079
      %5081 = vmatprep.mubr.bf16.mxu0 %v4540
      %5082 = vmatmul.mubr.bf16.gmra.mrb[0].mxu0 %v4539
      %v5083 = vpop.f32.mrb[0].mxu0
      %v5084 = vadd.f32 %v4622, %v5083
      %v5085 = vpop.f32.mrb[0].mxu0
      %v5086 = vadd.f32 %v4626, %v5085
      %v5087 = vpop.f32.mrb[0].mxu0
      %v5088 = vadd.f32 %v4622, %v5087
      %v5089 = vpop.f32.mrb[0].mxu0
      %v5090 = vadd.f32 %v4626, %v5089
      %5091 = vmatprep.mubr.bf16.mxu0 %v4542
      %5092 = vmatmul.mubr.bf16.gmra.mrb[0].mxu0 %v4541
      %v5093 = vpop.f32.mrb[0].mxu0
      %v5094 = vadd.f32 %v4622, %v5093
      %v5095 = vpop.f32.mrb[0].mxu0
      %v5096 = vadd.f32 %v4626, %v5095
      %v5097 = vpop.f32.mrb[0].mxu0
      %v5098 = vadd.f32 %v4622, %v5097
      %v5099 = vpop.f32.mrb[0].mxu0
      %v5100 = vadd.f32 %v4626, %v5099
      %5101 = vmatprep.mubr.bf16.mxu0 %v4544
      %5102 = vmatmul.mubr.bf16.gmra.mrb[0].mxu0 %v4543
      %v5103 = vpop.f32.mrb[0].mxu0
      %v5104 = vadd.f32 %v4622, %v5103
      %v5105 = vpop.f32.mrb[0].mxu0
      %v5106 = vadd.f32 %v4626, %v5105
      %v5107 = vpop.f32.mrb[0].mxu0
      %v5108 = vadd.f32 %v4622, %v5107
      %v5109 = vpop.f32.mrb[0].mxu0
      %v5110 = vadd.f32 %v4626, %v5109
      %5111 = vmatprep.mubr.bf16.mxu0 %v4546
      %5112 = vmatmul.mubr.bf16.gmra.mrb[0].mxu0 %v4545
      %v5113 = vpop.f32.mrb[0].mxu0
      %v5114 = vadd.f32 %v4622, %v5113
      %v5115 = vpop.f32.mrb[0].mxu0
      %v5116 = vadd.f32 %v4626, %v5115
      %v5117 = vpop.f32.mrb[0].mxu0
      %v5118 = vadd.f32 %v4622, %v5117
      %v5119 = vpop.f32.mrb[0].mxu0
      %v5120 = vadd.f32 %v4626, %v5119
      %5121 = vmatprep.mubr.bf16.mxu0 %v4548
      %5122 = vmatmul.mubr.bf16.gmra.mrb[0].mxu0 %v4547
      %v5123 = vpop.f32.mrb[0].mxu0
      %v5124 = vadd.f32 %v4622, %v5123
      %v5125 = vpop.f32.mrb[0].mxu0
      %v5126 = vadd.f32 %v4626, %v5125
      %v5127 = vpop.f32.mrb[0].mxu0
      %v5128 = vadd.f32 %v4622, %v5127
      %v5129 = vpop.f32.mrb[0].mxu0
      %v5130 = vadd.f32 %v4626, %v5129
      %5131 = vmatprep.mubr.bf16.mxu0 %v4550
      %5132 = vmatmul.mubr.bf16.gmra.mrb[0].mxu0 %v4549
      %v5133 = vpop.f32.mrb[0].mxu0
      %v5134 = vadd.f32 %v4622, %v5133
      %v5135 = vpop.f32.mrb[0].mxu0
      %v5136 = vadd.f32 %v4626, %v5135
      %v5137 = vpop.f32.mrb[0].mxu0
      %v5138 = vadd.f32 %v4622, %v5137
      %v5139 = vpop.f32.mrb[0].mxu0
      %v5140 = vadd.f32 %v4626, %v5139
      %5141 = vmatprep.mubr.bf16.mxu0 %v4552
      %5142 = vmatmul.mubr.bf16.gmra.mrb[0].mxu0 %v4551
      %v5143 = vpop.f32.mrb[0].mxu0
      %v5144 = vadd.f32 %v4622, %v5143
      %v5145 = vpop.f32.mrb[0].mxu0
      %v5146 = vadd.f32 %v4626, %v5145
      %v5147 = vpop.f32.mrb[0].mxu0
      %v5148 = vadd.f32 %v4622, %v5147
      %v5149 = vpop.f32.mrb[0].mxu0
      %v5150 = vadd.f32 %v4626, %v5149
      %5151 = vdwg.mxu0
      %5152 = vmatprep.subr.bf16.mxu0 %v4834
      %5153 = vmatpush1.bf16.msra.mxu0 %v4833
      %5154 = vmatprep.subr.bf16.mxu0 %v4838
      %5155 = vmatpush1.bf16.msra.mxu0 %v4837
      %5156 = vmatprep.subr.bf16.mxu0 %v4842
      %5157 = vmatpush1.bf16.msra.mxu0 %v4841
      %5158 = vmatprep.subr.bf16.mxu0 %v4846
      %5159 = vmatpush1.bf16.msra.mxu0 %v4845
      %5160 = vmatprep.subr.bf16.mxu0 %v4850
      %5161 = vmatpush1.bf16.msra.mxu0 %v4849
      %5162 = vmatprep.subr.bf16.mxu0 %v4854
      %5163 = vmatpush1.bf16.msra.mxu0 %v4853
      %5164 = vmatprep.subr.bf16.mxu0 %v4858
      %5165 = vmatpush1.bf16.msra.mxu0 %v4857
      %5166 = vmatprep.subr.bf16.mxu0 %v4862
      %5167 = vmatpush1.bf16.msra.mxu0 %v4861
      %5168 = vmatprep.subr.bf16.mxu0 %v4866
      %5169 = vmatpush1.bf16.msra.mxu0 %v4865
      %5170 = vmatprep.subr.bf16.mxu0 %v4870
      %5171 = vmatpush1.bf16.msra.mxu0 %v4869
      %5172 = vmatprep.subr.bf16.mxu0 %v4874
      %5173 = vmatpush1.bf16.msra.mxu0 %v4873
      %5174 = vmatprep.subr.bf16.mxu0 %v4878
      %5175 = vmatpush1.bf16.msra.mxu0 %v4877
      %5176 = vmatprep.subr.bf16.mxu0 %v4882
      %5177 = vmatpush1.bf16.msra.mxu0 %v4881
      %5178 = vmatprep.subr.bf16.mxu0 %v4886
      %5179 = vmatpush1.bf16.msra.mxu0 %v4885
      %5180 = vmatprep.subr.bf16.mxu0 %v4890
      %5181 = vmatpush1.bf16.msra.mxu0 %v4889
      %5182 = vmatprep.subr.bf16.mxu0 %v4894
      %5183 = vmatpush1.bf16.msra.mxu0 %v4893
      %5184 = vmatprep.mubr.bf16.mxu0 %v4522
      %5185 = vmatmul.mubr.bf16.gmra.mrb[0].mxu0 %v4521
      %v5186 = vpop.f32.mrb[0].mxu0
      %v5187 = vadd.f32 %v4630, %v5186
      %v5188 = vpop.f32.mrb[0].mxu0
      %v5189 = vadd.f32 %v4634, %v5188
      %v5190 = vpop.f32.mrb[0].mxu0
      %v5191 = vadd.f32 %v4630, %v5190
      %v5192 = vpop.f32.mrb[0].mxu0
      %v5193 = vadd.f32 %v4634, %v5192
      %5194 = vmatprep.mubr.bf16.mxu0 %v4524
      %5195 = vmatmul.mubr.bf16.gmra.mrb[0].mxu0 %v4523
      %v5196 = vpop.f32.mrb[0].mxu0
      %v5197 = vadd.f32 %v4630, %v5196
      %v5198 = vpop.f32.mrb[0].mxu0
      %v5199 = vadd.f32 %v4634, %v5198
      %v5200 = vpop.f32.mrb[0].mxu0
      %v5201 = vadd.f32 %v4630, %v5200
      %v5202 = vpop.f32.mrb[0].mxu0
      %v5203 = vadd.f32 %v4634, %v5202
      %5204 = vmatprep.mubr.bf16.mxu0 %v4526
      %5205 = vmatmul.mubr.bf16.gmra.mrb[0].mxu0 %v4525
      %v5206 = vpop.f32.mrb[0].mxu0
      %v5207 = vadd.f32 %v4630, %v5206
      %v5208 = vpop.f32.mrb[0].mxu0
      %v5209 = vadd.f32 %v4634, %v5208
      %v5210 = vpop.f32.mrb[0].mxu0
      %v5211 = vadd.f32 %v4630, %v5210
      %v5212 = vpop.f32.mrb[0].mxu0
      %v5213 = vadd.f32 %v4634, %v5212
      %5214 = vmatprep.mubr.bf16.mxu0 %v4528
      %5215 = vmatmul.mubr.bf16.gmra.mrb[0].mxu0 %v4527
      %v5216 = vpop.f32.mrb[0].mxu0
      %v5217 = vadd.f32 %v4630, %v5216
      %v5218 = vpop.f32.mrb[0].mxu0
      %v5219 = vadd.f32 %v4634, %v5218
      %v5220 = vpop.f32.mrb[0].mxu0
      %v5221 = vadd.f32 %v4630, %v5220
      %v5222 = vpop.f32.mrb[0].mxu0
      %v5223 = vadd.f32 %v4634, %v5222
      %5224 = vmatprep.mubr.bf16.mxu0 %v4530
      %5225 = vmatmul.mubr.bf16.gmra.mrb[0].mxu0 %v4529
      %v5226 = vpop.f32.mrb[0].mxu0
      %v5227 = vadd.f32 %v4630, %v5226
      %v5228 = vpop.f32.mrb[0].mxu0
      %v5229 = vadd.f32 %v4634, %v5228
      %v5230 = vpop.f32.mrb[0].mxu0
      %v5231 = vadd.f32 %v4630, %v5230
      %v5232 = vpop.f32.mrb[0].mxu0
      %v5233 = vadd.f32 %v4634, %v5232
      %5234 = vmatprep.mubr.bf16.mxu0 %v4532
      %5235 = vmatmul.mubr.bf16.gmra.mrb[0].mxu0 %v4531
      %v5236 = vpop.f32.mrb[0].mxu0
      %v5237 = vadd.f32 %v4630, %v5236
      %v5238 = vpop.f32.mrb[0].mxu0
      %v5239 = vadd.f32 %v4634, %v5238
      %v5240 = vpop.f32.mrb[0].mxu0
      %v5241 = vadd.f32 %v4630, %v5240
      %v5242 = vpop.f32.mrb[0].mxu0
      %v5243 = vadd.f32 %v4634, %v5242
      %5244 = vmatprep.mubr.bf16.mxu0 %v4534
      %5245 = vmatmul.mubr.bf16.gmra.mrb[0].mxu0 %v4533
      %v5246 = vpop.f32.mrb[0].mxu0
      %v5247 = vadd.f32 %v4630, %v5246
      %v5248 = vpop.f32.mrb[0].mxu0
      %v5249 = vadd.f32 %v4634, %v5248
      %v5250 = vpop.f32.mrb[0].mxu0
      %v5251 = vadd.f32 %v4630, %v5250
      %v5252 = vpop.f32.mrb[0].mxu0
      %v5253 = vadd.f32 %v4634, %v5252
      %5254 = vmatprep.mubr.bf16.mxu0 %v4536
      %5255 = vmatmul.mubr.bf16.gmra.mrb[0].mxu0 %v4535
      %v5256 = vpop.f32.mrb[0].mxu0
      %v5257 = vadd.f32 %v4630, %v5256
      %v5258 = vpop.f32.mrb[0].mxu0
      %v5259 = vadd.f32 %v4634, %v5258
      %v5260 = vpop.f32.mrb[0].mxu0
      %v5261 = vadd.f32 %v4630, %v5260
      %v5262 = vpop.f32.mrb[0].mxu0
      %v5263 = vadd.f32 %v4634, %v5262
      %5264 = vmatprep.mubr.bf16.mxu0 %v4538
      %5265 = vmatmul.mubr.bf16.gmra.mrb[0].mxu0 %v4537
      %v5266 = vpop.f32.mrb[0].mxu0
      %v5267 = vadd.f32 %v4630, %v5266
      %v5268 = vpop.f32.mrb[0].mxu0
      %v5269 = vadd.f32 %v4634, %v5268
      %v5270 = vpop.f32.mrb[0].mxu0
      %v5271 = vadd.f32 %v4630, %v5270
      %v5272 = vpop.f32.mrb[0].mxu0
      %v5273 = vadd.f32 %v4634, %v5272
      %5274 = vmatprep.mubr.bf16.mxu0 %v4540
      %5275 = vmatmul.mubr.bf16.gmra.mrb[0].mxu0 %v4539
      %v5276 = vpop.f32.mrb[0].mxu0
      %v5277 = vadd.f32 %v4630, %v5276
      %v5278 = vpop.f32.mrb[0].mxu0
      %v5279 = vadd.f32 %v4634, %v5278
      %v5280 = vpop.f32.mrb[0].mxu0
      %v5281 = vadd.f32 %v4630, %v5280
      %v5282 = vpop.f32.mrb[0].mxu0
      %v5283 = vadd.f32 %v4634, %v5282
      %5284 = vmatprep.mubr.bf16.mxu0 %v4542
      %5285 = vmatmul.mubr.bf16.gmra.mrb[0].mxu0 %v4541
      %v5286 = vpop.f32.mrb[0].mxu0
      %v5287 = vadd.f32 %v4630, %v5286
      %v5288 = vpop.f32.mrb[0].mxu0
      %v5289 = vadd.f32 %v4634, %v5288
      %v5290 = vpop.f32.mrb[0].mxu0
      %v5291 = vadd.f32 %v4630, %v5290
      %v5292 = vpop.f32.mrb[0].mxu0
      %v5293 = vadd.f32 %v4634, %v5292
      %5294 = vmatprep.mubr.bf16.mxu0 %v4544
      %5295 = vmatmul.mubr.bf16.gmra.mrb[0].mxu0 %v4543
      %v5296 = vpop.f32.mrb[0].mxu0
      %v5297 = vadd.f32 %v4630, %v5296
      %v5298 = vpop.f32.mrb[0].mxu0
      %v5299 = vadd.f32 %v4634, %v5298
      %v5300 = vpop.f32.mrb[0].mxu0
      %v5301 = vadd.f32 %v4630, %v5300
      %v5302 = vpop.f32.mrb[0].mxu0
      %v5303 = vadd.f32 %v4634, %v5302
      %5304 = vmatprep.mubr.bf16.mxu0 %v4546
      %5305 = vmatmul.mubr.bf16.gmra.mrb[0].mxu0 %v4545
      %v5306 = vpop.f32.mrb[0].mxu0
      %v5307 = vadd.f32 %v4630, %v5306
      %v5308 = vpop.f32.mrb[0].mxu0
      %v5309 = vadd.f32 %v4634, %v5308
      %v5310 = vpop.f32.mrb[0].mxu0
      %v5311 = vadd.f32 %v4630, %v5310
      %v5312 = vpop.f32.mrb[0].mxu0
      %v5313 = vadd.f32 %v4634, %v5312
      %5314 = vmatprep.mubr.bf16.mxu0 %v4548
      %5315 = vmatmul.mubr.bf16.gmra.mrb[0].mxu0 %v4547
      %v5316 = vpop.f32.mrb[0].mxu0
      %v5317 = vadd.f32 %v4630, %v5316
      %v5318 = vpop.f32.mrb[0].mxu0
      %v5319 = vadd.f32 %v4634, %v5318
      %v5320 = vpop.f32.mrb[0].mxu0
      %v5321 = vadd.f32 %v4630, %v5320
      %v5322 = vpop.f32.mrb[0].mxu0
      %v5323 = vadd.f32 %v4634, %v5322
      %5324 = vmatprep.mubr.bf16.mxu0 %v4550
      %5325 = vmatmul.mubr.bf16.gmra.mrb[0].mxu0 %v4549
      %v5326 = vpop.f32.mrb[0].mxu0
      %v5327 = vadd.f32 %v4630, %v5326
      %v5328 = vpop.f32.mrb[0].mxu0
      %v5329 = vadd.f32 %v4634, %v5328
      %v5330 = vpop.f32.mrb[0].mxu0
      %v5331 = vadd.f32 %v4630, %v5330
      %v5332 = vpop.f32.mrb[0].mxu0
      %v5333 = vadd.f32 %v4634, %v5332
      %5334 = vmatprep.mubr.bf16.mxu0 %v4552
      %5335 = vmatmul.mubr.bf16.gmra.mrb[0].mxu0 %v4551
      %v5336 = vpop.f32.mrb[0].mxu0
      %v5337 = vadd.f32 %v4630, %v5336
      %v5338 = vpop.f32.mrb[0].mxu0
      %v5339 = vadd.f32 %v4634, %v5338
      %v5340 = vpop.f32.mrb[0].mxu0
      %v5341 = vadd.f32 %v4630, %v5340
      %v5342 = vpop.f32.mrb[0].mxu0
      %v5343 = vadd.f32 %v4634, %v5342
      %5344 = vdwg.mxu0
      %v5345 = vmax.f32 %v4994, 0.0
      %v5346 = vmax.f32 %v4996, 0.0
      %v5347 = vmax.f32 %v5187, 0.0
      %v5348 = vmax.f32 %v5189, 0.0
      %v5349 = vmax.f32 %v4998, 0.0
      %v5350 = vmax.f32 %v5000, 0.0
      %v5351 = vmax.f32 %v5191, 0.0
      %v5352 = vmax.f32 %v5193, 0.0
      %v5353 = vmax.f32 %v5004, 0.0
      %v5354 = vmax.f32 %v5006, 0.0
      %v5355 = vmax.f32 %v5197, 0.0
      %v5356 = vmax.f32 %v5199, 0.0
      %v5357 = vmax.f32 %v5008, 0.0
      %v5358 = vmax.f32 %v5010, 0.0
      %v5359 = vmax.f32 %v5201, 0.0
      %v5360 = vmax.f32 %v5203, 0.0
      %v5361 = vmax.f32 %v5014, 0.0
      %v5362 = vmax.f32 %v5016, 0.0
      %v5363 = vmax.f32 %v5207, 0.0
      %v5364 = vmax.f32 %v5209, 0.0
      %v5365 = vmax.f32 %v5018, 0.0
      %v5366 = vmax.f32 %v5020, 0.0
      %v5367 = vmax.f32 %v5211, 0.0
      %v5368 = vmax.f32 %v5213, 0.0
      %v5369 = vmax.f32 %v5024, 0.0
      %v5370 = vmax.f32 %v5026, 0.0
      %v5371 = vmax.f32 %v5217, 0.0
      %v5372 = vmax.f32 %v5219, 0.0
      %v5373 = vmax.f32 %v5028, 0.0
      %v5374 = vmax.f32 %v5030, 0.0
      %v5375 = vmax.f32 %v5221, 0.0
      %v5376 = vmax.f32 %v5223, 0.0
      %v5377 = vmax.f32 %v5034, 0.0
      %v5378 = vmax.f32 %v5036, 0.0
      %v5379 = vmax.f32 %v5227, 0.0
      %v5380 = vmax.f32 %v5229, 0.0
      %v5381 = vmax.f32 %v5038, 0.0
      %v5382 = vmax.f32 %v5040, 0.0
      %v5383 = vmax.f32 %v5231, 0.0
      %v5384 = vmax.f32 %v5233, 0.0
      %v5385 = vmax.f32 %v5044, 0.0
      %v5386 = vmax.f32 %v5046, 0.0
      %v5387 = vmax.f32 %v5237, 0.0
      %v5388 = vmax.f32 %v5239, 0.0
      %v5389 = vmax.f32 %v5048, 0.0
      %v5390 = vmax.f32 %v5050, 0.0
      %v5391 = vmax.f32 %v5241, 0.0
      %v5392 = vmax.f32 %v5243, 0.0
      %v5393 = vmax.f32 %v5054, 0.0
      %v5394 = vmax.f32 %v5056, 0.0
      %v5395 = vmax.f32 %v5247, 0.0
      %v5396 = vmax.f32 %v5249, 0.0
      %v5397 = vmax.f32 %v5058, 0.0
      %v5398 = vmax.f32 %v5060, 0.0
      %v5399 = vmax.f32 %v5251, 0.0
      %v5400 = vmax.f32 %v5253, 0.0
      %v5401 = vmax.f32 %v5064, 0.0
      %v5402 = vmax.f32 %v5066, 0.0
      %v5403 = vmax.f32 %v5257, 0.0
      %v5404 = vmax.f32 %v5259, 0.0
      %v5405 = vmax.f32 %v5068, 0.0
      %v5406 = vmax.f32 %v5070, 0.0
      %v5407 = vmax.f32 %v5261, 0.0
      %v5408 = vmax.f32 %v5263, 0.0
      %v5409 = vmax.f32 %v5074, 0.0
      %v5410 = vmax.f32 %v5076, 0.0
      %v5411 = vmax.f32 %v5267, 0.0
      %v5412 = vmax.f32 %v5269, 0.0
      %v5413 = vmax.f32 %v5078, 0.0
      %v5414 = vmax.f32 %v5080, 0.0
      %v5415 = vmax.f32 %v5271, 0.0
      %v5416 = vmax.f32 %v5273, 0.0
      %v5417 = vmax.f32 %v5084, 0.0
      %v5418 = vmax.f32 %v5086, 0.0
      %v5419 = vmax.f32 %v5277, 0.0
      %v5420 = vmax.f32 %v5279, 0.0
      %v5421 = vmax.f32 %v5088, 0.0
      %v5422 = vmax.f32 %v5090, 0.0
      %v5423 = vmax.f32 %v5281, 0.0
      %v5424 = vmax.f32 %v5283, 0.0
      %v5425 = vmax.f32 %v5094, 0.0
      %v5426 = vmax.f32 %v5096, 0.0
      %v5427 = vmax.f32 %v5287, 0.0
      %v5428 = vmax.f32 %v5289, 0.0
      %v5429 = vmax.f32 %v5098, 0.0
      %v5430 = vmax.f32 %v5100, 0.0
      %v5431 = vmax.f32 %v5291, 0.0
      %v5432 = vmax.f32 %v5293, 0.0
      %v5433 = vmax.f32 %v5104, 0.0
      %v5434 = vmax.f32 %v5106, 0.0
      %v5435 = vmax.f32 %v5297, 0.0
      %v5436 = vmax.f32 %v5299, 0.0
      %v5437 = vmax.f32 %v5108, 0.0
      %v5438 = vmax.f32 %v5110, 0.0
      %v5439 = vmax.f32 %v5301, 0.0
      %v5440 = vmax.f32 %v5303, 0.0
      %v5441 = vmax.f32 %v5114, 0.0
      %v5442 = vmax.f32 %v5116, 0.0
      %v5443 = vmax.f32 %v5307, 0.0
      %v5444 = vmax.f32 %v5309, 0.0
      %v5445 = vmax.f32 %v5118, 0.0
      %v5446 = vmax.f32 %v5120, 0.0
      %v5447 = vmax.f32 %v5311, 0.0
      %v5448 = vmax.f32 %v5313, 0.0
      %v5449 = vmax.f32 %v5124, 0.0
      %v5450 = vmax.f32 %v5126, 0.0
      %v5451 = vmax.f32 %v5317, 0.0
      %v5452 = vmax.f32 %v5319, 0.0
      %v5453 = vmax.f32 %v5128, 0.0
      %v5454 = vmax.f32 %v5130, 0.0
      %v5455 = vmax.f32 %v5321, 0.0
      %v5456 = vmax.f32 %v5323, 0.0
      %v5457 = vmax.f32 %v5134, 0.0
      %v5458 = vmax.f32 %v5136, 0.0
      %v5459 = vmax.f32 %v5327, 0.0
      %v5460 = vmax.f32 %v5329, 0.0
      %v5461 = vmax.f32 %v5138, 0.0
      %v5462 = vmax.f32 %v5140, 0.0
      %v5463 = vmax.f32 %v5331, 0.0
      %v5464 = vmax.f32 %v5333, 0.0
      %v5465 = vmax.f32 %v5144, 0.0
      %v5466 = vmax.f32 %v5146, 0.0
      %v5467 = vmax.f32 %v5337, 0.0
      %v5468 = vmax.f32 %v5339, 0.0
      %v5469 = vmax.f32 %v5148, 0.0
      %v5470 = vmax.f32 %v5150, 0.0
      %v5471 = vmax.f32 %v5341, 0.0
      %v5472 = vmax.f32 %v5343, 0.0
      %v5473 = vpack.c.bf16 %v5349, %v5345
      %v5474 = vpack.c.bf16 %v5350, %v5346
      %v5475 = vpack.c.bf16 %v5351, %v5347
      %v5476 = vpack.c.bf16 %v5352, %v5348
      %v5477 = vpack.c.bf16 %v5357, %v5353
      %v5478 = vpack.c.bf16 %v5358, %v5354
      %v5479 = vpack.c.bf16 %v5359, %v5355
      %v5480 = vpack.c.bf16 %v5360, %v5356
      %v5481 = vpack.c.bf16 %v5365, %v5361
      %v5482 = vpack.c.bf16 %v5366, %v5362
      %v5483 = vpack.c.bf16 %v5367, %v5363
      %v5484 = vpack.c.bf16 %v5368, %v5364
      %v5485 = vpack.c.bf16 %v5373, %v5369
      %v5486 = vpack.c.bf16 %v5374, %v5370
      %v5487 = vpack.c.bf16 %v5375, %v5371
      %v5488 = vpack.c.bf16 %v5376, %v5372
      %v5489 = vpack.c.bf16 %v5381, %v5377
      %v5490 = vpack.c.bf16 %v5382, %v5378
      %v5491 = vpack.c.bf16 %v5383, %v5379
      %v5492 = vpack.c.bf16 %v5384, %v5380
      %v5493 = vpack.c.bf16 %v5389, %v5385
      %v5494 = vpack.c.bf16 %v5390, %v5386
      %v5495 = vpack.c.bf16 %v5391, %v5387
      %v5496 = vpack.c.bf16 %v5392, %v5388
      %v5497 = vpack.c.bf16 %v5397, %v5393
      %v5498 = vpack.c.bf16 %v5398, %v5394
      %v5499 = vpack.c.bf16 %v5399, %v5395
      %v5500 = vpack.c.bf16 %v5400, %v5396
      %v5501 = vpack.c.bf16 %v5405, %v5401
      %v5502 = vpack.c.bf16 %v5406, %v5402
      %v5503 = vpack.c.bf16 %v5407, %v5403
      %v5504 = vpack.c.bf16 %v5408, %v5404
      %v5505 = vpack.c.bf16 %v5413, %v5409
      %v5506 = vpack.c.bf16 %v5414, %v5410
      %v5507 = vpack.c.bf16 %v5415, %v5411
      %v5508 = vpack.c.bf16 %v5416, %v5412
      %v5509 = vpack.c.bf16 %v5421, %v5417
      %v5510 = vpack.c.bf16 %v5422, %v5418
      %v5511 = vpack.c.bf16 %v5423, %v5419
      %v5512 = vpack.c.bf16 %v5424, %v5420
      %v5513 = vpack.c.bf16 %v5429, %v5425
      %v5514 = vpack.c.bf16 %v5430, %v5426
      %v5515 = vpack.c.bf16 %v5431, %v5427
      %v5516 = vpack.c.bf16 %v5432, %v5428
      %v5517 = vpack.c.bf16 %v5437, %v5433
      %v5518 = vpack.c.bf16 %v5438, %v5434
      %v5519 = vpack.c.bf16 %v5439, %v5435
      %v5520 = vpack.c.bf16 %v5440, %v5436
      %v5521 = vpack.c.bf16 %v5445, %v5441
      %v5522 = vpack.c.bf16 %v5446, %v5442
      %v5523 = vpack.c.bf16 %v5447, %v5443
      %v5524 = vpack.c.bf16 %v5448, %v5444
      %v5525 = vpack.c.bf16 %v5453, %v5449
      %v5526 = vpack.c.bf16 %v5454, %v5450
      %v5527 = vpack.c.bf16 %v5455, %v5451
      %v5528 = vpack.c.bf16 %v5456, %v5452
      %v5529 = vpack.c.bf16 %v5461, %v5457
      %v5530 = vpack.c.bf16 %v5462, %v5458
      %v5531 = vpack.c.bf16 %v5463, %v5459
      %v5532 = vpack.c.bf16 %v5464, %v5460
      %v5533 = vpack.c.bf16 %v5469, %v5465
      %v5534 = vpack.c.bf16 %v5470, %v5466
      %v5535 = vpack.c.bf16 %v5471, %v5467
      %v5536 = vpack.c.bf16 %v5472, %v5468
      %v5537 = vld [vmem:[%s10] sm:$0xf]
      %v5538 = vld [vmem:[%s10 + $0x4] sm:$0xf]
      %v5539 = vld [vmem:[%s10 + $0x8] sm:$0xf]
      %v5540 = vld [vmem:[%s10 + $0xc] sm:$0xf]
      %v5541 = vld [vmem:[%s10 + $0x10] sm:$0xf]
      %v5542 = vld [vmem:[%s10 + $0x14] sm:$0xf]
      %v5543 = vld [vmem:[%s10 + $0x18] sm:$0xf]
      %v5544 = vld [vmem:[%s10 + $0x1c] sm:$0xf]
      %v5545 = vld [vmem:[%s10 + $0x20] sm:$0xf]
      %v5546 = vld [vmem:[%s10 + $0x24] sm:$0xf]
      %v5547 = vld [vmem:[%s10 + $0x28] sm:$0xf]
      %v5548 = vld [vmem:[%s10 + $0x2c] sm:$0xf]
      %v5549 = vld [vmem:[%s10 + $0x30] sm:$0xf]
      %v5550 = vld [vmem:[%s10 + $0x34] sm:$0xf]
      %v5551 = vld [vmem:[%s10 + $0x38] sm:$0xf]
      %v5552 = vld [vmem:[%s10 + $0x3c] sm:$0xf]
      %v5553 = vld [vmem:[%s10 + $0x40] sm:$0xf]
      %v5554 = vld [vmem:[%s10 + $0x44] sm:$0xf]
      %v5555 = vld [vmem:[%s10 + $0x48] sm:$0xf]
      %v5556 = vld [vmem:[%s10 + $0x4c] sm:$0xf]
      %v5557 = vld [vmem:[%s10 + $0x50] sm:$0xf]
      %v5558 = vld [vmem:[%s10 + $0x54] sm:$0xf]
      %v5559 = vld [vmem:[%s10 + $0x58] sm:$0xf]
      %v5560 = vld [vmem:[%s10 + $0x5c] sm:$0xf]
      %v5561 = vld [vmem:[%s10 + $0x60] sm:$0xf]
      %v5562 = vld [vmem:[%s10 + $0x64] sm:$0xf]
      %v5563 = vld [vmem:[%s10 + $0x68] sm:$0xf]
      %v5564 = vld [vmem:[%s10 + $0x6c] sm:$0xf]
      %v5565 = vld [vmem:[%s10 + $0x70] sm:$0xf]
      %v5566 = vld [vmem:[%s10 + $0x74] sm:$0xf]
      %v5567 = vld [vmem:[%s10 + $0x78] sm:$0xf]
      %v5568 = vld [vmem:[%s10 + $0x7c] sm:$0xf]
      %v5569 = vld [vmem:[%s10 + $0x80] sm:$0xf]
      %v5570 = vld [vmem:[%s10 + $0x84] sm:$0xf]
      %v5571 = vld [vmem:[%s10 + $0x88] sm:$0xf]
      %v5572 = vld [vmem:[%s10 + $0x8c] sm:$0xf]
      %v5573 = vld [vmem:[%s10 + $0x90] sm:$0xf]
      %v5574 = vld [vmem:[%s10 + $0x94] sm:$0xf]
      %v5575 = vld [vmem:[%s10 + $0x98] sm:$0xf]
      %v5576 = vld [vmem:[%s10 + $0x9c] sm:$0xf]
      %v5577 = vld [vmem:[%s10 + $0xa0] sm:$0xf]
      %v5578 = vld [vmem:[%s10 + $0xa4] sm:$0xf]
      %v5579 = vld [vmem:[%s10 + $0xa8] sm:$0xf]
      %v5580 = vld [vmem:[%s10 + $0xac] sm:$0xf]
      %v5581 = vld [vmem:[%s10 + $0xb0] sm:$0xf]
      %v5582 = vld [vmem:[%s10 + $0xb4] sm:$0xf]
      %v5583 = vld [vmem:[%s10 + $0xb8] sm:$0xf]
      %v5584 = vld [vmem:[%s10 + $0xbc] sm:$0xf]
      %v5585 = vld [vmem:[%s10 + $0xc0] sm:$0xf]
      %v5586 = vld [vmem:[%s10 + $0xc4] sm:$0xf]
      %v5587 = vld [vmem:[%s10 + $0xc8] sm:$0xf]
      %v5588 = vld [vmem:[%s10 + $0xcc] sm:$0xf]
      %v5589 = vld [vmem:[%s10 + $0xd0] sm:$0xf]
      %v5590 = vld [vmem:[%s10 + $0xd4] sm:$0xf]
      %v5591 = vld [vmem:[%s10 + $0xd8] sm:$0xf]
      %v5592 = vld [vmem:[%s10 + $0xdc] sm:$0xf]
      %v5593 = vld [vmem:[%s10 + $0xe0] sm:$0xf]
      %v5594 = vld [vmem:[%s10 + $0xe4] sm:$0xf]
      %v5595 = vld [vmem:[%s10 + $0xe8] sm:$0xf]
      %v5596 = vld [vmem:[%s10 + $0xec] sm:$0xf]
      %v5597 = vld [vmem:[%s10 + $0xf0] sm:$0xf]
      %v5598 = vld [vmem:[%s10 + $0xf4] sm:$0xf]
      %v5599 = vld [vmem:[%s10 + $0xf8] sm:$0xf]
      %v5600 = vld [vmem:[%s10 + $0xfc] sm:$0xf]
      %v5601 = vld [vmem:[%s11] sm:$0x1]
      %v5603 = vlaneseq
      %v5604 = vshrl.u32 %v5603, 7
      %v5605 = vsub.s32 0, %v5604
      %v5606 = vrot.slane %v5601, %v5605
      %v5672 = vunpack.c.l.b16 %v5537
      %v5673 = vunpack.c.l.b16 %v5538
      %v5674 = vunpack.c.l.b16 %v5539
      %v5675 = vunpack.c.l.b16 %v5540
      %v5676 = vunpack.c.l.b16 %v5541
      %v5677 = vunpack.c.l.b16 %v5542
      %v5678 = vunpack.c.l.b16 %v5543
      %v5679 = vunpack.c.l.b16 %v5544
      %v5680 = vunpack.c.l.b16 %v5545
      %v5681 = vunpack.c.l.b16 %v5546
      %v5682 = vunpack.c.l.b16 %v5547
      %v5683 = vunpack.c.l.b16 %v5548
      %v5684 = vunpack.c.l.b16 %v5549
      %v5685 = vunpack.c.l.b16 %v5550
      %v5686 = vunpack.c.l.b16 %v5551
      %v5687 = vunpack.c.l.b16 %v5552
      %v5688 = vunpack.c.l.b16 %v5553
      %v5689 = vunpack.c.l.b16 %v5554
      %v5690 = vunpack.c.l.b16 %v5555
      %v5691 = vunpack.c.l.b16 %v5556
      %v5692 = vunpack.c.l.b16 %v5557
      %v5693 = vunpack.c.l.b16 %v5558
      %v5694 = vunpack.c.l.b16 %v5559
      %v5695 = vunpack.c.l.b16 %v5560
      %v5696 = vunpack.c.l.b16 %v5561
      %v5697 = vunpack.c.l.b16 %v5562
      %v5698 = vunpack.c.l.b16 %v5563
      %v5699 = vunpack.c.l.b16 %v5564
      %v5700 = vunpack.c.l.b16 %v5565
      %v5701 = vunpack.c.l.b16 %v5566
      %v5702 = vunpack.c.l.b16 %v5567
      %v5703 = vunpack.c.l.b16 %v5568
      %v5704 = vunpack.c.l.b16 %v5569
      %v5705 = vunpack.c.l.b16 %v5570
      %v5706 = vunpack.c.l.b16 %v5571
      %v5707 = vunpack.c.l.b16 %v5572
      %v5708 = vunpack.c.l.b16 %v5573
      %v5709 = vunpack.c.l.b16 %v5574
      %v5710 = vunpack.c.l.b16 %v5575
      %v5711 = vunpack.c.l.b16 %v5576
      %v5712 = vunpack.c.l.b16 %v5577
      %v5713 = vunpack.c.l.b16 %v5578
      %v5714 = vunpack.c.l.b16 %v5579
      %v5715 = vunpack.c.l.b16 %v5580
      %v5716 = vunpack.c.l.b16 %v5581
      %v5717 = vunpack.c.l.b16 %v5582
      %v5718 = vunpack.c.l.b16 %v5583
      %v5719 = vunpack.c.l.b16 %v5584
      %v5720 = vunpack.c.l.b16 %v5585
      %v5721 = vunpack.c.l.b16 %v5586
      %v5722 = vunpack.c.l.b16 %v5587
      %v5723 = vunpack.c.l.b16 %v5588
      %v5724 = vunpack.c.l.b16 %v5589
      %v5725 = vunpack.c.l.b16 %v5590
      %v5726 = vunpack.c.l.b16 %v5591
      %v5727 = vunpack.c.l.b16 %v5592
      %v5728 = vunpack.c.l.b16 %v5593
      %v5729 = vunpack.c.l.b16 %v5594
      %v5730 = vunpack.c.l.b16 %v5595
      %v5731 = vunpack.c.l.b16 %v5596
      %v5732 = vunpack.c.l.b16 %v5597
      %v5733 = vunpack.c.l.b16 %v5598
      %v5734 = vunpack.c.l.b16 %v5599
      %v5735 = vunpack.c.l.b16 %v5600
      %v5736 = vpack.c.b16 %v5673, %v5672
      %v5737 = vpack.c.b16 %v5675, %v5674
      %v5738 = vpack.c.b16 %v5677, %v5676
      %v5739 = vpack.c.b16 %v5679, %v5678
      %v5740 = vpack.c.b16 %v5681, %v5680
      %v5741 = vpack.c.b16 %v5683, %v5682
      %v5742 = vpack.c.b16 %v5685, %v5684
      %v5743 = vpack.c.b16 %v5687, %v5686
      %v5744 = vpack.c.b16 %v5689, %v5688
      %v5745 = vpack.c.b16 %v5691, %v5690
      %v5746 = vpack.c.b16 %v5693, %v5692
      %v5747 = vpack.c.b16 %v5695, %v5694
      %v5748 = vpack.c.b16 %v5697, %v5696
      %v5749 = vpack.c.b16 %v5699, %v5698
      %v5750 = vpack.c.b16 %v5701, %v5700
      %v5751 = vpack.c.b16 %v5703, %v5702
      %v5752 = vpack.c.b16 %v5705, %v5704
      %v5753 = vpack.c.b16 %v5707, %v5706
      %v5754 = vpack.c.b16 %v5709, %v5708
      %v5755 = vpack.c.b16 %v5711, %v5710
      %v5756 = vpack.c.b16 %v5713, %v5712
      %v5757 = vpack.c.b16 %v5715, %v5714
      %v5758 = vpack.c.b16 %v5717, %v5716
      %v5759 = vpack.c.b16 %v5719, %v5718
      %v5760 = vpack.c.b16 %v5721, %v5720
      %v5761 = vpack.c.b16 %v5723, %v5722
      %v5762 = vpack.c.b16 %v5725, %v5724
      %v5763 = vpack.c.b16 %v5727, %v5726
      %v5764 = vpack.c.b16 %v5729, %v5728
      %v5765 = vpack.c.b16 %v5731, %v5730
      %v5766 = vpack.c.b16 %v5733, %v5732
      %v5767 = vpack.c.b16 %v5735, %v5734
      %5800 = vmatprep.subr.bf16.mxu0 0
      %5801 = vmatpush1.bf16.msra.mxu0 %v5736
      %5802 = vmatprep.subr.bf16.mxu0 0
      %5803 = vmatpush1.bf16.msra.mxu0 %v5737
      %5804 = vmatprep.subr.bf16.mxu0 0
      %5805 = vmatpush1.bf16.msra.mxu0 %v5738
      %5806 = vmatprep.subr.bf16.mxu0 0
      %5807 = vmatpush1.bf16.msra.mxu0 %v5739
      %5808 = vmatprep.subr.bf16.mxu0 0
      %5809 = vmatpush1.bf16.msra.mxu0 %v5740
      %5810 = vmatprep.subr.bf16.mxu0 0
      %5811 = vmatpush1.bf16.msra.mxu0 %v5741
      %5812 = vmatprep.subr.bf16.mxu0 0
      %5813 = vmatpush1.bf16.msra.mxu0 %v5742
      %5814 = vmatprep.subr.bf16.mxu0 0
      %5815 = vmatpush1.bf16.msra.mxu0 %v5743
      %5816 = vmatprep.subr.bf16.mxu0 0
      %5817 = vmatpush1.bf16.msra.mxu0 %v5744
      %5818 = vmatprep.subr.bf16.mxu0 0
      %5819 = vmatpush1.bf16.msra.mxu0 %v5745
      %5820 = vmatprep.subr.bf16.mxu0 0
      %5821 = vmatpush1.bf16.msra.mxu0 %v5746
      %5822 = vmatprep.subr.bf16.mxu0 0
      %5823 = vmatpush1.bf16.msra.mxu0 %v5747
      %5824 = vmatprep.subr.bf16.mxu0 0
      %5825 = vmatpush1.bf16.msra.mxu0 %v5748
      %5826 = vmatprep.subr.bf16.mxu0 0
      %5827 = vmatpush1.bf16.msra.mxu0 %v5749
      %5828 = vmatprep.subr.bf16.mxu0 0
      %5829 = vmatpush1.bf16.msra.mxu0 %v5750
      %5830 = vmatprep.subr.bf16.mxu0 0
      %5831 = vmatpush1.bf16.msra.mxu0 %v5751
      %5832 = vmatprep.mubr.bf16.mxu0 %v5474
      %5833 = vmatmul.mubr.bf16.gmra.mrb[0].mxu0 %v5473
      %v5834 = vpop.f32.mrb[0].mxu0
      %v5835 = vadd.f32 %v5606, %v5834
      %v5836 = vpop.f32.mrb[0].mxu0
      %v5837 = vpop.f32.mrb[0].mxu0
      %v5838 = vadd.f32 %v5606, %v5837
      %v5839 = vpop.f32.mrb[0].mxu0
      %5840 = vmatprep.mubr.bf16.mxu0 %v5478
      %5841 = vmatmul.mubr.bf16.gmra.mrb[0].mxu0 %v5477
      %v5842 = vpop.f32.mrb[0].mxu0
      %v5843 = vadd.f32 %v5606, %v5842
      %v5844 = vpop.f32.mrb[0].mxu0
      %v5845 = vpop.f32.mrb[0].mxu0
      %v5846 = vadd.f32 %v5606, %v5845
      %v5847 = vpop.f32.mrb[0].mxu0
      %5848 = vmatprep.mubr.bf16.mxu0 %v5482
      %5849 = vmatmul.mubr.bf16.gmra.mrb[0].mxu0 %v5481
      %v5850 = vpop.f32.mrb[0].mxu0
      %v5851 = vadd.f32 %v5606, %v5850
      %v5852 = vpop.f32.mrb[0].mxu0
      %v5853 = vpop.f32.mrb[0].mxu0
      %v5854 = vadd.f32 %v5606, %v5853
      %v5855 = vpop.f32.mrb[0].mxu0
      %5856 = vmatprep.mubr.bf16.mxu0 %v5486
      %5857 = vmatmul.mubr.bf16.gmra.mrb[0].mxu0 %v5485
      %v5858 = vpop.f32.mrb[0].mxu0
      %v5859 = vadd.f32 %v5606, %v5858
      %v5860 = vpop.f32.mrb[0].mxu0
      %v5861 = vpop.f32.mrb[0].mxu0
      %v5862 = vadd.f32 %v5606, %v5861
      %v5863 = vpop.f32.mrb[0].mxu0
      %5864 = vmatprep.mubr.bf16.mxu0 %v5490
      %5865 = vmatmul.mubr.bf16.gmra.mrb[0].mxu0 %v5489
      %v5866 = vpop.f32.mrb[0].mxu0
      %v5867 = vadd.f32 %v5606, %v5866
      %v5868 = vpop.f32.mrb[0].mxu0
      %v5869 = vpop.f32.mrb[0].mxu0
      %v5870 = vadd.f32 %v5606, %v5869
      %v5871 = vpop.f32.mrb[0].mxu0
      %5872 = vmatprep.mubr.bf16.mxu0 %v5494
      %5873 = vmatmul.mubr.bf16.gmra.mrb[0].mxu0 %v5493
      %v5874 = vpop.f32.mrb[0].mxu0
      %v5875 = vadd.f32 %v5606, %v5874
      %v5876 = vpop.f32.mrb[0].mxu0
      %v5877 = vpop.f32.mrb[0].mxu0
      %v5878 = vadd.f32 %v5606, %v5877
      %v5879 = vpop.f32.mrb[0].mxu0
      %5880 = vmatprep.mubr.bf16.mxu0 %v5498
      %5881 = vmatmul.mubr.bf16.gmra.mrb[0].mxu0 %v5497
      %v5882 = vpop.f32.mrb[0].mxu0
      %v5883 = vadd.f32 %v5606, %v5882
      %v5884 = vpop.f32.mrb[0].mxu0
      %v5885 = vpop.f32.mrb[0].mxu0
      %v5886 = vadd.f32 %v5606, %v5885
      %v5887 = vpop.f32.mrb[0].mxu0
      %5888 = vmatprep.mubr.bf16.mxu0 %v5502
      %5889 = vmatmul.mubr.bf16.gmra.mrb[0].mxu0 %v5501
      %v5890 = vpop.f32.mrb[0].mxu0
      %v5891 = vadd.f32 %v5606, %v5890
      %v5892 = vpop.f32.mrb[0].mxu0
      %v5893 = vpop.f32.mrb[0].mxu0
      %v5894 = vadd.f32 %v5606, %v5893
      %v5895 = vpop.f32.mrb[0].mxu0
      %5896 = vmatprep.mubr.bf16.mxu0 %v5506
      %5897 = vmatmul.mubr.bf16.gmra.mrb[0].mxu0 %v5505
      %v5898 = vpop.f32.mrb[0].mxu0
      %v5899 = vadd.f32 %v5606, %v5898
      %v5900 = vpop.f32.mrb[0].mxu0
      %v5901 = vpop.f32.mrb[0].mxu0
      %v5902 = vadd.f32 %v5606, %v5901
      %v5903 = vpop.f32.mrb[0].mxu0
      %5904 = vmatprep.mubr.bf16.mxu0 %v5510
      %5905 = vmatmul.mubr.bf16.gmra.mrb[0].mxu0 %v5509
      %v5906 = vpop.f32.mrb[0].mxu0
      %v5907 = vadd.f32 %v5606, %v5906
      %v5908 = vpop.f32.mrb[0].mxu0
      %v5909 = vpop.f32.mrb[0].mxu0
      %v5910 = vadd.f32 %v5606, %v5909
      %v5911 = vpop.f32.mrb[0].mxu0
      %5912 = vmatprep.mubr.bf16.mxu0 %v5514
      %5913 = vmatmul.mubr.bf16.gmra.mrb[0].mxu0 %v5513
      %v5914 = vpop.f32.mrb[0].mxu0
      %v5915 = vadd.f32 %v5606, %v5914
      %v5916 = vpop.f32.mrb[0].mxu0
      %v5917 = vpop.f32.mrb[0].mxu0
      %v5918 = vadd.f32 %v5606, %v5917
      %v5919 = vpop.f32.mrb[0].mxu0
      %5920 = vmatprep.mubr.bf16.mxu0 %v5518
      %5921 = vmatmul.mubr.bf16.gmra.mrb[0].mxu0 %v5517
      %v5922 = vpop.f32.mrb[0].mxu0
      %v5923 = vadd.f32 %v5606, %v5922
      %v5924 = vpop.f32.mrb[0].mxu0
      %v5925 = vpop.f32.mrb[0].mxu0
      %v5926 = vadd.f32 %v5606, %v5925
      %v5927 = vpop.f32.mrb[0].mxu0
      %5928 = vmatprep.mubr.bf16.mxu0 %v5522
      %5929 = vmatmul.mubr.bf16.gmra.mrb[0].mxu0 %v5521
      %v5930 = vpop.f32.mrb[0].mxu0
      %v5931 = vadd.f32 %v5606, %v5930
      %v5932 = vpop.f32.mrb[0].mxu0
      %v5933 = vpop.f32.mrb[0].mxu0
      %v5934 = vadd.f32 %v5606, %v5933
      %v5935 = vpop.f32.mrb[0].mxu0
      %5936 = vmatprep.mubr.bf16.mxu0 %v5526
      %5937 = vmatmul.mubr.bf16.gmra.mrb[0].mxu0 %v5525
      %v5938 = vpop.f32.mrb[0].mxu0
      %v5939 = vadd.f32 %v5606, %v5938
      %v5940 = vpop.f32.mrb[0].mxu0
      %v5941 = vpop.f32.mrb[0].mxu0
      %v5942 = vadd.f32 %v5606, %v5941
      %v5943 = vpop.f32.mrb[0].mxu0
      %5944 = vmatprep.mubr.bf16.mxu0 %v5530
      %5945 = vmatmul.mubr.bf16.gmra.mrb[0].mxu0 %v5529
      %v5946 = vpop.f32.mrb[0].mxu0
      %v5947 = vadd.f32 %v5606, %v5946
      %v5948 = vpop.f32.mrb[0].mxu0
      %v5949 = vpop.f32.mrb[0].mxu0
      %v5950 = vadd.f32 %v5606, %v5949
      %v5951 = vpop.f32.mrb[0].mxu0
      %5952 = vmatprep.mubr.bf16.mxu0 %v5534
      %5953 = vmatmul.mubr.bf16.gmra.mrb[0].mxu0 %v5533
      %v5954 = vpop.f32.mrb[0].mxu0
      %v5955 = vadd.f32 %v5606, %v5954
      %v5956 = vpop.f32.mrb[0].mxu0
      %v5957 = vpop.f32.mrb[0].mxu0
      %v5958 = vadd.f32 %v5606, %v5957
      %v5959 = vpop.f32.mrb[0].mxu0
      %5960 = vdwg.mxu0
      %5961 = vmatprep.subr.bf16.mxu0 0
      %5962 = vmatpush1.bf16.msra.mxu0 %v5752
      %5963 = vmatprep.subr.bf16.mxu0 0
      %5964 = vmatpush1.bf16.msra.mxu0 %v5753
      %5965 = vmatprep.subr.bf16.mxu0 0
      %5966 = vmatpush1.bf16.msra.mxu0 %v5754
      %5967 = vmatprep.subr.bf16.mxu0 0
      %5968 = vmatpush1.bf16.msra.mxu0 %v5755
      %5969 = vmatprep.subr.bf16.mxu0 0
      %5970 = vmatpush1.bf16.msra.mxu0 %v5756
      %5971 = vmatprep.subr.bf16.mxu0 0
      %5972 = vmatpush1.bf16.msra.mxu0 %v5757
      %5973 = vmatprep.subr.bf16.mxu0 0
      %5974 = vmatpush1.bf16.msra.mxu0 %v5758
      %5975 = vmatprep.subr.bf16.mxu0 0
      %5976 = vmatpush1.bf16.msra.mxu0 %v5759
      %5977 = vmatprep.subr.bf16.mxu0 0
      %5978 = vmatpush1.bf16.msra.mxu0 %v5760
      %5979 = vmatprep.subr.bf16.mxu0 0
      %5980 = vmatpush1.bf16.msra.mxu0 %v5761
      %5981 = vmatprep.subr.bf16.mxu0 0
      %5982 = vmatpush1.bf16.msra.mxu0 %v5762
      %5983 = vmatprep.subr.bf16.mxu0 0
      %5984 = vmatpush1.bf16.msra.mxu0 %v5763
      %5985 = vmatprep.subr.bf16.mxu0 0
      %5986 = vmatpush1.bf16.msra.mxu0 %v5764
      %5987 = vmatprep.subr.bf16.mxu0 0
      %5988 = vmatpush1.bf16.msra.mxu0 %v5765
      %5989 = vmatprep.subr.bf16.mxu0 0
      %5990 = vmatpush1.bf16.msra.mxu0 %v5766
      %5991 = vmatprep.subr.bf16.mxu0 0
      %5992 = vmatpush1.bf16.msra.mxu0 %v5767
      %5993 = vmatprep.mubr.bf16.mxu0 %v5476
      %5994 = vmatmul.mubr.bf16.gmra.mrb[0].mxu0 %v5475
      %v5995 = vpop.f32.mrb[0].mxu0
      %v5996 = vadd.f32 %v5835, %v5995
      %v5997 = vpop.f32.mrb[0].mxu0
      %v5998 = vpop.f32.mrb[0].mxu0
      %v5999 = vadd.f32 %v5838, %v5998
      %v6000 = vpop.f32.mrb[0].mxu0
      %6001 = vmatprep.mubr.bf16.mxu0 %v5480
      %6002 = vmatmul.mubr.bf16.gmra.mrb[0].mxu0 %v5479
      %v6003 = vpop.f32.mrb[0].mxu0
      %v6004 = vadd.f32 %v5843, %v6003
      %v6005 = vpop.f32.mrb[0].mxu0
      %v6006 = vpop.f32.mrb[0].mxu0
      %v6007 = vadd.f32 %v5846, %v6006
      %v6008 = vpop.f32.mrb[0].mxu0
      %6009 = vmatprep.mubr.bf16.mxu0 %v5484
      %6010 = vmatmul.mubr.bf16.gmra.mrb[0].mxu0 %v5483
      %v6011 = vpop.f32.mrb[0].mxu0
      %v6012 = vadd.f32 %v5851, %v6011
      %v6013 = vpop.f32.mrb[0].mxu0
      %v6014 = vpop.f32.mrb[0].mxu0
      %v6015 = vadd.f32 %v5854, %v6014
      %v6016 = vpop.f32.mrb[0].mxu0
      %6017 = vmatprep.mubr.bf16.mxu0 %v5488
      %6018 = vmatmul.mubr.bf16.gmra.mrb[0].mxu0 %v5487
      %v6019 = vpop.f32.mrb[0].mxu0
      %v6020 = vadd.f32 %v5859, %v6019
      %v6021 = vpop.f32.mrb[0].mxu0
      %v6022 = vpop.f32.mrb[0].mxu0
      %v6023 = vadd.f32 %v5862, %v6022
      %v6024 = vpop.f32.mrb[0].mxu0
      %6025 = vmatprep.mubr.bf16.mxu0 %v5492
      %6026 = vmatmul.mubr.bf16.gmra.mrb[0].mxu0 %v5491
      %v6027 = vpop.f32.mrb[0].mxu0
      %v6028 = vadd.f32 %v5867, %v6027
      %v6029 = vpop.f32.mrb[0].mxu0
      %v6030 = vpop.f32.mrb[0].mxu0
      %v6031 = vadd.f32 %v5870, %v6030
      %v6032 = vpop.f32.mrb[0].mxu0
      %6033 = vmatprep.mubr.bf16.mxu0 %v5496
      %6034 = vmatmul.mubr.bf16.gmra.mrb[0].mxu0 %v5495
      %v6035 = vpop.f32.mrb[0].mxu0
      %v6036 = vadd.f32 %v5875, %v6035
      %v6037 = vpop.f32.mrb[0].mxu0
      %v6038 = vpop.f32.mrb[0].mxu0
      %v6039 = vadd.f32 %v5878, %v6038
      %v6040 = vpop.f32.mrb[0].mxu0
      %6041 = vmatprep.mubr.bf16.mxu0 %v5500
      %6042 = vmatmul.mubr.bf16.gmra.mrb[0].mxu0 %v5499
      %v6043 = vpop.f32.mrb[0].mxu0
      %v6044 = vadd.f32 %v5883, %v6043
      %v6045 = vpop.f32.mrb[0].mxu0
      %v6046 = vpop.f32.mrb[0].mxu0
      %v6047 = vadd.f32 %v5886, %v6046
      %v6048 = vpop.f32.mrb[0].mxu0
      %6049 = vmatprep.mubr.bf16.mxu0 %v5504
      %6050 = vmatmul.mubr.bf16.gmra.mrb[0].mxu0 %v5503
      %v6051 = vpop.f32.mrb[0].mxu0
      %v6052 = vadd.f32 %v5891, %v6051
      %v6053 = vpop.f32.mrb[0].mxu0
      %v6054 = vpop.f32.mrb[0].mxu0
      %v6055 = vadd.f32 %v5894, %v6054
      %v6056 = vpop.f32.mrb[0].mxu0
      %6057 = vmatprep.mubr.bf16.mxu0 %v5508
      %6058 = vmatmul.mubr.bf16.gmra.mrb[0].mxu0 %v5507
      %v6059 = vpop.f32.mrb[0].mxu0
      %v6060 = vadd.f32 %v5899, %v6059
      %v6061 = vpop.f32.mrb[0].mxu0
      %v6062 = vpop.f32.mrb[0].mxu0
      %v6063 = vadd.f32 %v5902, %v6062
      %v6064 = vpop.f32.mrb[0].mxu0
      %6065 = vmatprep.mubr.bf16.mxu0 %v5512
      %6066 = vmatmul.mubr.bf16.gmra.mrb[0].mxu0 %v5511
      %v6067 = vpop.f32.mrb[0].mxu0
      %v6068 = vadd.f32 %v5907, %v6067
      %v6069 = vpop.f32.mrb[0].mxu0
      %v6070 = vpop.f32.mrb[0].mxu0
      %v6071 = vadd.f32 %v5910, %v6070
      %v6072 = vpop.f32.mrb[0].mxu0
      %6073 = vmatprep.mubr.bf16.mxu0 %v5516
      %6074 = vmatmul.mubr.bf16.gmra.mrb[0].mxu0 %v5515
      %v6075 = vpop.f32.mrb[0].mxu0
      %v6076 = vadd.f32 %v5915, %v6075
      %v6077 = vpop.f32.mrb[0].mxu0
      %v6078 = vpop.f32.mrb[0].mxu0
      %v6079 = vadd.f32 %v5918, %v6078
      %v6080 = vpop.f32.mrb[0].mxu0
      %6081 = vmatprep.mubr.bf16.mxu0 %v5520
      %6082 = vmatmul.mubr.bf16.gmra.mrb[0].mxu0 %v5519
      %v6083 = vpop.f32.mrb[0].mxu0
      %v6084 = vadd.f32 %v5923, %v6083
      %v6085 = vpop.f32.mrb[0].mxu0
      %v6086 = vpop.f32.mrb[0].mxu0
      %v6087 = vadd.f32 %v5926, %v6086
      %v6088 = vpop.f32.mrb[0].mxu0
      %6089 = vmatprep.mubr.bf16.mxu0 %v5524
      %6090 = vmatmul.mubr.bf16.gmra.mrb[0].mxu0 %v5523
      %v6091 = vpop.f32.mrb[0].mxu0
      %v6092 = vadd.f32 %v5931, %v6091
      %v6093 = vpop.f32.mrb[0].mxu0
      %v6094 = vpop.f32.mrb[0].mxu0
      %v6095 = vadd.f32 %v5934, %v6094
      %v6096 = vpop.f32.mrb[0].mxu0
      %6097 = vmatprep.mubr.bf16.mxu0 %v5528
      %6098 = vmatmul.mubr.bf16.gmra.mrb[0].mxu0 %v5527
      %v6099 = vpop.f32.mrb[0].mxu0
      %v6100 = vadd.f32 %v5939, %v6099
      %v6101 = vpop.f32.mrb[0].mxu0
      %v6102 = vpop.f32.mrb[0].mxu0
      %v6103 = vadd.f32 %v5942, %v6102
      %v6104 = vpop.f32.mrb[0].mxu0
      %6105 = vmatprep.mubr.bf16.mxu0 %v5532
      %6106 = vmatmul.mubr.bf16.gmra.mrb[0].mxu0 %v5531
      %v6107 = vpop.f32.mrb[0].mxu0
      %v6108 = vadd.f32 %v5947, %v6107
      %v6109 = vpop.f32.mrb[0].mxu0
      %v6110 = vpop.f32.mrb[0].mxu0
      %v6111 = vadd.f32 %v5950, %v6110
      %v6112 = vpop.f32.mrb[0].mxu0
      %6113 = vmatprep.mubr.bf16.mxu0 %v5536
      %6114 = vmatmul.mubr.bf16.gmra.mrb[0].mxu0 %v5535
      %v6115 = vpop.f32.mrb[0].mxu0
      %v6116 = vadd.f32 %v5955, %v6115
      %v6117 = vpop.f32.mrb[0].mxu0
      %v6118 = vpop.f32.mrb[0].mxu0
      %v6119 = vadd.f32 %v5958, %v6118
      %v6120 = vpop.f32.mrb[0].mxu0
      %6121 = vdwg.mxu0
      %v6122 = vmax.f32 %v5996, 0.0
      %v6123 = vmax.f32 %v5999, 0.0
      %v6124 = vmax.f32 %v6004, 0.0
      %v6125 = vmax.f32 %v6007, 0.0
      %v6126 = vmax.f32 %v6012, 0.0
      %v6127 = vmax.f32 %v6015, 0.0
      %v6128 = vmax.f32 %v6020, 0.0
      %v6129 = vmax.f32 %v6023, 0.0
      %v6130 = vmax.f32 %v6028, 0.0
      %v6131 = vmax.f32 %v6031, 0.0
      %v6132 = vmax.f32 %v6036, 0.0
      %v6133 = vmax.f32 %v6039, 0.0
      %v6134 = vmax.f32 %v6044, 0.0
      %v6135 = vmax.f32 %v6047, 0.0
      %v6136 = vmax.f32 %v6052, 0.0
      %v6137 = vmax.f32 %v6055, 0.0
      %v6138 = vmax.f32 %v6060, 0.0
      %v6139 = vmax.f32 %v6063, 0.0
      %v6140 = vmax.f32 %v6068, 0.0
      %v6141 = vmax.f32 %v6071, 0.0
      %v6142 = vmax.f32 %v6076, 0.0
      %v6143 = vmax.f32 %v6079, 0.0
      %v6144 = vmax.f32 %v6084, 0.0
      %v6145 = vmax.f32 %v6087, 0.0
      %v6146 = vmax.f32 %v6092, 0.0
      %v6147 = vmax.f32 %v6095, 0.0
      %v6148 = vmax.f32 %v6100, 0.0
      %v6149 = vmax.f32 %v6103, 0.0
      %v6150 = vmax.f32 %v6108, 0.0
      %v6151 = vmax.f32 %v6111, 0.0
      %v6152 = vmax.f32 %v6116, 0.0
      %v6153 = vmax.f32 %v6119, 0.0
      %6154 = vst [vmem:[%s518] sm:$0xff] %v6122
      %6155 = vst [vmem:[%s518 + $0x8] sm:$0xff] %v6123
      %6156 = vst [vmem:[%s518 + $0x10] sm:$0xff] %v6124
      %6157 = vst [vmem:[%s518 + $0x18] sm:$0xff] %v6125
      %6158 = vst [vmem:[%s518 + $0x20] sm:$0xff] %v6126
      %6159 = vst [vmem:[%s518 + $0x28] sm:$0xff] %v6127
      %6160 = vst [vmem:[%s518 + $0x30] sm:$0xff] %v6128
      %6161 = vst [vmem:[%s518 + $0x38] sm:$0xff] %v6129
      %6162 = vst [vmem:[%s518 + $0x40] sm:$0xff] %v6130
      %6163 = vst [vmem:[%s518 + $0x48] sm:$0xff] %v6131
      %6164 = vst [vmem:[%s518 + $0x50] sm:$0xff] %v6132
      %6165 = vst [vmem:[%s518 + $0x58] sm:$0xff] %v6133
      %6166 = vst [vmem:[%s518 + $0x60] sm:$0xff] %v6134
      %6167 = vst [vmem:[%s518 + $0x68] sm:$0xff] %v6135
      %6168 = vst [vmem:[%s518 + $0x70] sm:$0xff] %v6136
      %6169 = vst [vmem:[%s518 + $0x78] sm:$0xff] %v6137
      %6170 = vst [vmem:[%s518 + $0x80] sm:$0xff] %v6138
      %6171 = vst [vmem:[%s518 + $0x88] sm:$0xff] %v6139
      %6172 = vst [vmem:[%s518 + $0x90] sm:$0xff] %v6140
      %6173 = vst [vmem:[%s518 + $0x98] sm:$0xff] %v6141
      %6174 = vst [vmem:[%s518 + $0xa0] sm:$0xff] %v6142
      %6175 = vst [vmem:[%s518 + $0xa8] sm:$0xff] %v6143
      %6176 = vst [vmem:[%s518 + $0xb0] sm:$0xff] %v6144
      %6177 = vst [vmem:[%s518 + $0xb8] sm:$0xff] %v6145
      %6178 = vst [vmem:[%s518 + $0xc0] sm:$0xff] %v6146
      %6179 = vst [vmem:[%s518 + $0xc8] sm:$0xff] %v6147
      %6180 = vst [vmem:[%s518 + $0xd0] sm:$0xff] %v6148
      %6181 = vst [vmem:[%s518 + $0xd8] sm:$0xff] %v6149
      %6182 = vst [vmem:[%s518 + $0xe0] sm:$0xff] %v6150
      %6183 = vst [vmem:[%s518 + $0xe8] sm:$0xff] %v6151
      %6184 = vst [vmem:[%s518 + $0xf0] sm:$0xff] %v6152
      %6185 = vst [vmem:[%s518 + $0xf8] sm:$0xff] %v6153
      %6186 = vst [vmem:[%s529] sm:$0xff] %v4457
      %6187 = vst [vmem:[%s529 + $0x8] sm:$0xff] %v4458
      %6188 = vst [vmem:[%s529 + $0x10] sm:$0xff] %v4459
      %6189 = vst [vmem:[%s529 + $0x18] sm:$0xff] %v4460
      %6190 = vst [vmem:[%s529 + $0x20] sm:$0xff] %v4461
      %6191 = vst [vmem:[%s529 + $0x28] sm:$0xff] %v4462
      %6192 = vst [vmem:[%s529 + $0x30] sm:$0xff] %v4463
      %6193 = vst [vmem:[%s529 + $0x38] sm:$0xff] %v4464
      %6194 = vst [vmem:[%s529 + $0x40] sm:$0xff] %v4465
      %6195 = vst [vmem:[%s529 + $0x48] sm:$0xff] %v4466
      %6196 = vst [vmem:[%s529 + $0x50] sm:$0xff] %v4467
      %6197 = vst [vmem:[%s529 + $0x58] sm:$0xff] %v4468
      %6198 = vst [vmem:[%s529 + $0x60] sm:$0xff] %v4469
      %6199 = vst [vmem:[%s529 + $0x68] sm:$0xff] %v4470
      %6200 = vst [vmem:[%s529 + $0x70] sm:$0xff] %v4471
      %6201 = vst [vmem:[%s529 + $0x78] sm:$0xff] %v4472
      %6202 = vst [vmem:[%s529 + $0x80] sm:$0xff] %v4473
      %6203 = vst [vmem:[%s529 + $0x88] sm:$0xff] %v4474
      %6204 = vst [vmem:[%s529 + $0x90] sm:$0xff] %v4475
      %6205 = vst [vmem:[%s529 + $0x98] sm:$0xff] %v4476
      %6206 = vst [vmem:[%s529 + $0xa0] sm:$0xff] %v4477
      %6207 = vst [vmem:[%s529 + $0xa8] sm:$0xff] %v4478
      %6208 = vst [vmem:[%s529 + $0xb0] sm:$0xff] %v4479
      %6209 = vst [vmem:[%s529 + $0xb8] sm:$0xff] %v4480
      %6210 = vst [vmem:[%s529 + $0xc0] sm:$0xff] %v4481
      %6211 = vst [vmem:[%s529 + $0xc8] sm:$0xff] %v4482
      %6212 = vst [vmem:[%s529 + $0xd0] sm:$0xff] %v4483
      %6213 = vst [vmem:[%s529 + $0xd8] sm:$0xff] %v4484
      %6214 = vst [vmem:[%s529 + $0xe0] sm:$0xff] %v4485
      %6215 = vst [vmem:[%s529 + $0xe8] sm:$0xff] %v4486
      %6216 = vst [vmem:[%s529 + $0xf0] sm:$0xff] %v4487
      %6217 = vst [vmem:[%s529 + $0xf8] sm:$0xff] %v4488
      %6218 = vst [vmem:[%s529 + $0x100] sm:$0xff] %v4489
      %6219 = vst [vmem:[%s529 + $0x108] sm:$0xff] %v4490
      %6220 = vst [vmem:[%s529 + $0x110] sm:$0xff] %v4491
      %6221 = vst [vmem:[%s529 + $0x118] sm:$0xff] %v4492
      %6222 = vst [vmem:[%s529 + $0x120] sm:$0xff] %v4493
      %6223 = vst [vmem:[%s529 + $0x128] sm:$0xff] %v4494
      %6224 = vst [vmem:[%s529 + $0x130] sm:$0xff] %v4495
      %6225 = vst [vmem:[%s529 + $0x138] sm:$0xff] %v4496
      %6226 = vst [vmem:[%s529 + $0x140] sm:$0xff] %v4497
      %6227 = vst [vmem:[%s529 + $0x148] sm:$0xff] %v4498
      %6228 = vst [vmem:[%s529 + $0x150] sm:$0xff] %v4499
      %6229 = vst [vmem:[%s529 + $0x158] sm:$0xff] %v4500
      %6230 = vst [vmem:[%s529 + $0x160] sm:$0xff] %v4501
      %6231 = vst [vmem:[%s529 + $0x168] sm:$0xff] %v4502
      %6232 = vst [vmem:[%s529 + $0x170] sm:$0xff] %v4503
      %6233 = vst [vmem:[%s529 + $0x178] sm:$0xff] %v4504
      %6234 = vst [vmem:[%s529 + $0x180] sm:$0xff] %v4505
      %6235 = vst [vmem:[%s529 + $0x188] sm:$0xff] %v4506
      %6236 = vst [vmem:[%s529 + $0x190] sm:$0xff] %v4507
      %6237 = vst [vmem:[%s529 + $0x198] sm:$0xff] %v4508
      %6238 = vst [vmem:[%s529 + $0x1a0] sm:$0xff] %v4509
      %6239 = vst [vmem:[%s529 + $0x1a8] sm:$0xff] %v4510
      %6240 = vst [vmem:[%s529 + $0x1b0] sm:$0xff] %v4511
      %6241 = vst [vmem:[%s529 + $0x1b8] sm:$0xff] %v4512
      %6242 = vst [vmem:[%s529 + $0x1c0] sm:$0xff] %v4513
      %6243 = vst [vmem:[%s529 + $0x1c8] sm:$0xff] %v4514
      %6244 = vst [vmem:[%s529 + $0x1d0] sm:$0xff] %v4515
      %6245 = vst [vmem:[%s529 + $0x1d8] sm:$0xff] %v4516
      %6246 = vst [vmem:[%s529 + $0x1e0] sm:$0xff] %v4517
      %6247 = vst [vmem:[%s529 + $0x1e8] sm:$0xff] %v4518
      %6248 = vst [vmem:[%s529 + $0x1f0] sm:$0xff] %v4519
      %6249 = vst [vmem:[%s529 + $0x1f8] sm:$0xff] %v4520
      %s6250 = smul.u32 32, %s30
      %p6251 = scmp.lt.s32.totalorder %s29, 1
      %s6252 = scalar_select %p6251, %s29, 1
      %p6253 = scmp.lt.s32.totalorder %s6250, 31
      %s6254 = scalar_select %p6253, %s6250, 31
      %s6255 = smul.addr %s6252, 32
      %s6256 = sadd.s32 %s6254, %s6255
      %s6257 = smul.addr %s6256, 8
      %s6258 = scalar_lea.vmem %s12, %s6257
      %s6259 = smul.u32 32, %s30
      %p6260 = scmp.lt.s32.totalorder %s29, 1
      %s6261 = scalar_select %p6260, %s29, 1
      %p6262 = scmp.lt.s32.totalorder %s6259, 31
      %s6263 = scalar_select %p6262, %s6259, 31
      %s6264 = smul.addr %s6263, 2
      %s6265 = smul.addr %s6261, 64
      %s6266 = sadd.s32 %s6264, %s6265
      %s6267 = smul.addr %s6266, 8
      %s6268 = scalar_lea.vmem %s13, %s6267
      // Predicated region
      $region69: #{regressor_forward.1} parent=67 // pred_check
        %p6269 = pneg %p321
      $region70: #{regressor_forward.1} parent=67 // pred_check_branch
        %6271 = sbr.rel (%p6269) target = $region72
      $region71: #{regressor_forward.1} parent=67 // pred_region
        %s6272 = smul.u32 32, %s30
      $region72: #{regressor_forward.1} parent=67 // pred_fallthru
        _
      // Predicated region
      $region73: #{regressor_forward.1} parent=67 // pred_check
        %p6273 = pneg %p349
      $region74: #{regressor_forward.1} parent=67 // pred_check_branch
        %6275 = sbr.rel (%p6273) target = $region76
      $region75: #{regressor_forward.1} parent=67 // pred_region
        %s6276 = smul.u32 32, %s30
      $region76: #{regressor_forward.1} parent=67 // pred_fallthru
        _
    $region68: #{regressor_forward.1} parent=5 // pred_fallthru
      _
    %p6277 = scmp.le.s32.totalorder 2, %s20
    // Predicated region
    $region77: #{regressor_forward.1} parent=5 // pred_check
      %p6278 = pneg %p6277
    $region78: #{regressor_forward.1} parent=5 // pred_check_branch
      %6280 = sbr.rel (%p6278) target = $region80
    $region79: #{regressor_forward.1} parent=5 // pred_region
      %s6281 = ssub.s32 %s20, 2
      // Predicated region
      $region81: #{regressor_forward.1} parent=79 // pred_check
        %p6282 = pneg %p327
      $region82: #{regressor_forward.1} parent=79 // pred_check_branch
        %6284 = sbr.rel (%p6282) target = $region84
      $region83: #{regressor_forward.1} parent=79 // pred_region
        %s6285 = smul.u32 32, %s32
        %p6286 = scmp.lt.s32.totalorder %s31, 1
        %s6287 = scalar_select %p6286, %s31, 1
        %p6288 = scmp.lt.s32.totalorder %s6285, 31
        %s6289 = scalar_select %p6288, %s6285, 31
        %s6290 = smul.addr %s6287, 32
        %s6291 = sadd.s32 %s6289, %s6290
        %s6292 = smul.addr %s6291, 8
        %s6293 = scalar_lea.vmem %s12, %s6292
      $region84: #{regressor_forward.1} parent=79 // pred_fallthru
        _
      // Predicated region
      $region85: #{regressor_forward.1} parent=79 // pred_check
        %p6294 = pneg %p355
      $region86: #{regressor_forward.1} parent=79 // pred_check_branch
        %6296 = sbr.rel (%p6294) target = $region88
      $region87: #{regressor_forward.1} parent=79 // pred_region
        %s6297 = smul.u32 32, %s32
        %p6298 = scmp.lt.s32.totalorder %s31, 1
        %s6299 = scalar_select %p6298, %s31, 1
        %p6300 = scmp.lt.s32.totalorder %s6297, 31
        %s6301 = scalar_select %p6300, %s6297, 31
        %s6302 = smul.addr %s6301, 2
        %s6303 = smul.addr %s6299, 64
        %s6304 = sadd.s32 %s6302, %s6303
        %s6305 = smul.addr %s6304, 8
        %s6306 = scalar_lea.vmem %s13, %s6305
      $region88: #{regressor_forward.1} parent=79 // pred_fallthru
        _
    $region80: #{regressor_forward.1} parent=5 // pred_fallthru
      _
  $region6: #{regressor_forward.1} parent=0 // loop_footer
    %s24 = sadd.s32 1, %s20
  $region7: #{regressor_forward.1} parent=0 // loop_footer_branch
    %19 = sbr.rel target = $region3
  $region8: #{regressor_forward.1} parent=0 // loop_exit
    _

</llo_original>
